<compile_context>
chip_gen: v6e
topology: v6e:2x2x1
jax: 0.10.0
libtpu: 0.0.40
codegen_flags: <defaults>
</compile_context>

<pallas_src>
import functools

import jax
import jax.numpy as jnp
from jax.experimental import pallas as pl
from jax.experimental.pallas import tpu as pltpu


def _gat_kernel(h_ref, w_ref, a_ref, adj_ref, bias_ref, o_ref,
                hp_ref, src_ref, dst_ref, acc_ref, *, n_head, f_out, tile_n):
    # h_ref:    (1, n_p, f_in_p)    bf16  all rows of the current batch element
    # w_ref:    (f_in_p, f_pad)     bf16  all heads fused along lanes
    # a_ref:    (f_pad, 2*n_head)   f32   block-diag: col hd = a_src[hd],
    #                                     col n_head+hd = a_dst[hd]
    # adj_ref:  (1, tile_n, n_p)    int8  row tile of (adj | I)
    # bias_ref: (1, f_pad)          f32   bias tiled per head
    # o_ref:    (1, tile_n, f_pad)  f32   lane-dense output slab
    # hp_ref:   (n_p, f_pad)        bf16  scratch: h' cache (reused over row tiles)
    # src_ref:  (n_p, n_head)       f32   scratch: per-row src logits
    # dst_ref:  (n_head, n_p)       f32   scratch: per-row dst logits, pre-transposed
    # acc_ref:  (tile_n, f_pad)     f32   scratch: output slab accumulator
    n_p = hp_ref.shape[0]
    f_pad = o_ref.shape[-1]
    f_tot = n_head * f_out
    n_tiles = n_p // tile_n
    r = pl.program_id(1)

    # ---- prologue: projection + attention logits for the whole graph, once
    # per batch element, in row chunks to bound the f32 working set ----
    @pl.when(r == 0)
    def _():
        w = w_ref[...]                                     # (f_in_p, f_pad) bf16
        a = a_ref[...]                                     # (f_pad, 2*n_head) f32

        @pl.loop(0, n_tiles)
        def _(c):
            c0 = pl.multiple_of(c * tile_n, tile_n)
            hc = h_ref[0, pl.ds(c0, tile_n), :]            # (tile_n, f_in_p) bf16
            hp = jnp.dot(hc, w, preferred_element_type=jnp.float32)
            sd = jnp.dot(jnp.tanh(hp), a, preferred_element_type=jnp.float32)
            hp_ref[pl.ds(c0, tile_n), :] = hp.astype(jnp.bfloat16)
            src_ref[pl.ds(c0, tile_n), :] = sd[:, :n_head]
            dst_ref[:, pl.ds(c0, tile_n)] = jnp.transpose(sd[:, n_head:])

    # ---- attention for this row tile (full-neighbour-row softmax) ----
    row0 = pl.multiple_of(r * tile_n, tile_n)
    src_tile = src_ref[pl.ds(row0, tile_n), :]             # (tile_n, n_head) f32
    hp_all = hp_ref[...]                                   # (n_p, f_pad) bf16
    allowed = adj_ref[0] != 0                              # self loop folded on host
    neg_fill = jnp.float32(-1e30)                          # finite: no inf hazards

    for hd in range(n_head):                               # n_head is small & static
        attn = src_tile[:, hd:hd + 1] + dst_ref[hd:hd + 1, :]   # (tile_n, n_p)
        attn = jnp.maximum(attn, 0.2 * attn)               # LeakyReLU(0.2)
        attn = jnp.where(allowed, attn, neg_fill)

        m = jnp.max(attn, axis=-1, keepdims=True)
        p = jnp.exp(attn - m)
        p = p * pl.reciprocal(jnp.sum(p, axis=-1, keepdims=True), approx=True)

        # TODO(synk): attention-matrix dropout (training mode) is not
        # implemented; this matches the module in eval mode only.

        acc_ref[:, hd * f_out:(hd + 1) * f_out] = jnp.dot(
            p.astype(jnp.bfloat16), hp_all[:, hd * f_out:(hd + 1) * f_out],
            preferred_element_type=jnp.float32)            # (tile_n, f_out)

    if f_pad > f_tot:                                      # static
        acc_ref[:, f_tot:] = jnp.zeros((tile_n, f_pad - f_tot), jnp.float32)

    # Single lane-dense (multiple-of-128-wide) store.
    o_ref[...] = (acc_ref[...] + bias_ref[...])[None]


def _round_up(x, m):
    return (x + m - 1) // m * m


def batch_multihead_graph_attention(h, adj, w, a_src, a_dst, bias):
    """h: (bs, n, f_in) f32, adj: (bs, n, n) bool.
    w: (n_head, f_in, f_out), a_src/a_dst: (n_head, f_out), bias: (f_out,).
    Returns (bs, n_head, n, f_out) f32 (matches the PyTorch module, eval mode)."""
    bs, n, f_in = h.shape
    n_head, _, f_out = w.shape

    n_p = _round_up(n, 128)            # lane-dense neighbour axis
    f_in_p = _round_up(f_in, 128)
    f_tot = n_head * f_out
    f_pad = _round_up(f_tot, 128)

    tile_n = 128                       # row-tile size (VMEM sizing knob)
    for cand in (512, 256, 128):
        if n_p % cand == 0:
            tile_n = cand
            break
    n_tiles = n_p // tile_n

    # --- host-side packing (small, amortized over the whole grid) ---
    h_p = jnp.pad(h, ((0, 0), (0, n_p - n), (0, f_in_p - f_in))).astype(jnp.bfloat16)

    # Self-loop folded into the adjacency on the host; int8 for cheap DMA.
    adj_sl = adj | jnp.eye(n, dtype=bool)[None]
    adj_p = jnp.pad(adj_sl.astype(jnp.int8), ((0, 0), (0, n_p - n), (0, n_p - n)))

    # Fused projection weight: column block hd = w[hd].
    w_all = jnp.transpose(w, (1, 0, 2)).reshape(f_in, f_tot)
    w_all = jnp.pad(w_all, ((0, f_in_p - f_in), (0, f_pad - f_tot))).astype(jnp.bfloat16)

    # Block-diagonal src/dst projection matrix.
    a_blk = jnp.zeros((f_tot, 2 * n_head), jnp.float32)
    for hd in range(n_head):
        a_blk = a_blk.at[hd * f_out:(hd + 1) * f_out, hd].set(a_src[hd].astype(jnp.float32))
        a_blk = a_blk.at[hd * f_out:(hd + 1) * f_out, n_head + hd].set(a_dst[hd].astype(jnp.float32))
    a_blk = jnp.pad(a_blk, ((0, f_pad - f_tot), (0, 0)))

    bias_all = jnp.pad(jnp.tile(bias.astype(jnp.float32), n_head),
                       (0, f_pad - f_tot)).reshape(1, f_pad)

    kernel = functools.partial(_gat_kernel, n_head=n_head, f_out=f_out, tile_n=tile_n)

    out_slab = pl.pallas_call(
        kernel,
        out_shape=jax.ShapeDtypeStruct((bs, n_p, f_pad), jnp.float32),
        grid_spec=pltpu.PrefetchScalarGridSpec(
            num_scalar_prefetch=0,
            grid=(bs, n_tiles),
            in_specs=[
                pl.BlockSpec((1, n_p, f_in_p), lambda b, r: (b, 0, 0)),     # h (bf16)
                pl.BlockSpec((f_in_p, f_pad), lambda b, r: (0, 0)),         # W_all (bf16)
                pl.BlockSpec((f_pad, 2 * n_head), lambda b, r: (0, 0)),     # A (f32)
                pl.BlockSpec((1, tile_n, n_p), lambda b, r: (b, r, 0)),     # adj tile (int8)
                pl.BlockSpec((1, f_pad), lambda b, r: (0, 0)),              # bias (f32)
            ],
            out_specs=pl.BlockSpec((1, tile_n, f_pad), lambda b, r: (b, r, 0)),
            scratch_shapes=[
                pltpu.VMEM((n_p, f_pad), jnp.bfloat16),     # h' cache (PV side)
                pltpu.VMEM((n_p, n_head), jnp.float32),     # src logits
                pltpu.VMEM((n_head, n_p), jnp.float32),     # dst logits (pre-transposed)
                pltpu.VMEM((tile_n, f_pad), jnp.float32),   # lane-dense output slab
            ],
        ),
        compiler_params=pltpu.CompilerParams(
            # Row-tile axis must be "arbitrary": h'/logit scratches computed at
            # r == 0 are reused by the remaining row tiles of the same batch.
            dimension_semantics=("parallel", "arbitrary"),
            # tile_n is the real sizing knob; 48 MiB stays inside v7x's 64 MiB.
            vmem_limit_bytes=48 * 1024 * 1024,
        ),
    )(h_p, w_all, a_blk, adj_p, bias_all)

    # Lane-dense slab -> (bs, n_head, n, f_out).
    out = out_slab[:, :n, :f_tot].reshape(bs, n, n_head, f_out)
    return jnp.transpose(out, (0, 2, 1, 3))


def _reference(h, adj, w, a_src, a_dst, bias):
    """Pure-JAX reference matching the PyTorch forward (eval mode)."""
    h_prime = jnp.einsum('bnf,hfo->bhno', h, w)
    t = jnp.tanh(h_prime)
    attn_src = jnp.einsum('bhno,ho->bhn', t, a_src)[:, :, :, None]
    attn_dst = jnp.einsum('bhno,ho->bhn', t, a_dst)[:, :, None, :]
    attn = attn_src + attn_dst
    attn = jnp.where(attn > 0, attn, 0.2 * attn)
    allowed = adj[:, None, :, :] | jnp.eye(adj.shape[-1], dtype=bool)
    attn = jnp.where(allowed, attn, -jnp.inf)
    attn = jax.nn.softmax(attn, axis=-1)
    out = jnp.einsum('bhij,bhjo->bhio', attn, h_prime)
    return out + bias


def _xavier_uniform(key, shape, fan_in, fan_out, dtype=jnp.float32):
    limit = (6.0 / (fan_in + fan_out)) ** 0.5
    return jax.random.uniform(key, shape, dtype=dtype, minval=-limit, maxval=limit)


if __name__ == "__main__":
    # Small deterministic configuration (stand-ins for MULTI_HEAD_DIM / LaBSE_DIM).
    bs, n = 2, 8
    n_head, f_in, f_out = 4, 32, 32    # fused head dim = 128 -> lane dense

    key = jax.random.PRNGKey(0)
    k_h, k_adj, k_w, k_as, k_ad = jax.random.split(key, 5)

    h = jax.random.normal(k_h, (bs, n, f_in), dtype=jnp.float32)
    adj = jax.random.uniform(k_adj, (bs, n, n)) > 0.5               # bool adjacency

    w = _xavier_uniform(k_w, (n_head, f_in, f_out), f_in, f_out)
    a_src = _xavier_uniform(k_as, (n_head, f_out), f_out, 1)        # (n_head, f_out, 1) squeezed
    a_dst = _xavier_uniform(k_ad, (n_head, f_out), f_out, 1)
    bias = jnp.zeros((f_out,), dtype=jnp.float32)

    out = batch_multihead_graph_attention(h, adj, w, a_src, a_dst, bias)
    out = jax.block_until_ready(out)

    ref = _reference(h, adj, w, a_src, a_dst, bias)

    assert out.shape == (bs, n_head, n, f_out)
    assert bool(jnp.all(jnp.isfinite(out)))
    # bf16 matmul inputs (f32 accumulation) -> small tolerance vs. f32 reference.
    assert float(jnp.max(jnp.abs(out - ref))) < 5e-2
    print("KERNEL_OK")
</pallas_src>

<mosaic_0001>
module attributes {stable_mosaic.version = 11 : i64} {
  func.func @_gat_kernel(%arg0: i32, %arg1: i32, %arg2: memref<1x128x128xbf16, #tpu.memory_space<vmem>>, %arg3: memref<128x128xbf16, #tpu.memory_space<vmem>>, %arg4: memref<128x8xf32, #tpu.memory_space<vmem>>, %arg5: memref<1x128x128xi8, #tpu.memory_space<vmem>>, %arg6: memref<1x128xf32, #tpu.memory_space<vmem>>, %arg7: memref<1x128x128xf32, #tpu.memory_space<vmem>>, %arg8: memref<128x128xbf16, #tpu.memory_space<vmem>>, %arg9: memref<128x4xf32, #tpu.memory_space<vmem>>, %arg10: memref<4x128xf32, #tpu.memory_space<vmem>>, %arg11: memref<128x128xf32, #tpu.memory_space<vmem>>) attributes {dimension_semantics = [#tpu.dimension_semantics<parallel>, #tpu.dimension_semantics<arbitrary>], iteration_bounds = array<i64: 2, 1>, scalar_prefetch = 0 : i64, scratch_operands = 4 : i64, tpu.core_type = #tpu.core_type<tc>, window_params = [{transform_indices = @transform_0, window_bounds = array<i64: 1, 128, 128>}, {pipeline_mode = #tpu.pipeline_mode<synchronous>, transform_indices = @transform_1, window_bounds = array<i64: 128, 128>}, {pipeline_mode = #tpu.pipeline_mode<synchronous>, transform_indices = @transform_2, window_bounds = array<i64: 128, 8>}, {transform_indices = @transform_3, window_bounds = array<i64: 1, 128, 128>}, {pipeline_mode = #tpu.pipeline_mode<synchronous>, transform_indices = @transform_4, window_bounds = array<i64: 1, 128>}, {transform_indices = @transform_5, window_bounds = array<i64: 1, 128, 128>}]} {
    %c0_i32 = arith.constant 0 : i32
    %0 = arith.cmpi eq, %arg1, %c0_i32 : i32
    %1 = arith.extui %0 : i1 to i32
    %c0_i32_0 = arith.constant 0 : i32
    %2 = arith.cmpi ne, %1, %c0_i32_0 : i32
    scf.if %2 {
      %c0_42 = arith.constant 0 : index
      %c0_43 = arith.constant 0 : index
      %114 = vector.load %arg3[%c0_42, %c0_43] : memref<128x128xbf16, #tpu.memory_space<vmem>>, vector<128x128xbf16>
      %c0_44 = arith.constant 0 : index
      %c0_45 = arith.constant 0 : index
      %115 = vector.load %arg4[%c0_44, %c0_45] : memref<128x8xf32, #tpu.memory_space<vmem>>, vector<128x8xf32>
      %c0_i32_46 = arith.constant 0 : i32
      %c1_i32 = arith.constant 1 : i32
      %116 = arith.muli %c0_i32_46, %c1_i32 : i32
      %c0_i32_47 = arith.constant 0 : i32
      %117 = arith.addi %c0_i32_47, %116 : i32
      %c128_i32_48 = arith.constant 128 : i32
      %118 = arith.muli %117, %c128_i32_48 : i32
      %119 = tpu.assume_multiple %118, 128 : i32
      %c0_49 = arith.constant 0 : index
      %120 = arith.index_cast %119 : i32 to index
      %c0_50 = arith.constant 0 : index
      %121 = vector.load %arg2[%c0_49, %120, %c0_50] : memref<1x128x128xbf16, #tpu.memory_space<vmem>>, vector<1x128x128xbf16>
      %122 = vector.shape_cast %121 : vector<1x128x128xbf16> to vector<128x128xbf16>
      %cst_51 = arith.constant dense<0.000000e+00> : vector<128x128xf32>
      %123 = tpu.matmul %122, %114, %cst_51 {dimension_numbers = #tpu.dot_dimension_numbers<[1], [0], [0], [1], [0, 0, 1, 1], [], []>} : vector<128x128xbf16>, vector<128x128xbf16>, vector<128x128xf32> -> vector<128x128xf32>
      %124 = math.tanh %123 : vector<128x128xf32>
      %cst_52 = arith.constant dense<0.000000e+00> : vector<128x8xf32>
      %125 = tpu.matmul %124, %115, %cst_52 {dimension_numbers = #tpu.dot_dimension_numbers<[1], [0], [0], [1], [0, 0, 1, 1], [], []>} : vector<128x128xf32>, vector<128x8xf32>, vector<128x8xf32> -> vector<128x8xf32>
      %126 = arith.truncf %123 : vector<128x128xf32> to vector<128x128xbf16>
      %127 = arith.index_cast %119 : i32 to index
      %c0_53 = arith.constant 0 : index
      %128 = vector.load %arg8[%127, %c0_53] : memref<128x128xbf16, #tpu.memory_space<vmem>>, vector<128x128xbf16>
      tpu.vector_store %arg8[%127, %c0_53], %126 {strides = array<i32>} : memref<128x128xbf16, #tpu.memory_space<vmem>>, vector<128x128xbf16>,
      %129 = vector.extract_strided_slice %125 {offsets = [0, 0], sizes = [128, 4], strides = [1, 1]} : vector<128x8xf32> to vector<128x4xf32>
      %130 = arith.index_cast %119 : i32 to index
      %c0_54 = arith.constant 0 : index
      %131 = vector.load %arg9[%130, %c0_54] : memref<128x4xf32, #tpu.memory_space<vmem>>, vector<128x4xf32>
      tpu.vector_store %arg9[%130, %c0_54], %129 {strides = array<i32>} : memref<128x4xf32, #tpu.memory_space<vmem>>, vector<128x4xf32>,
      %132 = vector.extract_strided_slice %125 {offsets = [0, 4], sizes = [128, 4], strides = [1, 1]} : vector<128x8xf32> to vector<128x4xf32>
      %133 = tpu.transpose %132, [1, 0] : vector<128x4xf32> -> vector<4x128xf32>
      %c0_55 = arith.constant 0 : index
      %134 = arith.index_cast %119 : i32 to index
      %135 = vector.load %arg10[%c0_55, %134] : memref<4x128xf32, #tpu.memory_space<vmem>>, vector<4x128xf32>
      tpu.vector_store %arg10[%c0_55, %134], %133 {strides = array<i32>} : memref<4x128xf32, #tpu.memory_space<vmem>>, vector<4x128xf32>,
      %c1_i32_56 = arith.constant 1 : i32
    } else {
    }
    %c128_i32 = arith.constant 128 : i32
    %3 = arith.muli %arg1, %c128_i32 : i32
    %4 = tpu.assume_multiple %3, 128 : i32
    %5 = arith.index_cast %4 : i32 to index
    %c0 = arith.constant 0 : index
    %6 = vector.load %arg9[%5, %c0] : memref<128x4xf32, #tpu.memory_space<vmem>>, vector<128x4xf32>
    %c0_1 = arith.constant 0 : index
    %c0_2 = arith.constant 0 : index
    %7 = vector.load %arg8[%c0_1, %c0_2] : memref<128x128xbf16, #tpu.memory_space<vmem>>, vector<128x128xbf16>
    %c0_3 = arith.constant 0 : index
    %c0_4 = arith.constant 0 : index
    %c0_5 = arith.constant 0 : index
    %8 = vector.load %arg5[%c0_3, %c0_4, %c0_5] : memref<1x128x128xi8, #tpu.memory_space<vmem>>, vector<1x128x128xi8>
    %9 = vector.shape_cast %8 : vector<1x128x128xi8> to vector<128x128xi8>
    %c0_i8 = arith.constant 0 : i8
    %10 = vector.broadcast %c0_i8 : i8 to vector<128x128xi8>
    %11 = arith.cmpi ne, %9, %10 : vector<128x128xi8>
    %12 = vector.extract_strided_slice %6 {offsets = [0, 0], sizes = [128, 1], strides = [1, 1]} : vector<128x4xf32> to vector<128x1xf32>
    %c0_6 = arith.constant 0 : index
    %c0_7 = arith.constant 0 : index
    %13 = vector.load %arg10[%c0_6, %c0_7] : memref<4x128xf32, #tpu.memory_space<vmem>>, vector<1x128xf32>
    %14 = vector.broadcast %12 : vector<128x1xf32> to vector<128x128xf32>
    %15 = vector.broadcast %13 : vector<1x128xf32> to vector<128x128xf32>
    %16 = arith.addf %14, %15 : vector<128x128xf32>
    %cst = arith.constant 2.000000e-01 : f32
    %17 = vector.broadcast %cst : f32 to vector<128x128xf32>
    %18 = arith.mulf %17, %16 : vector<128x128xf32>
    %19 = arith.maximumf %16, %18 : vector<128x128xf32>
    %cst_8 = arith.constant -1.000000e+30 : f32
    %20 = vector.broadcast %cst_8 : f32 to vector<128x128xf32>
    %21 = arith.select %11, %19, %20 : vector<128x128xi1>, vector<128x128xf32>
    %cst_9 = arith.constant dense<0xFF800000> : vector<128xf32>
    %22 = vector.multi_reduction <maximumf>, %21, %cst_9 [1] : vector<128x128xf32> to vector<128xf32>
    %23 = vector.shape_cast %22 : vector<128xf32> to vector<128x1xf32>
    %24 = vector.broadcast %23 : vector<128x1xf32> to vector<128x128xf32>
    %25 = arith.subf %21, %24 : vector<128x128xf32>
    %26 = math.exp %25 : vector<128x128xf32>
    %cst_10 = arith.constant dense<0.000000e+00> : vector<128xf32>
    %27 = vector.multi_reduction <add>, %26, %cst_10 [1] : vector<128x128xf32> to vector<128xf32>
    %28 = vector.shape_cast %27 : vector<128xf32> to vector<128x1xf32>
    %29 = tpu.reciprocal %28 {approx = true} : vector<128x1xf32> -> vector<128x1xf32>
    %30 = vector.broadcast %29 : vector<128x1xf32> to vector<128x128xf32>
    %31 = arith.mulf %26, %30 : vector<128x128xf32>
    %32 = arith.truncf %31 : vector<128x128xf32> to vector<128x128xbf16>
    %33 = vector.extract_strided_slice %7 {offsets = [0, 0], sizes = [128, 32], strides = [1, 1]} : vector<128x128xbf16> to vector<128x32xbf16>
    %cst_11 = arith.constant dense<0.000000e+00> : vector<128x32xf32>
    %34 = tpu.matmul %32, %33, %cst_11 {dimension_numbers = #tpu.dot_dimension_numbers<[1], [0], [0], [1], [0, 0, 1, 1], [], []>} : vector<128x128xbf16>, vector<128x32xbf16>, vector<128x32xf32> -> vector<128x32xf32>
    %c0_12 = arith.constant 0 : index
    %c0_13 = arith.constant 0 : index
    %35 = vector.load %arg11[%c0_12, %c0_13] : memref<128x128xf32, #tpu.memory_space<vmem>>, vector<128x32xf32>
    tpu.vector_store %arg11[%c0_12, %c0_13], %34 {strides = array<i32>} : memref<128x128xf32, #tpu.memory_space<vmem>>, vector<128x32xf32>,
    %36 = vector.extract_strided_slice %6 {offsets = [0, 1], sizes = [128, 1], strides = [1, 1]} : vector<128x4xf32> to vector<128x1xf32>
    %c1 = arith.constant 1 : index
    %c0_14 = arith.constant 0 : index
    %37 = vector.load %arg10[%c1, %c0_14] : memref<4x128xf32, #tpu.memory_space<vmem>>, vector<1x128xf32>
    %38 = vector.broadcast %36 : vector<128x1xf32> to vector<128x128xf32>
    %39 = vector.broadcast %37 : vector<1x128xf32> to vector<128x128xf32>
    %40 = arith.addf %38, %39 : vector<128x128xf32>
    %cst_15 = arith.constant 2.000000e-01 : f32
    %41 = vector.broadcast %cst_15 : f32 to vector<128x128xf32>
    %42 = arith.mulf %41, %40 : vector<128x128xf32>
    %43 = arith.maximumf %40, %42 : vector<128x128xf32>
    %cst_16 = arith.constant -1.000000e+30 : f32
    %44 = vector.broadcast %cst_16 : f32 to vector<128x128xf32>
    %45 = arith.select %11, %43, %44 : vector<128x128xi1>, vector<128x128xf32>
    %cst_17 = arith.constant dense<0xFF800000> : vector<128xf32>
    %46 = vector.multi_reduction <maximumf>, %45, %cst_17 [1] : vector<128x128xf32> to vector<128xf32>
    %47 = vector.shape_cast %46 : vector<128xf32> to vector<128x1xf32>
    %48 = vector.broadcast %47 : vector<128x1xf32> to vector<128x128xf32>
    %49 = arith.subf %45, %48 : vector<128x128xf32>
    %50 = math.exp %49 : vector<128x128xf32>
    %cst_18 = arith.constant dense<0.000000e+00> : vector<128xf32>
    %51 = vector.multi_reduction <add>, %50, %cst_18 [1] : vector<128x128xf32> to vector<128xf32>
    %52 = vector.shape_cast %51 : vector<128xf32> to vector<128x1xf32>
    %53 = tpu.reciprocal %52 {approx = true} : vector<128x1xf32> -> vector<128x1xf32>
    %54 = vector.broadcast %53 : vector<128x1xf32> to vector<128x128xf32>
    %55 = arith.mulf %50, %54 : vector<128x128xf32>
    %56 = arith.truncf %55 : vector<128x128xf32> to vector<128x128xbf16>
    %57 = vector.extract_strided_slice %7 {offsets = [0, 32], sizes = [128, 32], strides = [1, 1]} : vector<128x128xbf16> to vector<128x32xbf16>
    %cst_19 = arith.constant dense<0.000000e+00> : vector<128x32xf32>
    %58 = tpu.matmul %56, %57, %cst_19 {dimension_numbers = #tpu.dot_dimension_numbers<[1], [0], [0], [1], [0, 0, 1, 1], [], []>} : vector<128x128xbf16>, vector<128x32xbf16>, vector<128x32xf32> -> vector<128x32xf32>
    %c0_20 = arith.constant 0 : index
    %c32 = arith.constant 32 : index
    %59 = vector.load %arg11[%c0_20, %c32] : memref<128x128xf32, #tpu.memory_space<vmem>>, vector<128x32xf32>
    tpu.vector_store %arg11[%c0_20, %c32], %58 {strides = array<i32>} : memref<128x128xf32, #tpu.memory_space<vmem>>, vector<128x32xf32>,
    %60 = vector.extract_strided_slice %6 {offsets = [0, 2], sizes = [128, 1], strides = [1, 1]} : vector<128x4xf32> to vector<128x1xf32>
    %c2 = arith.constant 2 : index
    %c0_21 = arith.constant 0 : index
    %61 = vector.load %arg10[%c2, %c0_21] : memref<4x128xf32, #tpu.memory_space<vmem>>, vector<1x128xf32>
    %62 = vector.broadcast %60 : vector<128x1xf32> to vector<128x128xf32>
    %63 = vector.broadcast %61 : vector<1x128xf32> to vector<128x128xf32>
    %64 = arith.addf %62, %63 : vector<128x128xf32>
    %cst_22 = arith.constant 2.000000e-01 : f32
    %65 = vector.broadcast %cst_22 : f32 to vector<128x128xf32>
    %66 = arith.mulf %65, %64 : vector<128x128xf32>
    %67 = arith.maximumf %64, %66 : vector<128x128xf32>
    %cst_23 = arith.constant -1.000000e+30 : f32
    %68 = vector.broadcast %cst_23 : f32 to vector<128x128xf32>
    %69 = arith.select %11, %67, %68 : vector<128x128xi1>, vector<128x128xf32>
    %cst_24 = arith.constant dense<0xFF800000> : vector<128xf32>
    %70 = vector.multi_reduction <maximumf>, %69, %cst_24 [1] : vector<128x128xf32> to vector<128xf32>
    %71 = vector.shape_cast %70 : vector<128xf32> to vector<128x1xf32>
    %72 = vector.broadcast %71 : vector<128x1xf32> to vector<128x128xf32>
    %73 = arith.subf %69, %72 : vector<128x128xf32>
    %74 = math.exp %73 : vector<128x128xf32>
    %cst_25 = arith.constant dense<0.000000e+00> : vector<128xf32>
    %75 = vector.multi_reduction <add>, %74, %cst_25 [1] : vector<128x128xf32> to vector<128xf32>
    %76 = vector.shape_cast %75 : vector<128xf32> to vector<128x1xf32>
    %77 = tpu.reciprocal %76 {approx = true} : vector<128x1xf32> -> vector<128x1xf32>
    %78 = vector.broadcast %77 : vector<128x1xf32> to vector<128x128xf32>
    %79 = arith.mulf %74, %78 : vector<128x128xf32>
    %80 = arith.truncf %79 : vector<128x128xf32> to vector<128x128xbf16>
    %81 = vector.extract_strided_slice %7 {offsets = [0, 64], sizes = [128, 32], strides = [1, 1]} : vector<128x128xbf16> to vector<128x32xbf16>
    %cst_26 = arith.constant dense<0.000000e+00> : vector<128x32xf32>
    %82 = tpu.matmul %80, %81, %cst_26 {dimension_numbers = #tpu.dot_dimension_numbers<[1], [0], [0], [1], [0, 0, 1, 1], [], []>} : vector<128x128xbf16>, vector<128x32xbf16>, vector<128x32xf32> -> vector<128x32xf32>
    %c0_27 = arith.constant 0 : index
    %c64 = arith.constant 64 : index
    %83 = vector.load %arg11[%c0_27, %c64] : memref<128x128xf32, #tpu.memory_space<vmem>>, vector<128x32xf32>
    tpu.vector_store %arg11[%c0_27, %c64], %82 {strides = array<i32>} : memref<128x128xf32, #tpu.memory_space<vmem>>, vector<128x32xf32>,
    %84 = vector.extract_strided_slice %6 {offsets = [0, 3], sizes = [128, 1], strides = [1, 1]} : vector<128x4xf32> to vector<128x1xf32>
    %c3 = arith.constant 3 : index
    %c0_28 = arith.constant 0 : index
    %85 = vector.load %arg10[%c3, %c0_28] : memref<4x128xf32, #tpu.memory_space<vmem>>, vector<1x128xf32>
    %86 = vector.broadcast %84 : vector<128x1xf32> to vector<128x128xf32>
    %87 = vector.broadcast %85 : vector<1x128xf32> to vector<128x128xf32>
    %88 = arith.addf %86, %87 : vector<128x128xf32>
    %cst_29 = arith.constant 2.000000e-01 : f32
    %89 = vector.broadcast %cst_29 : f32 to vector<128x128xf32>
    %90 = arith.mulf %89, %88 : vector<128x128xf32>
    %91 = arith.maximumf %88, %90 : vector<128x128xf32>
    %cst_30 = arith.constant -1.000000e+30 : f32
    %92 = vector.broadcast %cst_30 : f32 to vector<128x128xf32>
    %93 = arith.select %11, %91, %92 : vector<128x128xi1>, vector<128x128xf32>
    %cst_31 = arith.constant dense<0xFF800000> : vector<128xf32>
    %94 = vector.multi_reduction <maximumf>, %93, %cst_31 [1] : vector<128x128xf32> to vector<128xf32>
    %95 = vector.shape_cast %94 : vector<128xf32> to vector<128x1xf32>
    %96 = vector.broadcast %95 : vector<128x1xf32> to vector<128x128xf32>
    %97 = arith.subf %93, %96 : vector<128x128xf32>
    %98 = math.exp %97 : vector<128x128xf32>
    %cst_32 = arith.constant dense<0.000000e+00> : vector<128xf32>
    %99 = vector.multi_reduction <add>, %98, %cst_32 [1] : vector<128x128xf32> to vector<128xf32>
    %100 = vector.shape_cast %99 : vector<128xf32> to vector<128x1xf32>
    %101 = tpu.reciprocal %100 {approx = true} : vector<128x1xf32> -> vector<128x1xf32>
    %102 = vector.broadcast %101 : vector<128x1xf32> to vector<128x128xf32>
    %103 = arith.mulf %98, %102 : vector<128x128xf32>
    %104 = arith.truncf %103 : vector<128x128xf32> to vector<128x128xbf16>
    %105 = vector.extract_strided_slice %7 {offsets = [0, 96], sizes = [128, 32], strides = [1, 1]} : vector<128x128xbf16> to vector<128x32xbf16>
    %cst_33 = arith.constant dense<0.000000e+00> : vector<128x32xf32>
    %106 = tpu.matmul %104, %105, %cst_33 {dimension_numbers = #tpu.dot_dimension_numbers<[1], [0], [0], [1], [0, 0, 1, 1], [], []>} : vector<128x128xbf16>, vector<128x32xbf16>, vector<128x32xf32> -> vector<128x32xf32>
    %c0_34 = arith.constant 0 : index
    %c96 = arith.constant 96 : index
    %107 = vector.load %arg11[%c0_34, %c96] : memref<128x128xf32, #tpu.memory_space<vmem>>, vector<128x32xf32>
    tpu.vector_store %arg11[%c0_34, %c96], %106 {strides = array<i32>} : memref<128x128xf32, #tpu.memory_space<vmem>>, vector<128x32xf32>,
    %c0_35 = arith.constant 0 : index
    %c0_36 = arith.constant 0 : index
    %108 = vector.load %arg11[%c0_35, %c0_36] : memref<128x128xf32, #tpu.memory_space<vmem>>, vector<128x128xf32>
    %c0_37 = arith.constant 0 : index
    %c0_38 = arith.constant 0 : index
    %109 = vector.load %arg6[%c0_37, %c0_38] : memref<1x128xf32, #tpu.memory_space<vmem>>, vector<1x128xf32>
    %110 = vector.broadcast %109 : vector<1x128xf32> to vector<128x128xf32>
    %111 = arith.addf %108, %110 : vector<128x128xf32>
    %112 = vector.shape_cast %111 : vector<128x128xf32> to vector<1x128x128xf32>
    %c0_39 = arith.constant 0 : index
    %c0_40 = arith.constant 0 : index
    %c0_41 = arith.constant 0 : index
    %113 = vector.load %arg7[%c0_39, %c0_40, %c0_41] : memref<1x128x128xf32, #tpu.memory_space<vmem>>, vector<1x128x128xf32>
    tpu.vector_store %arg7[%c0_39, %c0_40, %c0_41], %112 {strides = array<i32>} : memref<1x128x128xf32, #tpu.memory_space<vmem>>, vector<1x128x128xf32>,
    return
  }
  func.func @transform_0(%arg0: i32, %arg1: i32) -> (i32, i32, i32) {
    %c0_i32 = arith.constant 0 : i32
    %c0_i32_0 = arith.constant 0 : i32
    %c0_i32_1 = arith.constant 0 : i32
    return %arg0, %c0_i32, %c0_i32_0 : i32, i32, i32
  }
  func.func @transform_1(%arg0: i32, %arg1: i32) -> (i32, i32) {
    %c0_i32 = arith.constant 0 : i32
    %c0_i32_0 = arith.constant 0 : i32
    %c0_i32_1 = arith.constant 0 : i32
    return %c0_i32, %c0_i32_0 : i32, i32
  }
  func.func @transform_2(%arg0: i32, %arg1: i32) -> (i32, i32) {
    %c0_i32 = arith.constant 0 : i32
    %c0_i32_0 = arith.constant 0 : i32
    %c0_i32_1 = arith.constant 0 : i32
    return %c0_i32, %c0_i32_0 : i32, i32
  }
  func.func @transform_3(%arg0: i32, %arg1: i32) -> (i32, i32, i32) {
    %c0_i32 = arith.constant 0 : i32
    %c0_i32_0 = arith.constant 0 : i32
    return %arg0, %arg1, %c0_i32 : i32, i32, i32
  }
  func.func @transform_4(%arg0: i32, %arg1: i32) -> (i32, i32) {
    %c0_i32 = arith.constant 0 : i32
    %c0_i32_0 = arith.constant 0 : i32
    %c0_i32_1 = arith.constant 0 : i32
    return %c0_i32, %c0_i32_0 : i32, i32
  }
  func.func @transform_5(%arg0: i32, %arg1: i32) -> (i32, i32, i32) {
    %c0_i32 = arith.constant 0 : i32
    %c0_i32_0 = arith.constant 0 : i32
    return %arg0, %arg1, %c0_i32 : i32, i32, i32
  }
}

</mosaic_0001>

<llo_original>
// kernel: tpu_custom_call.1
$region0: #{tpu_custom_call.1}
  #allocation0 [shape = 'u32[]', space=smem, size = 0x4, offset = 0x4, fixed_abs, tag = 'smem constant byte address 0x4 - core index']
  #allocation1 [shape = 'u32[144,128]{1,0:T(1,128)}', space=vmem, size = 0x12000, scoped, tag = 'internal scratch']
  #allocation2 [shape = 'bf16[128,128]{1,0:T(8,128)(2,1)}', space=vmem, size = 0x8000, scoped, tag = 'scratch operand']
  #allocation3 [shape = 'f32[128,4]{1,0:T(8,128)}', space=vmem, size = 0x10000, scoped, tag = 'scratch operand']
  #allocation4 [shape = 'f32[4,128]{1,0:T(4,128)}', space=vmem, size = 0x800, scoped, tag = 'scratch operand']
  #allocation5 [shape = 'f32[128,128]{1,0:T(8,128)}', space=vmem, size = 0x10000, scoped, tag = 'scratch operand']
  %s0 = inlined_call_operand.vmem [shape: bf16[2,128,128], index: 0, kind: input, shape index: {}]
  %s1 = inlined_call_operand.hbm [shape: bf16[128,128], index: 1, kind: input, shape index: {}]
  %s2 = inlined_call_operand.vmem [shape: f32[128,8], index: 2, kind: input, shape index: {}]
  %s3 = inlined_call_operand.hbm [shape: s8[2,128,128], index: 3, kind: input, shape index: {}]
  %s4 = inlined_call_operand.vmem [shape: f32[1,128], index: 4, kind: input, shape index: {}]
  %s5 = inlined_call_operand.hbm [shape: f32[2,128,128], index: 5, kind: output, shape index: {}]
  %s6 = sld [smem:[#allocation0]]
  $region65: #{tpu_custom_call.1} parent=0
    _
  %s8 = ssub.s32 1, %s6
  %s9 = scalar_select 0, %s8, %s6
  $region1: #{tpu_custom_call.1} parent=0
    #allocation6 [shape = 'u8[32768]{0}', space=vmem, size = 0x8000, scoped, tag = 'input window, operand 1, single buffered']
    #allocation7 [shape = 's32[2]{0}', space=sflag, size = 0x8, scoped, tag = 'scoped memory for tpu_custom_call.1']
    #allocation8 [shape = 's32[2]{0}', space=sflag, size = 0x8, scoped, tag = 'scoped memory for tpu_custom_call.1']
    #allocation9 [shape = 'u8[32768]{0}', space=vmem, size = 0x8000, scoped, tag = 'input window, operand 3']
    #allocation10 [shape = 's32[2]{0}', space=sflag, size = 0x8, scoped, tag = 'scoped memory for tpu_custom_call.1']
    #allocation11 [shape = 'u8[131072]{0}', space=vmem, size = 0x20000, scoped, tag = 'output window, operand 0']
    %10 = vsyncpa [#allocation7], 0
    %11 = vsyncpa [#allocation10], 0
    %s12 = scalar_lea.sflag [#allocation10], 1
    %13 = vsyncpa %s12, 0
    %14 = vsyncpa [#allocation8], 0
    %s15 = scalar_lea.sflag [#allocation8], 1
    %16 = vsyncpa %s15, 0
    loop: start=0, step=1, limit=4
    $region2: #{tpu_custom_call.1} parent=1 // loop_pre_header
      _
    $region3: #{tpu_custom_call.1} parent=1 // loop_header
      %s18 = sphi 0, %s22
      %p19 = scmp.ge.s32.totalorder %s18, 4
      %s25 = sphi 0, %s37
      %s26 = sphi 0, %s33
      %s27 = sphi 0, %s25
      %s28 = sphi 0, %s26
      %s29 = sphi 0, %s27
      %s30 = sphi 0, %s28
      %s40 = sphi 0, %s42
      %s43 = sphi 0, %s40
      %s44 = sphi 0, %s43
      %s60 = sphi 0, %s44
      %s64 = sphi 0, %s64
      %s66 = sphi 0, %s64
      %s67 = sphi 0, %s66
      %s81 = sphi 0, %s67
      %s85 = sphi 0, %s85
      %s87 = sphi 0, %s85
      %s88 = sphi 0, %s87
      %s102 = sphi 0, %s88
      %s110 = sphi 0, %s112
      %s113 = sphi 0, %s110
      %s114 = sphi 0, %s113
      %s130 = sphi 0, %s114
      %s134 = sphi 0, %s134
      %s136 = sphi 0, %s134
      %s137 = sphi 0, %s136
      %s151 = sphi 0, %s137
      %s159 = sphi 0, %s161
      %s162 = sphi 0, %s159
      %s163 = sphi 0, %s162
      %s179 = sphi 0, %s163
    $region4: #{tpu_custom_call.1} parent=1 // loop_header_branch
      %21 = sbr.rel (%p19) target = $region8
    $region5: #{tpu_custom_call.1} parent=1 // loop_body
      %s23 = ssub.s32 %s18, 1
      %s24 = ssub.s32 %s18, 2
      %s31 = sadd.s32 1, %s26
      %p32 = scmp.ge.s32.totalorder %s31, 1
      %s33 = scalar_select %p32, 0, %s31
      %s34 = sadd.s32 1, %s25
      %s35 = scalar_select %p32, %s34, %s25
      %p36 = scmp.ge.s32.totalorder %s35, 2
      %s37 = scalar_select %p36, 0, %s35
      %s38 = ssub.s32 %s25, %s37
      %p39 = scmp.eq.s32.totalorder %s38, 0
      %s41 = sadd.s32 %s40, 1
      %s42 = scalar_select %p39, %s40, %s41
      %p45 = pneg %p39
      %p46 = scmp.eq.s32.totalorder %s18, 1
      %p47 = por %p45, %p46
      %p48 = scmp.ne.s32.totalorder %s40, %s43
      %p49 = scmp.eq.s32.totalorder %s18, 0
      %p50 = por %p48, %p49
      %p51 = scmp.ne.s32.totalorder %s40, %s43
      %p52 = scmp.eq.s32.totalorder %s23, 1
      %p53 = por %p51, %p52
      %p54 = scmp.ne.s32.totalorder %s43, %s44
      %p55 = scmp.eq.s32.totalorder %s23, 0
      %p56 = por %p54, %p55
      %p57 = scmp.ne.s32.totalorder %s43, %s44
      %p58 = scmp.eq.s32.totalorder %s24, 1
      %p59 = por %p57, %p58
      %p61 = scmp.ne.s32.totalorder %s44, %s60
      %p62 = scmp.eq.s32.totalorder %s24, 0
      %p63 = por %p61, %p62
      %s65 = sadd.s32 %s64, 1
      %p68 = scmp.eq.s32.totalorder %s18, 1
      %p69 = scmp.ne.s32.totalorder %s64, %s66
      %p70 = scmp.eq.s32.totalorder %s18, 0
      %p71 = por %p69, %p70
      %p72 = scmp.ne.s32.totalorder %s64, %s66
      %p73 = scmp.eq.s32.totalorder %s23, 1
      %p74 = por %p72, %p73
      %p75 = scmp.ne.s32.totalorder %s66, %s67
      %p76 = scmp.eq.s32.totalorder %s23, 0
      %p77 = por %p75, %p76
      %p78 = scmp.ne.s32.totalorder %s66, %s67
      %p79 = scmp.eq.s32.totalorder %s24, 1
      %p80 = por %p78, %p79
      %p82 = scmp.ne.s32.totalorder %s67, %s81
      %p83 = scmp.eq.s32.totalorder %s24, 0
      %p84 = por %p82, %p83
      %s86 = sadd.s32 %s85, 1
      %p89 = scmp.eq.s32.totalorder %s18, 1
      %p90 = scmp.ne.s32.totalorder %s85, %s87
      %p91 = scmp.eq.s32.totalorder %s18, 0
      %p92 = por %p90, %p91
      %p93 = scmp.ne.s32.totalorder %s85, %s87
      %p94 = scmp.eq.s32.totalorder %s23, 1
      %p95 = por %p93, %p94
      %p96 = scmp.ne.s32.totalorder %s87, %s88
      %p97 = scmp.eq.s32.totalorder %s23, 0
      %p98 = por %p96, %p97
      %p99 = scmp.ne.s32.totalorder %s87, %s88
      %p100 = scmp.eq.s32.totalorder %s24, 1
      %p101 = por %p99, %p100
      %p103 = scmp.ne.s32.totalorder %s88, %s102
      %p104 = scmp.eq.s32.totalorder %s24, 0
      %p105 = por %p103, %p104
      %s106 = ssub.s32 %s25, %s37
      %s107 = ssub.s32 %s26, %s33
      %s108 = sor.u32 %s106, %s107
      %p109 = scmp.eq.s32.totalorder %s108, 0
      %s111 = sadd.s32 %s110, 1
      %s112 = scalar_select %p109, %s110, %s111
      %p115 = pneg %p109
      %p116 = scmp.eq.s32.totalorder %s18, 1
      %p117 = por %p115, %p116
      %p118 = scmp.ne.s32.totalorder %s110, %s113
      %p119 = scmp.eq.s32.totalorder %s18, 0
      %p120 = por %p118, %p119
      %p121 = scmp.ne.s32.totalorder %s110, %s113
      %p122 = scmp.eq.s32.totalorder %s23, 1
      %p123 = por %p121, %p122
      %p124 = scmp.ne.s32.totalorder %s113, %s114
      %p125 = scmp.eq.s32.totalorder %s23, 0
      %p126 = por %p124, %p125
      %p127 = scmp.ne.s32.totalorder %s113, %s114
      %p128 = scmp.eq.s32.totalorder %s24, 1
      %p129 = por %p127, %p128
      %p131 = scmp.ne.s32.totalorder %s114, %s130
      %p132 = scmp.eq.s32.totalorder %s24, 0
      %p133 = por %p131, %p132
      %s135 = sadd.s32 %s134, 1
      %p138 = scmp.eq.s32.totalorder %s18, 1
      %p139 = scmp.ne.s32.totalorder %s134, %s136
      %p140 = scmp.eq.s32.totalorder %s18, 0
      %p141 = por %p139, %p140
      %p142 = scmp.ne.s32.totalorder %s134, %s136
      %p143 = scmp.eq.s32.totalorder %s23, 1
      %p144 = por %p142, %p143
      %p145 = scmp.ne.s32.totalorder %s136, %s137
      %p146 = scmp.eq.s32.totalorder %s23, 0
      %p147 = por %p145, %p146
      %p148 = scmp.ne.s32.totalorder %s136, %s137
      %p149 = scmp.eq.s32.totalorder %s24, 1
      %p150 = por %p148, %p149
      %p152 = scmp.ne.s32.totalorder %s137, %s151
      %p153 = scmp.eq.s32.totalorder %s24, 0
      %p154 = por %p152, %p153
      %s155 = ssub.s32 %s25, %s37
      %s156 = ssub.s32 %s26, %s33
      %s157 = sor.u32 %s155, %s156
      %p158 = scmp.eq.s32.totalorder %s157, 0
      %s160 = sadd.s32 %s159, 1
      %s161 = scalar_select %p158, %s159, %s160
      %p164 = pneg %p158
      %p165 = scmp.eq.s32.totalorder %s18, 1
      %p166 = por %p164, %p165
      %p167 = scmp.ne.s32.totalorder %s159, %s162
      %p168 = scmp.eq.s32.totalorder %s18, 0
      %p169 = por %p167, %p168
      %p170 = scmp.ne.s32.totalorder %s159, %s162
      %p171 = scmp.eq.s32.totalorder %s23, 1
      %p172 = por %p170, %p171
      %p173 = scmp.ne.s32.totalorder %s162, %s163
      %p174 = scmp.eq.s32.totalorder %s23, 0
      %p175 = por %p173, %p174
      %p176 = scmp.ne.s32.totalorder %s162, %s163
      %p177 = scmp.eq.s32.totalorder %s24, 1
      %p178 = por %p176, %p177
      %p180 = scmp.ne.s32.totalorder %s163, %s179
      %p181 = scmp.eq.s32.totalorder %s24, 0
      %p182 = por %p180, %p181
      %p183 = scmp.le.s32.totalorder 1, %s18
      %p184 = scmp.lt.s32.totalorder %s18, 3
      %p185 = pnand %p183, %p184
      %p186 = pneg %p185
      // Predicated region
      $region9: #{tpu_custom_call.1} parent=5 // pred_check
        _
      $region10: #{tpu_custom_call.1} parent=5 // pred_check_branch
        %188 = sbr.rel (%p185) target = $region12
      $region11: #{tpu_custom_call.1} parent=5 // pred_region
        %s189 = ssub.s32 %s18, 1
        // Predicated region
        $region13: #{tpu_custom_call.1} parent=11 // pred_check
          %p190 = pneg %p77
        $region14: #{tpu_custom_call.1} parent=11 // pred_check_branch
          %192 = sbr.rel (%p190) target = $region16
        $region15: #{tpu_custom_call.1} parent=11 // pred_region
          %s194 = ssub.s32 1024, 1024
          %195 = vsyncadd [#allocation7], %s194
          %s196 = sshll.u32 [#allocation6], 4
          %s197 = int_to_ptr.vmem [resolvable:$true] %s196
          %202 = dma.hbm_to_vmem [thread:$0]  %s1, 1024, %s197, [#allocation7], 64, 64, 4
        $region16: #{tpu_custom_call.1} parent=11 // pred_fallthru
          _
        // Predicated region
        $region17: #{tpu_custom_call.1} parent=11 // pred_check
          %p203 = pneg %p98
        $region18: #{tpu_custom_call.1} parent=11 // pred_check_branch
          %205 = sbr.rel (%p203) target = $region20
        $region19: #{tpu_custom_call.1} parent=11 // pred_region
          _
        $region20: #{tpu_custom_call.1} parent=11 // pred_fallthru
          _
        // Predicated region
        $region21: #{tpu_custom_call.1} parent=11 // pred_check
          %p206 = pneg %p147
        $region22: #{tpu_custom_call.1} parent=11 // pred_check_branch
          %208 = sbr.rel (%p206) target = $region24
        $region23: #{tpu_custom_call.1} parent=11 // pred_region
          _
        $region24: #{tpu_custom_call.1} parent=11 // pred_fallthru
          _
      $region12: #{tpu_custom_call.1} parent=5 // pred_fallthru
        _
      %p209 = scmp.lt.s32.totalorder %s18, 2
      // Predicated region
      $region25: #{tpu_custom_call.1} parent=5 // pred_check
        %p210 = pneg %p209
      $region26: #{tpu_custom_call.1} parent=5 // pred_check_branch
        %212 = sbr.rel (%p210) target = $region28
      $region27: #{tpu_custom_call.1} parent=5 // pred_region
        // Predicated region
        $region29: #{tpu_custom_call.1} parent=27 // pred_check
          %p213 = pneg %p50
        $region30: #{tpu_custom_call.1} parent=27 // pred_check_branch
          %215 = sbr.rel (%p213) target = $region32
        $region31: #{tpu_custom_call.1} parent=27 // pred_region
          %p216 = scmp.lt.s32.totalorder %s25, 1
          %s217 = scalar_select %p216, %s25, 1
          %s218 = smul.addr %s217, 16
          %s219 = smul.addr %s218, 4
          %s220 = scalar_lea.vmem %s0, %s219
        $region32: #{tpu_custom_call.1} parent=27 // pred_fallthru
          _
        // Predicated region
        $region33: #{tpu_custom_call.1} parent=27 // pred_check
          %p221 = pneg %p120
        $region34: #{tpu_custom_call.1} parent=27 // pred_check_branch
          %223 = sbr.rel (%p221) target = $region36
        $region35: #{tpu_custom_call.1} parent=27 // pred_region
          %s224 = sand.u32 %s110, 1
          %s225 = scalar_lea.sflag [#allocation10], %s224
          %s226 = sand.u32 %s110, 1
          %s227 = smul.addr %s226, 32
          %s228 = scalar_lea.vmem [#allocation9], %s227
          %s229 = smul.u32 4, %s26
          %s231 = ssub.s32 512, 512
          %232 = vsyncadd %s225, %s231
          %s233 = smul.addr %s25, 4
          %s234 = sadd.s32 %s229, %s233
          %s235 = smul.addr %s234, 128
          %s236 = scalar_lea.hbm %s3, %s235
          %s237 = sshll.u32 %s228, 4
          %s238 = int_to_ptr.vmem [resolvable:$true] %s237
          %243 = dma.hbm_to_vmem [thread:$0]  %s236, 512, %s238, %s225, 128, 128, 8
        $region36: #{tpu_custom_call.1} parent=27 // pred_fallthru
          _
      $region28: #{tpu_custom_call.1} parent=5 // pred_fallthru
        _
      %p244 = scmp.le.s32.totalorder 1, %s18
      %p245 = scmp.lt.s32.totalorder %s18, 3
      %p246 = pnand %p244, %p245
      %p247 = pneg %p246
      // Predicated region
      $region37: #{tpu_custom_call.1} parent=5 // pred_check
        _
      $region38: #{tpu_custom_call.1} parent=5 // pred_check_branch
        %249 = sbr.rel (%p246) target = $region40
      $region39: #{tpu_custom_call.1} parent=5 // pred_region
        %s250 = ssub.s32 %s18, 1
        // Predicated region
        $region41: #{tpu_custom_call.1} parent=39 // pred_check
          %p251 = pneg %p77
        $region42: #{tpu_custom_call.1} parent=39 // pred_check_branch
          %253 = sbr.rel (%p251) target = $region44
        $region43: #{tpu_custom_call.1} parent=39 // pred_region
          %254 = dma.done [#allocation7], 1024
        $region44: #{tpu_custom_call.1} parent=39 // pred_fallthru
          _
        %s255 = sand.u32 %s113, 1
        %s256 = scalar_lea.sflag [#allocation10], %s255
        %s257 = sand.u32 %s113, 1
        %s258 = smul.addr %s257, 32
        %s259 = scalar_lea.vmem [#allocation9], %s258
        // Predicated region
        $region45: #{tpu_custom_call.1} parent=39 // pred_check
          %p260 = pneg %p126
        $region46: #{tpu_custom_call.1} parent=39 // pred_check_branch
          %262 = sbr.rel (%p260) target = $region48
        $region47: #{tpu_custom_call.1} parent=39 // pred_region
          %263 = dma.done %s256, 512
        $region48: #{tpu_custom_call.1} parent=39 // pred_fallthru
          _
        %p264 = scmp.lt.s32.totalorder %s27, 1
        %s265 = scalar_select %p264, %s27, 1
        %s266 = smul.addr %s265, 16
        %s267 = smul.addr %s266, 4
        %s268 = scalar_lea.vmem %s0, %s267
        %p269 = pneg %p56
        %p270 = pneg %p53
        %p271 = pneg %p77
        %p272 = pneg %p74
        %p273 = pneg %p98
        %p274 = pneg %p95
        %s275 = sand.u32 %s113, 1
        %s276 = scalar_lea.sflag [#allocation10], %s275
        %s277 = sand.u32 %s113, 1
        %s278 = smul.addr %s277, 32
        %s279 = scalar_lea.vmem [#allocation9], %s278
        %p280 = pneg %p126
        %p281 = pneg %p123
        %p282 = pneg %p147
        %p283 = pneg %p144
        %p284 = pneg %p175
        %p285 = pneg %p172
        %s286 = sand.u32 %s162, 1
        %s287 = scalar_lea.sflag [#allocation8], %s286
        %s288 = sand.u32 %s162, 1
        %s289 = smul.addr %s288, 128
        %s290 = scalar_lea.vmem [#allocation11], %s289
        %p291 = scmp.lt.s32.totalorder %s27, 1
        %s292 = scalar_select %p291, %s27, 1
        %s293 = smul.addr %s292, 16
        %s294 = smul.addr %s293, 4
        %s295 = scalar_lea.vmem %s0, %s294
        %s296 = smul.u32 4, %s28
        %s297 = smul.u32 16, %s28
        %p301 = scmp.eq.s32.totalorder %s28, 0
        // Predicated region
        $region49: #{tpu_custom_call.1} parent=39 // pred_check
          %p302 = pneg %p301
        $region50: #{tpu_custom_call.1} parent=39 // pred_check_branch
          %304 = sbr.rel (%p302) target = $region52
        $region51: #{tpu_custom_call.1} parent=39 // pred_region
          %v305 = vld [vmem:[#allocation6] sm:$0xf]
          %v306 = vld [vmem:[#allocation6 + $0x4] sm:$0xf]
          %v307 = vld [vmem:[#allocation6 + $0x8] sm:$0xf]
          %v308 = vld [vmem:[#allocation6 + $0xc] sm:$0xf]
          %v309 = vld [vmem:[#allocation6 + $0x10] sm:$0xf]
          %v310 = vld [vmem:[#allocation6 + $0x14] sm:$0xf]
          %v311 = vld [vmem:[#allocation6 + $0x18] sm:$0xf]
          %v312 = vld [vmem:[#allocation6 + $0x1c] sm:$0xf]
          %v313 = vld [vmem:[#allocation6 + $0x20] sm:$0xf]
          %v314 = vld [vmem:[#allocation6 + $0x24] sm:$0xf]
          %v315 = vld [vmem:[#allocation6 + $0x28] sm:$0xf]
          %v316 = vld [vmem:[#allocation6 + $0x2c] sm:$0xf]
          %v317 = vld [vmem:[#allocation6 + $0x30] sm:$0xf]
          %v318 = vld [vmem:[#allocation6 + $0x34] sm:$0xf]
          %v319 = vld [vmem:[#allocation6 + $0x38] sm:$0xf]
          %v320 = vld [vmem:[#allocation6 + $0x3c] sm:$0xf]
          %v321 = vld [vmem:[%s2] sm:$0xff]
          %v322 = vld [vmem:[%s2 + $0x8] sm:$0xff]
          %v323 = vld [vmem:[%s2 + $0x10] sm:$0xff]
          %v324 = vld [vmem:[%s2 + $0x18] sm:$0xff]
          %v325 = vld [vmem:[%s2 + $0x20] sm:$0xff]
          %v326 = vld [vmem:[%s2 + $0x28] sm:$0xff]
          %v327 = vld [vmem:[%s2 + $0x30] sm:$0xff]
          %v328 = vld [vmem:[%s2 + $0x38] sm:$0xff]
          %v329 = vld [vmem:[%s2 + $0x40] sm:$0xff]
          %v330 = vld [vmem:[%s2 + $0x48] sm:$0xff]
          %v331 = vld [vmem:[%s2 + $0x50] sm:$0xff]
          %v332 = vld [vmem:[%s2 + $0x58] sm:$0xff]
          %v333 = vld [vmem:[%s2 + $0x60] sm:$0xff]
          %v334 = vld [vmem:[%s2 + $0x68] sm:$0xff]
          %v335 = vld [vmem:[%s2 + $0x70] sm:$0xff]
          %v336 = vld [vmem:[%s2 + $0x78] sm:$0xff]
          %v337 = vld [vmem:[%s295] sm:$0xf]
          %v338 = vld [vmem:[%s295 + $0x4] sm:$0xf]
          %v339 = vld [vmem:[%s295 + $0x8] sm:$0xf]
          %v340 = vld [vmem:[%s295 + $0xc] sm:$0xf]
          %v341 = vld [vmem:[%s295 + $0x10] sm:$0xf]
          %v342 = vld [vmem:[%s295 + $0x14] sm:$0xf]
          %v343 = vld [vmem:[%s295 + $0x18] sm:$0xf]
          %v344 = vld [vmem:[%s295 + $0x1c] sm:$0xf]
          %v345 = vld [vmem:[%s295 + $0x20] sm:$0xf]
          %v346 = vld [vmem:[%s295 + $0x24] sm:$0xf]
          %v347 = vld [vmem:[%s295 + $0x28] sm:$0xf]
          %v348 = vld [vmem:[%s295 + $0x2c] sm:$0xf]
          %v349 = vld [vmem:[%s295 + $0x30] sm:$0xf]
          %v350 = vld [vmem:[%s295 + $0x34] sm:$0xf]
          %v351 = vld [vmem:[%s295 + $0x38] sm:$0xf]
          %v352 = vld [vmem:[%s295 + $0x3c] sm:$0xf]
          %v369 = vunpack.c.l.b16 %v337
          %v370 = vunpack.c.l.b16 %v338
          %v371 = vunpack.c.l.b16 %v339
          %v372 = vunpack.c.l.b16 %v340
          %v373 = vunpack.c.l.b16 %v341
          %v374 = vunpack.c.l.b16 %v342
          %v375 = vunpack.c.l.b16 %v343
          %v376 = vunpack.c.l.b16 %v344
          %v377 = vunpack.c.l.b16 %v345
          %v378 = vunpack.c.l.b16 %v346
          %v379 = vunpack.c.l.b16 %v347
          %v380 = vunpack.c.l.b16 %v348
          %v381 = vunpack.c.l.b16 %v349
          %v382 = vunpack.c.l.b16 %v350
          %v383 = vunpack.c.l.b16 %v351
          %v384 = vunpack.c.l.b16 %v352
          %v385 = vpack.c.b16 %v370, %v369
          %v386 = vpack.c.b16 %v372, %v371
          %v387 = vpack.c.b16 %v374, %v373
          %v388 = vpack.c.b16 %v376, %v375
          %v389 = vpack.c.b16 %v378, %v377
          %v390 = vpack.c.b16 %v380, %v379
          %v391 = vpack.c.b16 %v382, %v381
          %v392 = vpack.c.b16 %v384, %v383
          %v417 = vunpack.c.l.b16 %v305
          %v418 = vunpack.c.l.b16 %v306
          %v419 = vunpack.c.l.b16 %v307
          %v420 = vunpack.c.l.b16 %v308
          %v421 = vunpack.c.l.b16 %v309
          %v422 = vunpack.c.l.b16 %v310
          %v423 = vunpack.c.l.b16 %v311
          %v424 = vunpack.c.l.b16 %v312
          %v425 = vunpack.c.l.b16 %v313
          %v426 = vunpack.c.l.b16 %v314
          %v427 = vunpack.c.l.b16 %v315
          %v428 = vunpack.c.l.b16 %v316
          %v429 = vunpack.c.l.b16 %v317
          %v430 = vunpack.c.l.b16 %v318
          %v431 = vunpack.c.l.b16 %v319
          %v432 = vunpack.c.l.b16 %v320
          %v433 = vpack.c.b16 %v418, %v417
          %v434 = vpack.c.b16 %v420, %v419
          %v435 = vpack.c.b16 %v422, %v421
          %v436 = vpack.c.b16 %v424, %v423
          %v437 = vpack.c.b16 %v426, %v425
          %v438 = vpack.c.b16 %v428, %v427
          %v439 = vpack.c.b16 %v430, %v429
          %v440 = vpack.c.b16 %v432, %v431
          %449 = vmatprep.subr.bf16.mxu0 0
          %450 = vmatpush1.bf16.msra.mxu0 %v440
          %451 = vmatprep.subr.bf16.mxu0 0
          %452 = vmatpush1.bf16.msra.mxu0 %v439
          %453 = vmatprep.subr.bf16.mxu0 0
          %454 = vmatpush1.bf16.msra.mxu0 %v438
          %455 = vmatprep.subr.bf16.mxu0 0
          %456 = vmatpush1.bf16.msra.mxu0 %v437
          %457 = vmatprep.subr.bf16.mxu0 0
          %458 = vmatpush1.bf16.msra.mxu0 %v436
          %459 = vmatprep.subr.bf16.mxu0 0
          %460 = vmatpush1.bf16.msra.mxu0 %v435
          %461 = vmatprep.subr.bf16.mxu0 0
          %462 = vmatpush1.bf16.msra.mxu0 %v434
          %463 = vmatprep.subr.bf16.mxu0 0
          %464 = vmatpush1.bf16.msra.mxu0 %v433
          %465 = vmatprep.subr.bf16.mxu0 0
          %466 = vmatpush2.bf16.msra.mxu0 0
          %467 = vmatprep.subr.bf16.mxu0 0
          %468 = vmatpush2.bf16.msra.mxu0 0
          %469 = vmatprep.subr.bf16.mxu0 0
          %470 = vmatpush2.bf16.msra.mxu0 0
          %471 = vmatprep.subr.bf16.mxu0 0
          %472 = vmatpush2.bf16.msra.mxu0 0
          %473 = vmatprep.subr.bf16.mxu0 0
          %474 = vmatpush2.bf16.msra.mxu0 0
          %475 = vmatprep.subr.bf16.mxu0 0
          %476 = vmatpush2.bf16.msra.mxu0 0
          %477 = vmatprep.subr.bf16.mxu0 0
          %478 = vmatpush2.bf16.msra.mxu0 0
          %479 = vmatprep.subr.bf16.mxu0 0
          %480 = vmatpush2.bf16.msra.mxu0 0
          %481 = vmatprep.mubr.bf16.mxu0 0
          %482 = vmatmul.mubr.bf16.gmra.mxu0 %v385
          %v483 = vpop.f32.mrf.mxu0
          %v484 = vadd.f32 0.0, %v483
          %v485 = vpop.f32.mrf.mxu0
          %v486 = vpop.f32.mrf.mxu0
          %v487 = vadd.f32 0.0, %v486
          %v488 = vpop.f32.mrf.mxu0
          %489 = vmatprep.mubr.bf16.mxu0 0
          %490 = vmatmul.mubr.bf16.gmra.mxu0 %v386
          %v491 = vpop.f32.mrf.mxu0
          %v492 = vadd.f32 0.0, %v491
          %v493 = vpop.f32.mrf.mxu0
          %v494 = vpop.f32.mrf.mxu0
          %v495 = vadd.f32 0.0, %v494
          %v496 = vpop.f32.mrf.mxu0
          %497 = vmatprep.mubr.bf16.mxu0 0
          %498 = vmatmul.mubr.bf16.gmra.mxu0 %v387
          %v499 = vpop.f32.mrf.mxu0
          %v500 = vadd.f32 0.0, %v499
          %v501 = vpop.f32.mrf.mxu0
          %v502 = vpop.f32.mrf.mxu0
          %v503 = vadd.f32 0.0, %v502
          %v504 = vpop.f32.mrf.mxu0
          %505 = vmatprep.mubr.bf16.mxu0 0
          %506 = vmatmul.mubr.bf16.gmra.mxu0 %v388
          %v507 = vpop.f32.mrf.mxu0
          %v508 = vadd.f32 0.0, %v507
          %v509 = vpop.f32.mrf.mxu0
          %v510 = vpop.f32.mrf.mxu0
          %v511 = vadd.f32 0.0, %v510
          %v512 = vpop.f32.mrf.mxu0
          %513 = vmatprep.mubr.bf16.mxu0 0
          %514 = vmatmul.mubr.bf16.gmra.mxu0 %v389
          %v515 = vpop.f32.mrf.mxu0
          %v516 = vadd.f32 0.0, %v515
          %v517 = vpop.f32.mrf.mxu0
          %v518 = vpop.f32.mrf.mxu0
          %v519 = vadd.f32 0.0, %v518
          %v520 = vpop.f32.mrf.mxu0
          %521 = vmatprep.mubr.bf16.mxu0 0
          %522 = vmatmul.mubr.bf16.gmra.mxu0 %v390
          %v523 = vpop.f32.mrf.mxu0
          %v524 = vadd.f32 0.0, %v523
          %v525 = vpop.f32.mrf.mxu0
          %v526 = vpop.f32.mrf.mxu0
          %v527 = vadd.f32 0.0, %v526
          %v528 = vpop.f32.mrf.mxu0
          %529 = vmatprep.mubr.bf16.mxu0 0
          %530 = vmatmul.mubr.bf16.gmra.mxu0 %v391
          %v531 = vpop.f32.mrf.mxu0
          %v532 = vadd.f32 0.0, %v531
          %v533 = vpop.f32.mrf.mxu0
          %v534 = vpop.f32.mrf.mxu0
          %v535 = vadd.f32 0.0, %v534
          %v536 = vpop.f32.mrf.mxu0
          %537 = vmatprep.mubr.bf16.mxu0 0
          %538 = vmatmul.mubr.bf16.gmra.mxu0 %v392
          %v539 = vpop.f32.mrf.mxu0
          %v540 = vadd.f32 0.0, %v539
          %v541 = vpop.f32.mrf.mxu0
          %v542 = vpop.f32.mrf.mxu0
          %v543 = vadd.f32 0.0, %v542
          %v544 = vpop.f32.mrf.mxu0
          %545 = vdwg.mxu0
          %v546 = vtanh.pop %v484
          %v547 = vtanh.pop %v487
          %v548 = vtanh.pop %v492
          %v549 = vtanh.pop %v495
          %v550 = vtanh.pop %v500
          %v551 = vtanh.pop %v503
          %v552 = vtanh.pop %v508
          %v553 = vtanh.pop %v511
          %v554 = vtanh.pop %v516
          %v555 = vtanh.pop %v519
          %v556 = vtanh.pop %v524
          %v557 = vtanh.pop %v527
          %v558 = vtanh.pop %v532
          %v559 = vtanh.pop %v535
          %v560 = vtanh.pop %v540
          %v561 = vtanh.pop %v543
          %562 = vmatprep.subr.mxu0 0.0
          %563 = vmatpush1.msra.mxu0 %v336
          %564 = vmatprep.subr.mxu0 0.0
          %565 = vmatpush1.msra.mxu0 %v335
          %566 = vmatprep.subr.mxu0 0.0
          %567 = vmatpush1.msra.mxu0 %v334
          %568 = vmatprep.subr.mxu0 0.0
          %569 = vmatpush1.msra.mxu0 %v333
          %570 = vmatprep.subr.mxu0 0.0
          %571 = vmatpush1.msra.mxu0 %v332
          %572 = vmatprep.subr.mxu0 0.0
          %573 = vmatpush1.msra.mxu0 %v331
          %574 = vmatprep.subr.mxu0 0.0
          %575 = vmatpush1.msra.mxu0 %v330
          %576 = vmatprep.subr.mxu0 0.0
          %577 = vmatpush1.msra.mxu0 %v329
          %578 = vmatprep.subr.mxu0 0.0
          %579 = vmatpush1.msra.mxu0 %v328
          %580 = vmatprep.subr.mxu0 0.0
          %581 = vmatpush1.msra.mxu0 %v327
          %582 = vmatprep.subr.mxu0 0.0
          %583 = vmatpush1.msra.mxu0 %v326
          %584 = vmatprep.subr.mxu0 0.0
          %585 = vmatpush1.msra.mxu0 %v325
          %586 = vmatprep.subr.mxu0 0.0
          %587 = vmatpush1.msra.mxu0 %v324
          %588 = vmatprep.subr.mxu0 0.0
          %589 = vmatpush1.msra.mxu0 %v323
          %590 = vmatprep.subr.mxu0 0.0
          %591 = vmatpush1.msra.mxu0 %v322
          %592 = vmatprep.subr.mxu0 0.0
          %593 = vmatpush1.msra.mxu0 %v321
          %594 = vmatprep.subr.mxu0 0.0
          %595 = vmatpush2.msra.mxu0 0.0
          %596 = vmatprep.subr.mxu0 0.0
          %597 = vmatpush2.msra.mxu0 0.0
          %598 = vmatprep.subr.mxu0 0.0
          %599 = vmatpush2.msra.mxu0 0.0
          %600 = vmatprep.subr.mxu0 0.0
          %601 = vmatpush2.msra.mxu0 0.0
          %602 = vmatprep.subr.mxu0 0.0
          %603 = vmatpush2.msra.mxu0 0.0
          %604 = vmatprep.subr.mxu0 0.0
          %605 = vmatpush2.msra.mxu0 0.0
          %606 = vmatprep.subr.mxu0 0.0
          %607 = vmatpush2.msra.mxu0 0.0
          %608 = vmatprep.subr.mxu0 0.0
          %609 = vmatpush2.msra.mxu0 0.0
          %610 = vmatprep.subr.mxu0 0.0
          %611 = vmatpush2.msra.mxu0 0.0
          %612 = vmatprep.subr.mxu0 0.0
          %613 = vmatpush2.msra.mxu0 0.0
          %614 = vmatprep.subr.mxu0 0.0
          %615 = vmatpush2.msra.mxu0 0.0
          %616 = vmatprep.subr.mxu0 0.0
          %617 = vmatpush2.msra.mxu0 0.0
          %618 = vmatprep.subr.mxu0 0.0
          %619 = vmatpush2.msra.mxu0 0.0
          %620 = vmatprep.subr.mxu0 0.0
          %621 = vmatpush2.msra.mxu0 0.0
          %622 = vmatprep.subr.mxu0 0.0
          %623 = vmatpush2.msra.mxu0 0.0
          %624 = vmatprep.subr.mxu0 0.0
          %625 = vmatpush2.msra.mxu0 0.0
          %626 = vmatprep.mubr.f32.mxu0 0.0
          %627 = vmatmul.mubr.f32.gmra.mxu0 %v546
          %v628 = vpop.f32.mrf.mxu0
          %v629 = vadd.f32 0.0, %v628
          %v630 = vpop.f32.mrf.mxu0
          %631 = vmatprep.mubr.f32.mxu0 0.0
          %632 = vmatmul.mubr.f32.gmra.mxu0 %v547
          %v633 = vpop.f32.mrf.mxu0
          %v634 = vadd.f32 0.0, %v633
          %v635 = vpop.f32.mrf.mxu0
          %636 = vmatprep.mubr.f32.mxu0 0.0
          %637 = vmatmul.mubr.f32.gmra.mxu0 %v548
          %v638 = vpop.f32.mrf.mxu0
          %v639 = vadd.f32 0.0, %v638
          %v640 = vpop.f32.mrf.mxu0
          %641 = vmatprep.mubr.f32.mxu0 0.0
          %642 = vmatmul.mubr.f32.gmra.mxu0 %v549
          %v643 = vpop.f32.mrf.mxu0
          %v644 = vadd.f32 0.0, %v643
          %v645 = vpop.f32.mrf.mxu0
          %646 = vmatprep.mubr.f32.mxu0 0.0
          %647 = vmatmul.mubr.f32.gmra.mxu0 %v550
          %v648 = vpop.f32.mrf.mxu0
          %v649 = vadd.f32 0.0, %v648
          %v650 = vpop.f32.mrf.mxu0
          %651 = vmatprep.mubr.f32.mxu0 0.0
          %652 = vmatmul.mubr.f32.gmra.mxu0 %v551
          %v653 = vpop.f32.mrf.mxu0
          %v654 = vadd.f32 0.0, %v653
          %v655 = vpop.f32.mrf.mxu0
          %656 = vmatprep.mubr.f32.mxu0 0.0
          %657 = vmatmul.mubr.f32.gmra.mxu0 %v552
          %v658 = vpop.f32.mrf.mxu0
          %v659 = vadd.f32 0.0, %v658
          %v660 = vpop.f32.mrf.mxu0
          %661 = vmatprep.mubr.f32.mxu0 0.0
          %662 = vmatmul.mubr.f32.gmra.mxu0 %v553
          %v663 = vpop.f32.mrf.mxu0
          %v664 = vadd.f32 0.0, %v663
          %v665 = vpop.f32.mrf.mxu0
          %666 = vmatprep.mubr.f32.mxu0 0.0
          %667 = vmatmul.mubr.f32.gmra.mxu0 %v554
          %v668 = vpop.f32.mrf.mxu0
          %v669 = vadd.f32 0.0, %v668
          %v670 = vpop.f32.mrf.mxu0
          %671 = vmatprep.mubr.f32.mxu0 0.0
          %672 = vmatmul.mubr.f32.gmra.mxu0 %v555
          %v673 = vpop.f32.mrf.mxu0
          %v674 = vadd.f32 0.0, %v673
          %v675 = vpop.f32.mrf.mxu0
          %676 = vmatprep.mubr.f32.mxu0 0.0
          %677 = vmatmul.mubr.f32.gmra.mxu0 %v556
          %v678 = vpop.f32.mrf.mxu0
          %v679 = vadd.f32 0.0, %v678
          %v680 = vpop.f32.mrf.mxu0
          %681 = vmatprep.mubr.f32.mxu0 0.0
          %682 = vmatmul.mubr.f32.gmra.mxu0 %v557
          %v683 = vpop.f32.mrf.mxu0
          %v684 = vadd.f32 0.0, %v683
          %v685 = vpop.f32.mrf.mxu0
          %686 = vmatprep.mubr.f32.mxu0 0.0
          %687 = vmatmul.mubr.f32.gmra.mxu0 %v558
          %v688 = vpop.f32.mrf.mxu0
          %v689 = vadd.f32 0.0, %v688
          %v690 = vpop.f32.mrf.mxu0
          %691 = vmatprep.mubr.f32.mxu0 0.0
          %692 = vmatmul.mubr.f32.gmra.mxu0 %v559
          %v693 = vpop.f32.mrf.mxu0
          %v694 = vadd.f32 0.0, %v693
          %v695 = vpop.f32.mrf.mxu0
          %696 = vmatprep.mubr.f32.mxu0 0.0
          %697 = vmatmul.mubr.f32.gmra.mxu0 %v560
          %v698 = vpop.f32.mrf.mxu0
          %v699 = vadd.f32 0.0, %v698
          %v700 = vpop.f32.mrf.mxu0
          %701 = vmatprep.mubr.f32.mxu0 0.0
          %702 = vmatmul.mubr.f32.gmra.mxu0 %v561
          %v703 = vpop.f32.mrf.mxu0
          %v704 = vadd.f32 0.0, %v703
          %v705 = vpop.f32.mrf.mxu0
          %706 = vdwg.mxu0
          %v707 = vpack.c.bf16 %v487, %v484
          %v708 = vpack.c.bf16 %v495, %v492
          %v709 = vpack.c.bf16 %v503, %v500
          %v710 = vpack.c.bf16 %v511, %v508
          %v711 = vpack.c.bf16 %v519, %v516
          %v712 = vpack.c.bf16 %v527, %v524
          %v713 = vpack.c.bf16 %v535, %v532
          %v714 = vpack.c.bf16 %v543, %v540
          %v723 = vunpack.c.l.b16 %v707
          %v724 = vunpack.c.h.b16 %v707
          %v725 = vunpack.c.l.b16 %v708
          %v726 = vunpack.c.h.b16 %v708
          %v727 = vunpack.c.l.b16 %v709
          %v728 = vunpack.c.h.b16 %v709
          %v729 = vunpack.c.l.b16 %v710
          %v730 = vunpack.c.h.b16 %v710
          %v731 = vunpack.c.l.b16 %v711
          %v732 = vunpack.c.h.b16 %v711
          %v733 = vunpack.c.l.b16 %v712
          %v734 = vunpack.c.h.b16 %v712
          %v735 = vunpack.c.l.b16 %v713
          %v736 = vunpack.c.h.b16 %v713
          %v737 = vunpack.c.l.b16 %v714
          %v738 = vunpack.c.h.b16 %v714
          %v739 = vpack.c.b16 %v723, %v723
          %v740 = vpack.c.b16 %v724, %v724
          %v741 = vpack.c.b16 %v725, %v725
          %v742 = vpack.c.b16 %v726, %v726
          %v743 = vpack.c.b16 %v727, %v727
          %v744 = vpack.c.b16 %v728, %v728
          %v745 = vpack.c.b16 %v729, %v729
          %v746 = vpack.c.b16 %v730, %v730
          %v747 = vpack.c.b16 %v731, %v731
          %v748 = vpack.c.b16 %v732, %v732
          %v749 = vpack.c.b16 %v733, %v733
          %v750 = vpack.c.b16 %v734, %v734
          %v751 = vpack.c.b16 %v735, %v735
          %v752 = vpack.c.b16 %v736, %v736
          %v753 = vpack.c.b16 %v737, %v737
          %v754 = vpack.c.b16 %v738, %v738
          %771 = vst [vmem:[#allocation2] sm:$0xf] %v739
          %772 = vst [vmem:[#allocation2 + $0x4] sm:$0xf] %v740
          %773 = vst [vmem:[#allocation2 + $0x8] sm:$0xf] %v741
          %774 = vst [vmem:[#allocation2 + $0xc] sm:$0xf] %v742
          %775 = vst [vmem:[#allocation2 + $0x10] sm:$0xf] %v743
          %776 = vst [vmem:[#allocation2 + $0x14] sm:$0xf] %v744
          %777 = vst [vmem:[#allocation2 + $0x18] sm:$0xf] %v745
          %778 = vst [vmem:[#allocation2 + $0x1c] sm:$0xf] %v746
          %779 = vst [vmem:[#allocation2 + $0x20] sm:$0xf] %v747
          %780 = vst [vmem:[#allocation2 + $0x24] sm:$0xf] %v748
          %781 = vst [vmem:[#allocation2 + $0x28] sm:$0xf] %v749
          %782 = vst [vmem:[#allocation2 + $0x2c] sm:$0xf] %v750
          %783 = vst [vmem:[#allocation2 + $0x30] sm:$0xf] %v751
          %784 = vst [vmem:[#allocation2 + $0x34] sm:$0xf] %v752
          %785 = vst [vmem:[#allocation2 + $0x38] sm:$0xf] %v753
          %786 = vst [vmem:[#allocation2 + $0x3c] sm:$0xf] %v754
          %vm787 = vcmask 31744
          %788 = vst.msk [vmem:[#allocation3] sm:$0xff] %vm787, %v629
          %789 = vst.msk [vmem:[#allocation3 + $0x8] sm:$0xff] %vm787, %v634
          %790 = vst.msk [vmem:[#allocation3 + $0x10] sm:$0xff] %vm787, %v639
          %791 = vst.msk [vmem:[#allocation3 + $0x18] sm:$0xff] %vm787, %v644
          %792 = vst.msk [vmem:[#allocation3 + $0x20] sm:$0xff] %vm787, %v649
          %793 = vst.msk [vmem:[#allocation3 + $0x28] sm:$0xff] %vm787, %v654
          %794 = vst.msk [vmem:[#allocation3 + $0x30] sm:$0xff] %vm787, %v659
          %795 = vst.msk [vmem:[#allocation3 + $0x38] sm:$0xff] %vm787, %v664
          %796 = vst.msk [vmem:[#allocation3 + $0x40] sm:$0xff] %vm787, %v669
          %797 = vst.msk [vmem:[#allocation3 + $0x48] sm:$0xff] %vm787, %v674
          %798 = vst.msk [vmem:[#allocation3 + $0x50] sm:$0xff] %vm787, %v679
          %799 = vst.msk [vmem:[#allocation3 + $0x58] sm:$0xff] %vm787, %v684
          %800 = vst.msk [vmem:[#allocation3 + $0x60] sm:$0xff] %vm787, %v689
          %801 = vst.msk [vmem:[#allocation3 + $0x68] sm:$0xff] %vm787, %v694
          %802 = vst.msk [vmem:[#allocation3 + $0x70] sm:$0xff] %vm787, %v699
          %803 = vst.msk [vmem:[#allocation3 + $0x78] sm:$0xff] %vm787, %v704
          %820 = vrot.lane.b32.xlu0 %v629, 124
          %v821 = vpop.permute.xlu0 %820
          %822 = vrot.lane.b32.xlu0 %v634, 124
          %v823 = vpop.permute.xlu0 %822
          %824 = vrot.lane.b32.xlu0 %v639, 124
          %v825 = vpop.permute.xlu0 %824
          %826 = vrot.lane.b32.xlu0 %v644, 124
          %v827 = vpop.permute.xlu0 %826
          %828 = vrot.lane.b32.xlu0 %v649, 124
          %v829 = vpop.permute.xlu0 %828
          %830 = vrot.lane.b32.xlu0 %v654, 124
          %v831 = vpop.permute.xlu0 %830
          %832 = vrot.lane.b32.xlu0 %v659, 124
          %v833 = vpop.permute.xlu0 %832
          %834 = vrot.lane.b32.xlu0 %v664, 124
          %v835 = vpop.permute.xlu0 %834
          %836 = vrot.lane.b32.xlu0 %v669, 124
          %v837 = vpop.permute.xlu0 %836
          %838 = vrot.lane.b32.xlu0 %v674, 124
          %v839 = vpop.permute.xlu0 %838
          %840 = vrot.lane.b32.xlu0 %v679, 124
          %v841 = vpop.permute.xlu0 %840
          %842 = vrot.lane.b32.xlu0 %v684, 124
          %v843 = vpop.permute.xlu0 %842
          %844 = vrot.lane.b32.xlu0 %v689, 124
          %v845 = vpop.permute.xlu0 %844
          %846 = vrot.lane.b32.xlu0 %v694, 124
          %v847 = vpop.permute.xlu0 %846
          %848 = vrot.lane.b32.xlu0 %v699, 124
          %v849 = vpop.permute.xlu0 %848
          %850 = vrot.lane.b32.xlu0 %v704, 124
          %v851 = vpop.permute.xlu0 %850
          %868 = vxpose.xlu0.b32.start [1/16] %v821, 128
          %869 = vxpose.xlu0.b32.cont [2/16] %v823, 128
          %870 = vxpose.xlu0.b32.cont [3/16] %v825, 128
          %871 = vxpose.xlu0.b32.cont [4/16] %v827, 128
          %872 = vxpose.xlu0.b32.cont [5/16] %v829, 128
          %873 = vxpose.xlu0.b32.cont [6/16] %v831, 128
          %874 = vxpose.xlu0.b32.cont [7/16] %v833, 128
          %875 = vxpose.xlu0.b32.cont [8/16] %v835, 128
          %876 = vxpose.xlu0.b32.cont [9/16] %v837, 128
          %877 = vxpose.xlu0.b32.cont [10/16] %v839, 128
          %878 = vxpose.xlu0.b32.cont [11/16] %v841, 128
          %879 = vxpose.xlu0.b32.cont [12/16] %v843, 128
          %880 = vxpose.xlu0.b32.cont [13/16] %v845, 128
          %881 = vxpose.xlu0.b32.cont [14/16] %v847, 128
          %882 = vxpose.xlu0.b32.cont [15/16] %v849, 128
          %883 = vxpose.xlu0.b32.end [16/16] %v851, 128
          %v884 = vpop.trf.xlu0
          %v885 = vpop.trf.xlu0
          %v886 = vpop.trf.xlu0
          %v887 = vpop.trf.xlu0
          %v888 = vpop.trf.xlu0
          %v889 = vpop.trf.xlu0
          %v890 = vpop.trf.xlu0
          %v891 = vpop.trf.xlu0
          %v892 = vpop.trf.xlu0
          %v893 = vpop.trf.xlu0
          %v894 = vpop.trf.xlu0
          %v895 = vpop.trf.xlu0
          %v896 = vpop.trf.xlu0
          %v897 = vpop.trf.xlu0
          %v898 = vpop.trf.xlu0
          %v899 = vpop.trf.xlu0
          %900 = vst [vmem:[#allocation4] sm:$0xf] %v884
        $region52: #{tpu_custom_call.1} parent=39 // pred_fallthru
          _
        %s901 = smul.u32 %s28, 128
        %s902 = scalar_lea.vmem [#allocation3], %s901
        %v903 = vld [vmem:[%s902] sm:$0xff]
        %v904 = vld [vmem:[%s902 + $0x8] sm:$0xff]
        %v905 = vld [vmem:[%s902 + $0x10] sm:$0xff]
        %v906 = vld [vmem:[%s902 + $0x18] sm:$0xff]
        %v907 = vld [vmem:[%s902 + $0x20] sm:$0xff]
        %v908 = vld [vmem:[%s902 + $0x28] sm:$0xff]
        %v909 = vld [vmem:[%s902 + $0x30] sm:$0xff]
        %v910 = vld [vmem:[%s902 + $0x38] sm:$0xff]
        %v911 = vld [vmem:[%s902 + $0x40] sm:$0xff]
        %v912 = vld [vmem:[%s902 + $0x48] sm:$0xff]
        %v913 = vld [vmem:[%s902 + $0x50] sm:$0xff]
        %v914 = vld [vmem:[%s902 + $0x58] sm:$0xff]
        %v915 = vld [vmem:[%s902 + $0x60] sm:$0xff]
        %v916 = vld [vmem:[%s902 + $0x68] sm:$0xff]
        %v917 = vld [vmem:[%s902 + $0x70] sm:$0xff]
        %v918 = vld [vmem:[%s902 + $0x78] sm:$0xff]
        %v919 = vld [vmem:[#allocation2] sm:$0xf]
        %v920 = vld [vmem:[#allocation2 + $0x4] sm:$0xf]
        %v921 = vld [vmem:[#allocation2 + $0x8] sm:$0xf]
        %v922 = vld [vmem:[#allocation2 + $0xc] sm:$0xf]
        %v923 = vld [vmem:[#allocation2 + $0x10] sm:$0xf]
        %v924 = vld [vmem:[#allocation2 + $0x14] sm:$0xf]
        %v925 = vld [vmem:[#allocation2 + $0x18] sm:$0xf]
        %v926 = vld [vmem:[#allocation2 + $0x1c] sm:$0xf]
        %v927 = vld [vmem:[#allocation2 + $0x20] sm:$0xf]
        %v928 = vld [vmem:[#allocation2 + $0x24] sm:$0xf]
        %v929 = vld [vmem:[#allocation2 + $0x28] sm:$0xf]
        %v930 = vld [vmem:[#allocation2 + $0x2c] sm:$0xf]
        %v931 = vld [vmem:[#allocation2 + $0x30] sm:$0xf]
        %v932 = vld [vmem:[#allocation2 + $0x34] sm:$0xf]
        %v933 = vld [vmem:[#allocation2 + $0x38] sm:$0xf]
        %v934 = vld [vmem:[#allocation2 + $0x3c] sm:$0xf]
        %v935 = vld [vmem:[%s259] sm:$0xff]
        %v936 = vld [vmem:[%s259 + $0x8] sm:$0xff]
        %v937 = vld [vmem:[%s259 + $0x10] sm:$0xff]
        %v938 = vld [vmem:[%s259 + $0x18] sm:$0xff]
        %vm939 = vnez %v935
        %vm940 = vnez %v936
        %vm941 = vnez %v937
        %vm942 = vnez %v938
        %v943 = vld [vmem:[#allocation4] sm:$0x1]
        %945 = vset.pattern.permute.xlu0 0
        %946 = vperm.xlu0 %945, %v903
        %v947 = vpop.permute.xlu0 %946
        %950 = vset.pattern.permute.xlu0 0
        %951 = vperm.xlu0 %950, %v904
        %v952 = vpop.permute.xlu0 %951
        %955 = vset.pattern.permute.xlu0 0
        %956 = vperm.xlu0 %955, %v905
        %v957 = vpop.permute.xlu0 %956
        %960 = vset.pattern.permute.xlu0 0
        %961 = vperm.xlu0 %960, %v906
        %v962 = vpop.permute.xlu0 %961
        %965 = vset.pattern.permute.xlu0 0
        %966 = vperm.xlu0 %965, %v907
        %v967 = vpop.permute.xlu0 %966
        %970 = vset.pattern.permute.xlu0 0
        %971 = vperm.xlu0 %970, %v908
        %v972 = vpop.permute.xlu0 %971
        %975 = vset.pattern.permute.xlu0 0
        %976 = vperm.xlu0 %975, %v909
        %v977 = vpop.permute.xlu0 %976
        %980 = vset.pattern.permute.xlu0 0
        %981 = vperm.xlu0 %980, %v910
        %v982 = vpop.permute.xlu0 %981
        %985 = vset.pattern.permute.xlu0 0
        %986 = vperm.xlu0 %985, %v911
        %v987 = vpop.permute.xlu0 %986
        %990 = vset.pattern.permute.xlu0 0
        %991 = vperm.xlu0 %990, %v912
        %v992 = vpop.permute.xlu0 %991
        %995 = vset.pattern.permute.xlu0 0
        %996 = vperm.xlu0 %995, %v913
        %v997 = vpop.permute.xlu0 %996
        %1000 = vset.pattern.permute.xlu0 0
        %1001 = vperm.xlu0 %1000, %v914
        %v1002 = vpop.permute.xlu0 %1001
        %1005 = vset.pattern.permute.xlu0 0
        %1006 = vperm.xlu0 %1005, %v915
        %v1007 = vpop.permute.xlu0 %1006
        %1010 = vset.pattern.permute.xlu0 0
        %1011 = vperm.xlu0 %1010, %v916
        %v1012 = vpop.permute.xlu0 %1011
        %1015 = vset.pattern.permute.xlu0 0
        %1016 = vperm.xlu0 %1015, %v917
        %v1017 = vpop.permute.xlu0 %1016
        %1020 = vset.pattern.permute.xlu0 0
        %1021 = vperm.xlu0 %1020, %v918
        %v1022 = vpop.permute.xlu0 %1021
        %v1024 = vlaneseq
        %v1025 = vshrl.u32 %v1024, 7
        %v1026 = vsub.s32 0, %v1025
        %v1027 = vrot.slane %v943, %v1026
        %v1028 = vadd.f32 %v947, %v1027
        %v1029 = vadd.f32 %v952, %v1027
        %v1030 = vadd.f32 %v957, %v1027
        %v1031 = vadd.f32 %v962, %v1027
        %v1032 = vadd.f32 %v967, %v1027
        %v1033 = vadd.f32 %v972, %v1027
        %v1034 = vadd.f32 %v977, %v1027
        %v1035 = vadd.f32 %v982, %v1027
        %v1036 = vadd.f32 %v987, %v1027
        %v1037 = vadd.f32 %v992, %v1027
        %v1038 = vadd.f32 %v997, %v1027
        %v1039 = vadd.f32 %v1002, %v1027
        %v1040 = vadd.f32 %v1007, %v1027
        %v1041 = vadd.f32 %v1012, %v1027
        %v1042 = vadd.f32 %v1017, %v1027
        %v1043 = vadd.f32 %v1022, %v1027
        %v1044 = vmul.f32 %v1028, 0.2
        %v1045 = vmul.f32 %v1029, 0.2
        %v1046 = vmul.f32 %v1030, 0.2
        %v1047 = vmul.f32 %v1031, 0.2
        %v1048 = vmul.f32 %v1032, 0.2
        %v1049 = vmul.f32 %v1033, 0.2
        %v1050 = vmul.f32 %v1034, 0.2
        %v1051 = vmul.f32 %v1035, 0.2
        %v1052 = vmul.f32 %v1036, 0.2
        %v1053 = vmul.f32 %v1037, 0.2
        %v1054 = vmul.f32 %v1038, 0.2
        %v1055 = vmul.f32 %v1039, 0.2
        %v1056 = vmul.f32 %v1040, 0.2
        %v1057 = vmul.f32 %v1041, 0.2
        %v1058 = vmul.f32 %v1042, 0.2
        %v1059 = vmul.f32 %v1043, 0.2
        %v1060 = vmax.f32 %v1028, %v1044
        %v1061 = vmax.f32 %v1029, %v1045
        %v1062 = vmax.f32 %v1030, %v1046
        %v1063 = vmax.f32 %v1031, %v1047
        %v1064 = vmax.f32 %v1032, %v1048
        %v1065 = vmax.f32 %v1033, %v1049
        %v1066 = vmax.f32 %v1034, %v1050
        %v1067 = vmax.f32 %v1035, %v1051
        %v1068 = vmax.f32 %v1036, %v1052
        %v1069 = vmax.f32 %v1037, %v1053
        %v1070 = vmax.f32 %v1038, %v1054
        %v1071 = vmax.f32 %v1039, %v1055
        %v1072 = vmax.f32 %v1040, %v1056
        %v1073 = vmax.f32 %v1041, %v1057
        %v1074 = vmax.f32 %v1042, %v1058
        %v1075 = vmax.f32 %v1043, %v1059
        %v1076 = vsel %vm939, 16843009, 0
        %v1077 = vsel %vm940, 16843009, 0
        %v1078 = vsel %vm941, 16843009, 0
        %v1079 = vsel %vm942, 16843009, 0
        %v1080 = vunpack.c.0.s8 %v1076
        %v1081 = vunpack.c.1.s8 %v1076
        %v1082 = vunpack.c.2.s8 %v1076
        %v1083 = vunpack.c.3.s8 %v1076
        %v1084 = vunpack.c.0.s8 %v1077
        %v1085 = vunpack.c.1.s8 %v1077
        %v1086 = vunpack.c.2.s8 %v1077
        %v1087 = vunpack.c.3.s8 %v1077
        %v1088 = vunpack.c.0.s8 %v1078
        %v1089 = vunpack.c.1.s8 %v1078
        %v1090 = vunpack.c.2.s8 %v1078
        %v1091 = vunpack.c.3.s8 %v1078
        %v1092 = vunpack.c.0.s8 %v1079
        %v1093 = vunpack.c.1.s8 %v1079
        %v1094 = vunpack.c.2.s8 %v1079
        %v1095 = vunpack.c.3.s8 %v1079
        %v1096 = vpack.c.b16 %v1080, %v1080
        %v1097 = vpack.c.b8 %v1096, %v1096
        %v1098 = vpack.c.b16 %v1081, %v1081
        %v1099 = vpack.c.b8 %v1098, %v1098
        %v1100 = vpack.c.b16 %v1082, %v1082
        %v1101 = vpack.c.b8 %v1100, %v1100
        %v1102 = vpack.c.b16 %v1083, %v1083
        %v1103 = vpack.c.b8 %v1102, %v1102
        %v1104 = vpack.c.b16 %v1084, %v1084
        %v1105 = vpack.c.b8 %v1104, %v1104
        %v1106 = vpack.c.b16 %v1085, %v1085
        %v1107 = vpack.c.b8 %v1106, %v1106
        %v1108 = vpack.c.b16 %v1086, %v1086
        %v1109 = vpack.c.b8 %v1108, %v1108
        %v1110 = vpack.c.b16 %v1087, %v1087
        %v1111 = vpack.c.b8 %v1110, %v1110
        %v1112 = vpack.c.b16 %v1088, %v1088
        %v1113 = vpack.c.b8 %v1112, %v1112
        %v1114 = vpack.c.b16 %v1089, %v1089
        %v1115 = vpack.c.b8 %v1114, %v1114
        %v1116 = vpack.c.b16 %v1090, %v1090
        %v1117 = vpack.c.b8 %v1116, %v1116
        %v1118 = vpack.c.b16 %v1091, %v1091
        %v1119 = vpack.c.b8 %v1118, %v1118
        %v1120 = vpack.c.b16 %v1092, %v1092
        %v1121 = vpack.c.b8 %v1120, %v1120
        %v1122 = vpack.c.b16 %v1093, %v1093
        %v1123 = vpack.c.b8 %v1122, %v1122
        %v1124 = vpack.c.b16 %v1094, %v1094
        %v1125 = vpack.c.b8 %v1124, %v1124
        %v1126 = vpack.c.b16 %v1095, %v1095
        %v1127 = vpack.c.b8 %v1126, %v1126
        %vm1128 = vnez %v1097
        %vm1129 = vnez %v1099
        %vm1130 = vnez %v1101
        %vm1131 = vnez %v1103
        %vm1132 = vnez %v1105
        %vm1133 = vnez %v1107
        %vm1134 = vnez %v1109
        %vm1135 = vnez %v1111
        %vm1136 = vnez %v1113
        %vm1137 = vnez %v1115
        %vm1138 = vnez %v1117
        %vm1139 = vnez %v1119
        %vm1140 = vnez %v1121
        %vm1141 = vnez %v1123
        %vm1142 = vnez %v1125
        %vm1143 = vnez %v1127
        %v1144 = vsel %vm1128, 16843009, 0
        %v1145 = vsel %vm1129, 16843009, 0
        %v1146 = vsel %vm1130, 16843009, 0
        %v1147 = vsel %vm1131, 16843009, 0
        %v1148 = vsel %vm1132, 16843009, 0
        %v1149 = vsel %vm1133, 16843009, 0
        %v1150 = vsel %vm1134, 16843009, 0
        %v1151 = vsel %vm1135, 16843009, 0
        %v1152 = vsel %vm1136, 16843009, 0
        %v1153 = vsel %vm1137, 16843009, 0
        %v1154 = vsel %vm1138, 16843009, 0
        %v1155 = vsel %vm1139, 16843009, 0
        %v1156 = vsel %vm1140, 16843009, 0
        %v1157 = vsel %vm1141, 16843009, 0
        %v1158 = vsel %vm1142, 16843009, 0
        %v1159 = vsel %vm1143, 16843009, 0
        %v1160 = vunpack.c.0.s8 %v1144
        %v1161 = vunpack.c.0.s8 %v1145
        %v1162 = vunpack.c.0.s8 %v1146
        %v1163 = vunpack.c.0.s8 %v1147
        %v1164 = vunpack.c.0.s8 %v1148
        %v1165 = vunpack.c.0.s8 %v1149
        %v1166 = vunpack.c.0.s8 %v1150
        %v1167 = vunpack.c.0.s8 %v1151
        %v1168 = vunpack.c.0.s8 %v1152
        %v1169 = vunpack.c.0.s8 %v1153
        %v1170 = vunpack.c.0.s8 %v1154
        %v1171 = vunpack.c.0.s8 %v1155
        %v1172 = vunpack.c.0.s8 %v1156
        %v1173 = vunpack.c.0.s8 %v1157
        %v1174 = vunpack.c.0.s8 %v1158
        %v1175 = vunpack.c.0.s8 %v1159
        %vm1176 = vcmp.ne.s32.totalorder %v1160, 0
        %vm1177 = vcmp.ne.s32.totalorder %v1161, 0
        %vm1178 = vcmp.ne.s32.totalorder %v1162, 0
        %vm1179 = vcmp.ne.s32.totalorder %v1163, 0
        %vm1180 = vcmp.ne.s32.totalorder %v1164, 0
        %vm1181 = vcmp.ne.s32.totalorder %v1165, 0
        %vm1182 = vcmp.ne.s32.totalorder %v1166, 0
        %vm1183 = vcmp.ne.s32.totalorder %v1167, 0
        %vm1184 = vcmp.ne.s32.totalorder %v1168, 0
        %vm1185 = vcmp.ne.s32.totalorder %v1169, 0
        %vm1186 = vcmp.ne.s32.totalorder %v1170, 0
        %vm1187 = vcmp.ne.s32.totalorder %v1171, 0
        %vm1188 = vcmp.ne.s32.totalorder %v1172, 0
        %vm1189 = vcmp.ne.s32.totalorder %v1173, 0
        %vm1190 = vcmp.ne.s32.totalorder %v1174, 0
        %vm1191 = vcmp.ne.s32.totalorder %v1175, 0
        %v1192 = vsel %vm1176, %v1060, -1e+30
        %v1193 = vsel %vm1177, %v1061, -1e+30
        %v1194 = vsel %vm1178, %v1062, -1e+30
        %v1195 = vsel %vm1179, %v1063, -1e+30
        %v1196 = vsel %vm1180, %v1064, -1e+30
        %v1197 = vsel %vm1181, %v1065, -1e+30
        %v1198 = vsel %vm1182, %v1066, -1e+30
        %v1199 = vsel %vm1183, %v1067, -1e+30
        %v1200 = vsel %vm1184, %v1068, -1e+30
        %v1201 = vsel %vm1185, %v1069, -1e+30
        %v1202 = vsel %vm1186, %v1070, -1e+30
        %v1203 = vsel %vm1187, %v1071, -1e+30
        %v1204 = vsel %vm1188, %v1072, -1e+30
        %v1205 = vsel %vm1189, %v1073, -1e+30
        %v1206 = vsel %vm1190, %v1074, -1e+30
        %v1207 = vsel %vm1191, %v1075, -1e+30
        %1208 = vmax.xlane.f32.xlu0 %v1192
        %v1209 = vpop.xlane.xlu0 %1208
        %1210 = vmax.xlane.f32.xlu0 %v1193
        %v1211 = vpop.xlane.xlu0 %1210
        %1212 = vmax.xlane.f32.xlu0 %v1194
        %v1213 = vpop.xlane.xlu0 %1212
        %1214 = vmax.xlane.f32.xlu0 %v1195
        %v1215 = vpop.xlane.xlu0 %1214
        %1216 = vmax.xlane.f32.xlu0 %v1196
        %v1217 = vpop.xlane.xlu0 %1216
        %1218 = vmax.xlane.f32.xlu0 %v1197
        %v1219 = vpop.xlane.xlu0 %1218
        %1220 = vmax.xlane.f32.xlu0 %v1198
        %v1221 = vpop.xlane.xlu0 %1220
        %1222 = vmax.xlane.f32.xlu0 %v1199
        %v1223 = vpop.xlane.xlu0 %1222
        %1224 = vmax.xlane.f32.xlu0 %v1200
        %v1225 = vpop.xlane.xlu0 %1224
        %1226 = vmax.xlane.f32.xlu0 %v1201
        %v1227 = vpop.xlane.xlu0 %1226
        %1228 = vmax.xlane.f32.xlu0 %v1202
        %v1229 = vpop.xlane.xlu0 %1228
        %1230 = vmax.xlane.f32.xlu0 %v1203
        %v1231 = vpop.xlane.xlu0 %1230
        %1232 = vmax.xlane.f32.xlu0 %v1204
        %v1233 = vpop.xlane.xlu0 %1232
        %1234 = vmax.xlane.f32.xlu0 %v1205
        %v1235 = vpop.xlane.xlu0 %1234
        %1236 = vmax.xlane.f32.xlu0 %v1206
        %v1237 = vpop.xlane.xlu0 %1236
        %1238 = vmax.xlane.f32.xlu0 %v1207
        %v1239 = vpop.xlane.xlu0 %1238
        %v1240 = vsub.f32 %v1192, %v1209
        %v1241 = vsub.f32 %v1193, %v1211
        %v1242 = vsub.f32 %v1194, %v1213
        %v1243 = vsub.f32 %v1195, %v1215
        %v1244 = vsub.f32 %v1196, %v1217
        %v1245 = vsub.f32 %v1197, %v1219
        %v1246 = vsub.f32 %v1198, %v1221
        %v1247 = vsub.f32 %v1199, %v1223
        %v1248 = vsub.f32 %v1200, %v1225
        %v1249 = vsub.f32 %v1201, %v1227
        %v1250 = vsub.f32 %v1202, %v1229
        %v1251 = vsub.f32 %v1203, %v1231
        %v1252 = vsub.f32 %v1204, %v1233
        %v1253 = vsub.f32 %v1205, %v1235
        %v1254 = vsub.f32 %v1206, %v1237
        %v1255 = vsub.f32 %v1207, %v1239
        %v1256 = vmul.f32 %v1240, 1.442695
        %v1257 = vpow.pop %v1256
        %v1258 = vmul.f32 %v1241, 1.442695
        %v1259 = vpow.pop %v1258
        %v1260 = vmul.f32 %v1242, 1.442695
        %v1261 = vpow.pop %v1260
        %v1262 = vmul.f32 %v1243, 1.442695
        %v1263 = vpow.pop %v1262
        %v1264 = vmul.f32 %v1244, 1.442695
        %v1265 = vpow.pop %v1264
        %v1266 = vmul.f32 %v1245, 1.442695
        %v1267 = vpow.pop %v1266
        %v1268 = vmul.f32 %v1246, 1.442695
        %v1269 = vpow.pop %v1268
        %v1270 = vmul.f32 %v1247, 1.442695
        %v1271 = vpow.pop %v1270
        %v1272 = vmul.f32 %v1248, 1.442695
        %v1273 = vpow.pop %v1272
        %v1274 = vmul.f32 %v1249, 1.442695
        %v1275 = vpow.pop %v1274
        %v1276 = vmul.f32 %v1250, 1.442695
        %v1277 = vpow.pop %v1276
        %v1278 = vmul.f32 %v1251, 1.442695
        %v1279 = vpow.pop %v1278
        %v1280 = vmul.f32 %v1252, 1.442695
        %v1281 = vpow.pop %v1280
        %v1282 = vmul.f32 %v1253, 1.442695
        %v1283 = vpow.pop %v1282
        %v1284 = vmul.f32 %v1254, 1.442695
        %v1285 = vpow.pop %v1284
        %v1286 = vmul.f32 %v1255, 1.442695
        %v1287 = vpow.pop %v1286
        %1288 = vadd.xlane.f32.xlu0 %v1257
        %v1289 = vpop.xlane.xlu0 %1288
        %1290 = vadd.xlane.f32.xlu0 %v1259
        %v1291 = vpop.xlane.xlu0 %1290
        %1292 = vadd.xlane.f32.xlu0 %v1261
        %v1293 = vpop.xlane.xlu0 %1292
        %1294 = vadd.xlane.f32.xlu0 %v1263
        %v1295 = vpop.xlane.xlu0 %1294
        %1296 = vadd.xlane.f32.xlu0 %v1265
        %v1297 = vpop.xlane.xlu0 %1296
        %1298 = vadd.xlane.f32.xlu0 %v1267
        %v1299 = vpop.xlane.xlu0 %1298
        %1300 = vadd.xlane.f32.xlu0 %v1269
        %v1301 = vpop.xlane.xlu0 %1300
        %1302 = vadd.xlane.f32.xlu0 %v1271
        %v1303 = vpop.xlane.xlu0 %1302
        %1304 = vadd.xlane.f32.xlu0 %v1273
        %v1305 = vpop.xlane.xlu0 %1304
        %1306 = vadd.xlane.f32.xlu0 %v1275
        %v1307 = vpop.xlane.xlu0 %1306
        %1308 = vadd.xlane.f32.xlu0 %v1277
        %v1309 = vpop.xlane.xlu0 %1308
        %1310 = vadd.xlane.f32.xlu0 %v1279
        %v1311 = vpop.xlane.xlu0 %1310
        %1312 = vadd.xlane.f32.xlu0 %v1281
        %v1313 = vpop.xlane.xlu0 %1312
        %1314 = vadd.xlane.f32.xlu0 %v1283
        %v1315 = vpop.xlane.xlu0 %1314
        %1316 = vadd.xlane.f32.xlu0 %v1285
        %v1317 = vpop.xlane.xlu0 %1316
        %1318 = vadd.xlane.f32.xlu0 %v1287
        %v1319 = vpop.xlane.xlu0 %1318
        %v1320 = vrcp.pop %v1289
        %v1321 = vrcp.pop %v1291
        %v1322 = vrcp.pop %v1293
        %v1323 = vrcp.pop %v1295
        %v1324 = vrcp.pop %v1297
        %v1325 = vrcp.pop %v1299
        %v1326 = vrcp.pop %v1301
        %v1327 = vrcp.pop %v1303
        %v1328 = vrcp.pop %v1305
        %v1329 = vrcp.pop %v1307
        %v1330 = vrcp.pop %v1309
        %v1331 = vrcp.pop %v1311
        %v1332 = vrcp.pop %v1313
        %v1333 = vrcp.pop %v1315
        %v1334 = vrcp.pop %v1317
        %v1335 = vrcp.pop %v1319
        %v1336 = vmul.f32 %v1257, %v1320
        %v1337 = vmul.f32 %v1259, %v1321
        %v1338 = vmul.f32 %v1261, %v1322
        %v1339 = vmul.f32 %v1263, %v1323
        %v1340 = vmul.f32 %v1265, %v1324
        %v1341 = vmul.f32 %v1267, %v1325
        %v1342 = vmul.f32 %v1269, %v1326
        %v1343 = vmul.f32 %v1271, %v1327
        %v1344 = vmul.f32 %v1273, %v1328
        %v1345 = vmul.f32 %v1275, %v1329
        %v1346 = vmul.f32 %v1277, %v1330
        %v1347 = vmul.f32 %v1279, %v1331
        %v1348 = vmul.f32 %v1281, %v1332
        %v1349 = vmul.f32 %v1283, %v1333
        %v1350 = vmul.f32 %v1285, %v1334
        %v1351 = vmul.f32 %v1287, %v1335
        %v1352 = vpack.c.bf16 %v1337, %v1336
        %v1353 = vpack.c.bf16 %v1339, %v1338
        %v1354 = vpack.c.bf16 %v1341, %v1340
        %v1355 = vpack.c.bf16 %v1343, %v1342
        %v1356 = vpack.c.bf16 %v1345, %v1344
        %v1357 = vpack.c.bf16 %v1347, %v1346
        %v1358 = vpack.c.bf16 %v1349, %v1348
        %v1359 = vpack.c.bf16 %v1351, %v1350
        %v1376 = vunpack.c.l.b16 %v919
        %v1377 = vunpack.c.l.b16 %v920
        %v1378 = vunpack.c.l.b16 %v921
        %v1379 = vunpack.c.l.b16 %v922
        %v1380 = vunpack.c.l.b16 %v923
        %v1381 = vunpack.c.l.b16 %v924
        %v1382 = vunpack.c.l.b16 %v925
        %v1383 = vunpack.c.l.b16 %v926
        %v1384 = vunpack.c.l.b16 %v927
        %v1385 = vunpack.c.l.b16 %v928
        %v1386 = vunpack.c.l.b16 %v929
        %v1387 = vunpack.c.l.b16 %v930
        %v1388 = vunpack.c.l.b16 %v931
        %v1389 = vunpack.c.l.b16 %v932
        %v1390 = vunpack.c.l.b16 %v933
        %v1391 = vunpack.c.l.b16 %v934
        %v1392 = vpack.c.b16 %v1377, %v1376
        %v1393 = vpack.c.b16 %v1379, %v1378
        %v1394 = vpack.c.b16 %v1381, %v1380
        %v1395 = vpack.c.b16 %v1383, %v1382
        %v1396 = vpack.c.b16 %v1385, %v1384
        %v1397 = vpack.c.b16 %v1387, %v1386
        %v1398 = vpack.c.b16 %v1389, %v1388
        %v1399 = vpack.c.b16 %v1391, %v1390
        %1408 = vmatprep.subr.bf16.mxu0 0
        %1409 = vmatpush1.bf16.msra.mxu0 %v1399
        %1410 = vmatprep.subr.bf16.mxu0 0
        %1411 = vmatpush1.bf16.msra.mxu0 %v1398
        %1412 = vmatprep.subr.bf16.mxu0 0
        %1413 = vmatpush1.bf16.msra.mxu0 %v1397
        %1414 = vmatprep.subr.bf16.mxu0 0
        %1415 = vmatpush1.bf16.msra.mxu0 %v1396
        %1416 = vmatprep.subr.bf16.mxu0 0
        %1417 = vmatpush1.bf16.msra.mxu0 %v1395
        %1418 = vmatprep.subr.bf16.mxu0 0
        %1419 = vmatpush1.bf16.msra.mxu0 %v1394
        %1420 = vmatprep.subr.bf16.mxu0 0
        %1421 = vmatpush1.bf16.msra.mxu0 %v1393
        %1422 = vmatprep.subr.bf16.mxu0 0
        %1423 = vmatpush1.bf16.msra.mxu0 %v1392
        %1424 = vmatprep.subr.bf16.mxu0 0
        %1425 = vmatpush2.bf16.msra.mxu0 0
        %1426 = vmatprep.subr.bf16.mxu0 0
        %1427 = vmatpush2.bf16.msra.mxu0 0
        %1428 = vmatprep.subr.bf16.mxu0 0
        %1429 = vmatpush2.bf16.msra.mxu0 0
        %1430 = vmatprep.subr.bf16.mxu0 0
        %1431 = vmatpush2.bf16.msra.mxu0 0
        %1432 = vmatprep.subr.bf16.mxu0 0
        %1433 = vmatpush2.bf16.msra.mxu0 0
        %1434 = vmatprep.subr.bf16.mxu0 0
        %1435 = vmatpush2.bf16.msra.mxu0 0
        %1436 = vmatprep.subr.bf16.mxu0 0
        %1437 = vmatpush2.bf16.msra.mxu0 0
        %1438 = vmatprep.subr.bf16.mxu0 0
        %1439 = vmatpush2.bf16.msra.mxu0 0
        %1440 = vmatprep.mubr.bf16.mxu0 0
        %1441 = vmatmul.mubr.bf16.gmra.mxu0 %v1352
        %v1442 = vpop.f32.mrf.mxu0
        %v1443 = vadd.f32 0.0, %v1442
        %v1444 = vpop.f32.mrf.mxu0
        %v1445 = vpop.f32.mrf.mxu0
        %v1446 = vadd.f32 0.0, %v1445
        %v1447 = vpop.f32.mrf.mxu0
        %1448 = vmatprep.mubr.bf16.mxu0 0
        %1449 = vmatmul.mubr.bf16.gmra.mxu0 %v1353
        %v1450 = vpop.f32.mrf.mxu0
        %v1451 = vadd.f32 0.0, %v1450
        %v1452 = vpop.f32.mrf.mxu0
        %v1453 = vpop.f32.mrf.mxu0
        %v1454 = vadd.f32 0.0, %v1453
        %v1455 = vpop.f32.mrf.mxu0
        %1456 = vmatprep.mubr.bf16.mxu0 0
        %1457 = vmatmul.mubr.bf16.gmra.mxu0 %v1354
        %v1458 = vpop.f32.mrf.mxu0
        %v1459 = vadd.f32 0.0, %v1458
        %v1460 = vpop.f32.mrf.mxu0
        %v1461 = vpop.f32.mrf.mxu0
        %v1462 = vadd.f32 0.0, %v1461
        %v1463 = vpop.f32.mrf.mxu0
        %1464 = vmatprep.mubr.bf16.mxu0 0
        %1465 = vmatmul.mubr.bf16.gmra.mxu0 %v1355
        %v1466 = vpop.f32.mrf.mxu0
        %v1467 = vadd.f32 0.0, %v1466
        %v1468 = vpop.f32.mrf.mxu0
        %v1469 = vpop.f32.mrf.mxu0
        %v1470 = vadd.f32 0.0, %v1469
        %v1471 = vpop.f32.mrf.mxu0
        %1472 = vmatprep.mubr.bf16.mxu0 0
        %1473 = vmatmul.mubr.bf16.gmra.mxu0 %v1356
        %v1474 = vpop.f32.mrf.mxu0
        %v1475 = vadd.f32 0.0, %v1474
        %v1476 = vpop.f32.mrf.mxu0
        %v1477 = vpop.f32.mrf.mxu0
        %v1478 = vadd.f32 0.0, %v1477
        %v1479 = vpop.f32.mrf.mxu0
        %1480 = vmatprep.mubr.bf16.mxu0 0
        %1481 = vmatmul.mubr.bf16.gmra.mxu0 %v1357
        %v1482 = vpop.f32.mrf.mxu0
        %v1483 = vadd.f32 0.0, %v1482
        %v1484 = vpop.f32.mrf.mxu0
        %v1485 = vpop.f32.mrf.mxu0
        %v1486 = vadd.f32 0.0, %v1485
        %v1487 = vpop.f32.mrf.mxu0
        %1488 = vmatprep.mubr.bf16.mxu0 0
        %1489 = vmatmul.mubr.bf16.gmra.mxu0 %v1358
        %v1490 = vpop.f32.mrf.mxu0
        %v1491 = vadd.f32 0.0, %v1490
        %v1492 = vpop.f32.mrf.mxu0
        %v1493 = vpop.f32.mrf.mxu0
        %v1494 = vadd.f32 0.0, %v1493
        %v1495 = vpop.f32.mrf.mxu0
        %1496 = vmatprep.mubr.bf16.mxu0 0
        %1497 = vmatmul.mubr.bf16.gmra.mxu0 %v1359
        %v1498 = vpop.f32.mrf.mxu0
        %v1499 = vadd.f32 0.0, %v1498
        %v1500 = vpop.f32.mrf.mxu0
        %v1501 = vpop.f32.mrf.mxu0
        %v1502 = vadd.f32 0.0, %v1501
        %v1503 = vpop.f32.mrf.mxu0
        %1504 = vdwg.mxu0
        %vm1505 = vcmask 261120
        %1506 = vst.msk [vmem:[#allocation5] sm:$0xff] %vm1505, %v1443
        %1507 = vst.msk [vmem:[#allocation5 + $0x8] sm:$0xff] %vm1505, %v1446
        %1508 = vst.msk [vmem:[#allocation5 + $0x10] sm:$0xff] %vm1505, %v1451
        %1509 = vst.msk [vmem:[#allocation5 + $0x18] sm:$0xff] %vm1505, %v1454
        %1510 = vst.msk [vmem:[#allocation5 + $0x20] sm:$0xff] %vm1505, %v1459
        %1511 = vst.msk [vmem:[#allocation5 + $0x28] sm:$0xff] %vm1505, %v1462
        %1512 = vst.msk [vmem:[#allocation5 + $0x30] sm:$0xff] %vm1505, %v1467
        %1513 = vst.msk [vmem:[#allocation5 + $0x38] sm:$0xff] %vm1505, %v1470
        %1514 = vst.msk [vmem:[#allocation5 + $0x40] sm:$0xff] %vm1505, %v1475
        %1515 = vst.msk [vmem:[#allocation5 + $0x48] sm:$0xff] %vm1505, %v1478
        %1516 = vst.msk [vmem:[#allocation5 + $0x50] sm:$0xff] %vm1505, %v1483
        %1517 = vst.msk [vmem:[#allocation5 + $0x58] sm:$0xff] %vm1505, %v1486
        %1518 = vst.msk [vmem:[#allocation5 + $0x60] sm:$0xff] %vm1505, %v1491
        %1519 = vst.msk [vmem:[#allocation5 + $0x68] sm:$0xff] %vm1505, %v1494
        %1520 = vst.msk [vmem:[#allocation5 + $0x70] sm:$0xff] %vm1505, %v1499
        %1521 = vst.msk [vmem:[#allocation5 + $0x78] sm:$0xff] %vm1505, %v1502
        %v1522 = vld [vmem:[#allocation4 + $0x1] sm:$0x1]
        %1523 = vset.pattern.permute.xlu0 1
        %1524 = vperm.xlu0 %1523, %v903
        %v1525 = vpop.permute.xlu0 %1524
        %1527 = vset.pattern.permute.xlu0 1
        %1528 = vperm.xlu0 %1527, %v904
        %v1529 = vpop.permute.xlu0 %1528
        %1531 = vset.pattern.permute.xlu0 1
        %1532 = vperm.xlu0 %1531, %v905
        %v1533 = vpop.permute.xlu0 %1532
        %1535 = vset.pattern.permute.xlu0 1
        %1536 = vperm.xlu0 %1535, %v906
        %v1537 = vpop.permute.xlu0 %1536
        %1539 = vset.pattern.permute.xlu0 1
        %1540 = vperm.xlu0 %1539, %v907
        %v1541 = vpop.permute.xlu0 %1540
        %1543 = vset.pattern.permute.xlu0 1
        %1544 = vperm.xlu0 %1543, %v908
        %v1545 = vpop.permute.xlu0 %1544
        %1547 = vset.pattern.permute.xlu0 1
        %1548 = vperm.xlu0 %1547, %v909
        %v1549 = vpop.permute.xlu0 %1548
        %1551 = vset.pattern.permute.xlu0 1
        %1552 = vperm.xlu0 %1551, %v910
        %v1553 = vpop.permute.xlu0 %1552
        %1555 = vset.pattern.permute.xlu0 1
        %1556 = vperm.xlu0 %1555, %v911
        %v1557 = vpop.permute.xlu0 %1556
        %1559 = vset.pattern.permute.xlu0 1
        %1560 = vperm.xlu0 %1559, %v912
        %v1561 = vpop.permute.xlu0 %1560
        %1563 = vset.pattern.permute.xlu0 1
        %1564 = vperm.xlu0 %1563, %v913
        %v1565 = vpop.permute.xlu0 %1564
        %1567 = vset.pattern.permute.xlu0 1
        %1568 = vperm.xlu0 %1567, %v914
        %v1569 = vpop.permute.xlu0 %1568
        %1571 = vset.pattern.permute.xlu0 1
        %1572 = vperm.xlu0 %1571, %v915
        %v1573 = vpop.permute.xlu0 %1572
        %1575 = vset.pattern.permute.xlu0 1
        %1576 = vperm.xlu0 %1575, %v916
        %v1577 = vpop.permute.xlu0 %1576
        %1579 = vset.pattern.permute.xlu0 1
        %1580 = vperm.xlu0 %1579, %v917
        %v1581 = vpop.permute.xlu0 %1580
        %1583 = vset.pattern.permute.xlu0 1
        %1584 = vperm.xlu0 %1583, %v918
        %v1585 = vpop.permute.xlu0 %1584
        %v1587 = vlaneseq
        %v1588 = vshrl.u32 %v1587, 7
        %v1589 = vsub.s32 0, %v1588
        %v1590 = vrot.slane %v1522, %v1589
        %v1591 = vadd.f32 %v1525, %v1590
        %v1592 = vadd.f32 %v1529, %v1590
        %v1593 = vadd.f32 %v1533, %v1590
        %v1594 = vadd.f32 %v1537, %v1590
        %v1595 = vadd.f32 %v1541, %v1590
        %v1596 = vadd.f32 %v1545, %v1590
        %v1597 = vadd.f32 %v1549, %v1590
        %v1598 = vadd.f32 %v1553, %v1590
        %v1599 = vadd.f32 %v1557, %v1590
        %v1600 = vadd.f32 %v1561, %v1590
        %v1601 = vadd.f32 %v1565, %v1590
        %v1602 = vadd.f32 %v1569, %v1590
        %v1603 = vadd.f32 %v1573, %v1590
        %v1604 = vadd.f32 %v1577, %v1590
        %v1605 = vadd.f32 %v1581, %v1590
        %v1606 = vadd.f32 %v1585, %v1590
        %v1607 = vmul.f32 %v1591, 0.2
        %v1608 = vmul.f32 %v1592, 0.2
        %v1609 = vmul.f32 %v1593, 0.2
        %v1610 = vmul.f32 %v1594, 0.2
        %v1611 = vmul.f32 %v1595, 0.2
        %v1612 = vmul.f32 %v1596, 0.2
        %v1613 = vmul.f32 %v1597, 0.2
        %v1614 = vmul.f32 %v1598, 0.2
        %v1615 = vmul.f32 %v1599, 0.2
        %v1616 = vmul.f32 %v1600, 0.2
        %v1617 = vmul.f32 %v1601, 0.2
        %v1618 = vmul.f32 %v1602, 0.2
        %v1619 = vmul.f32 %v1603, 0.2
        %v1620 = vmul.f32 %v1604, 0.2
        %v1621 = vmul.f32 %v1605, 0.2
        %v1622 = vmul.f32 %v1606, 0.2
        %v1623 = vmax.f32 %v1591, %v1607
        %v1624 = vmax.f32 %v1592, %v1608
        %v1625 = vmax.f32 %v1593, %v1609
        %v1626 = vmax.f32 %v1594, %v1610
        %v1627 = vmax.f32 %v1595, %v1611
        %v1628 = vmax.f32 %v1596, %v1612
        %v1629 = vmax.f32 %v1597, %v1613
        %v1630 = vmax.f32 %v1598, %v1614
        %v1631 = vmax.f32 %v1599, %v1615
        %v1632 = vmax.f32 %v1600, %v1616
        %v1633 = vmax.f32 %v1601, %v1617
        %v1634 = vmax.f32 %v1602, %v1618
        %v1635 = vmax.f32 %v1603, %v1619
        %v1636 = vmax.f32 %v1604, %v1620
        %v1637 = vmax.f32 %v1605, %v1621
        %v1638 = vmax.f32 %v1606, %v1622
        %v1639 = vsel %vm1176, %v1623, -1e+30
        %v1640 = vsel %vm1177, %v1624, -1e+30
        %v1641 = vsel %vm1178, %v1625, -1e+30
        %v1642 = vsel %vm1179, %v1626, -1e+30
        %v1643 = vsel %vm1180, %v1627, -1e+30
        %v1644 = vsel %vm1181, %v1628, -1e+30
        %v1645 = vsel %vm1182, %v1629, -1e+30
        %v1646 = vsel %vm1183, %v1630, -1e+30
        %v1647 = vsel %vm1184, %v1631, -1e+30
        %v1648 = vsel %vm1185, %v1632, -1e+30
        %v1649 = vsel %vm1186, %v1633, -1e+30
        %v1650 = vsel %vm1187, %v1634, -1e+30
        %v1651 = vsel %vm1188, %v1635, -1e+30
        %v1652 = vsel %vm1189, %v1636, -1e+30
        %v1653 = vsel %vm1190, %v1637, -1e+30
        %v1654 = vsel %vm1191, %v1638, -1e+30
        %1655 = vmax.xlane.f32.xlu0 %v1639
        %v1656 = vpop.xlane.xlu0 %1655
        %1657 = vmax.xlane.f32.xlu0 %v1640
        %v1658 = vpop.xlane.xlu0 %1657
        %1659 = vmax.xlane.f32.xlu0 %v1641
        %v1660 = vpop.xlane.xlu0 %1659
        %1661 = vmax.xlane.f32.xlu0 %v1642
        %v1662 = vpop.xlane.xlu0 %1661
        %1663 = vmax.xlane.f32.xlu0 %v1643
        %v1664 = vpop.xlane.xlu0 %1663
        %1665 = vmax.xlane.f32.xlu0 %v1644
        %v1666 = vpop.xlane.xlu0 %1665
        %1667 = vmax.xlane.f32.xlu0 %v1645
        %v1668 = vpop.xlane.xlu0 %1667
        %1669 = vmax.xlane.f32.xlu0 %v1646
        %v1670 = vpop.xlane.xlu0 %1669
        %1671 = vmax.xlane.f32.xlu0 %v1647
        %v1672 = vpop.xlane.xlu0 %1671
        %1673 = vmax.xlane.f32.xlu0 %v1648
        %v1674 = vpop.xlane.xlu0 %1673
        %1675 = vmax.xlane.f32.xlu0 %v1649
        %v1676 = vpop.xlane.xlu0 %1675
        %1677 = vmax.xlane.f32.xlu0 %v1650
        %v1678 = vpop.xlane.xlu0 %1677
        %1679 = vmax.xlane.f32.xlu0 %v1651
        %v1680 = vpop.xlane.xlu0 %1679
        %1681 = vmax.xlane.f32.xlu0 %v1652
        %v1682 = vpop.xlane.xlu0 %1681
        %1683 = vmax.xlane.f32.xlu0 %v1653
        %v1684 = vpop.xlane.xlu0 %1683
        %1685 = vmax.xlane.f32.xlu0 %v1654
        %v1686 = vpop.xlane.xlu0 %1685
        %v1687 = vsub.f32 %v1639, %v1656
        %v1688 = vsub.f32 %v1640, %v1658
        %v1689 = vsub.f32 %v1641, %v1660
        %v1690 = vsub.f32 %v1642, %v1662
        %v1691 = vsub.f32 %v1643, %v1664
        %v1692 = vsub.f32 %v1644, %v1666
        %v1693 = vsub.f32 %v1645, %v1668
        %v1694 = vsub.f32 %v1646, %v1670
        %v1695 = vsub.f32 %v1647, %v1672
        %v1696 = vsub.f32 %v1648, %v1674
        %v1697 = vsub.f32 %v1649, %v1676
        %v1698 = vsub.f32 %v1650, %v1678
        %v1699 = vsub.f32 %v1651, %v1680
        %v1700 = vsub.f32 %v1652, %v1682
        %v1701 = vsub.f32 %v1653, %v1684
        %v1702 = vsub.f32 %v1654, %v1686
        %v1703 = vmul.f32 %v1687, 1.442695
        %v1704 = vpow.pop %v1703
        %v1705 = vmul.f32 %v1688, 1.442695
        %v1706 = vpow.pop %v1705
        %v1707 = vmul.f32 %v1689, 1.442695
        %v1708 = vpow.pop %v1707
        %v1709 = vmul.f32 %v1690, 1.442695
        %v1710 = vpow.pop %v1709
        %v1711 = vmul.f32 %v1691, 1.442695
        %v1712 = vpow.pop %v1711
        %v1713 = vmul.f32 %v1692, 1.442695
        %v1714 = vpow.pop %v1713
        %v1715 = vmul.f32 %v1693, 1.442695
        %v1716 = vpow.pop %v1715
        %v1717 = vmul.f32 %v1694, 1.442695
        %v1718 = vpow.pop %v1717
        %v1719 = vmul.f32 %v1695, 1.442695
        %v1720 = vpow.pop %v1719
        %v1721 = vmul.f32 %v1696, 1.442695
        %v1722 = vpow.pop %v1721
        %v1723 = vmul.f32 %v1697, 1.442695
        %v1724 = vpow.pop %v1723
        %v1725 = vmul.f32 %v1698, 1.442695
        %v1726 = vpow.pop %v1725
        %v1727 = vmul.f32 %v1699, 1.442695
        %v1728 = vpow.pop %v1727
        %v1729 = vmul.f32 %v1700, 1.442695
        %v1730 = vpow.pop %v1729
        %v1731 = vmul.f32 %v1701, 1.442695
        %v1732 = vpow.pop %v1731
        %v1733 = vmul.f32 %v1702, 1.442695
        %v1734 = vpow.pop %v1733
        %1735 = vadd.xlane.f32.xlu0 %v1704
        %v1736 = vpop.xlane.xlu0 %1735
        %1737 = vadd.xlane.f32.xlu0 %v1706
        %v1738 = vpop.xlane.xlu0 %1737
        %1739 = vadd.xlane.f32.xlu0 %v1708
        %v1740 = vpop.xlane.xlu0 %1739
        %1741 = vadd.xlane.f32.xlu0 %v1710
        %v1742 = vpop.xlane.xlu0 %1741
        %1743 = vadd.xlane.f32.xlu0 %v1712
        %v1744 = vpop.xlane.xlu0 %1743
        %1745 = vadd.xlane.f32.xlu0 %v1714
        %v1746 = vpop.xlane.xlu0 %1745
        %1747 = vadd.xlane.f32.xlu0 %v1716
        %v1748 = vpop.xlane.xlu0 %1747
        %1749 = vadd.xlane.f32.xlu0 %v1718
        %v1750 = vpop.xlane.xlu0 %1749
        %1751 = vadd.xlane.f32.xlu0 %v1720
        %v1752 = vpop.xlane.xlu0 %1751
        %1753 = vadd.xlane.f32.xlu0 %v1722
        %v1754 = vpop.xlane.xlu0 %1753
        %1755 = vadd.xlane.f32.xlu0 %v1724
        %v1756 = vpop.xlane.xlu0 %1755
        %1757 = vadd.xlane.f32.xlu0 %v1726
        %v1758 = vpop.xlane.xlu0 %1757
        %1759 = vadd.xlane.f32.xlu0 %v1728
        %v1760 = vpop.xlane.xlu0 %1759
        %1761 = vadd.xlane.f32.xlu0 %v1730
        %v1762 = vpop.xlane.xlu0 %1761
        %1763 = vadd.xlane.f32.xlu0 %v1732
        %v1764 = vpop.xlane.xlu0 %1763
        %1765 = vadd.xlane.f32.xlu0 %v1734
        %v1766 = vpop.xlane.xlu0 %1765
        %v1767 = vrcp.pop %v1736
        %v1768 = vrcp.pop %v1738
        %v1769 = vrcp.pop %v1740
        %v1770 = vrcp.pop %v1742
        %v1771 = vrcp.pop %v1744
        %v1772 = vrcp.pop %v1746
        %v1773 = vrcp.pop %v1748
        %v1774 = vrcp.pop %v1750
        %v1775 = vrcp.pop %v1752
        %v1776 = vrcp.pop %v1754
        %v1777 = vrcp.pop %v1756
        %v1778 = vrcp.pop %v1758
        %v1779 = vrcp.pop %v1760
        %v1780 = vrcp.pop %v1762
        %v1781 = vrcp.pop %v1764
        %v1782 = vrcp.pop %v1766
        %v1783 = vmul.f32 %v1704, %v1767
        %v1784 = vmul.f32 %v1706, %v1768
        %v1785 = vmul.f32 %v1708, %v1769
        %v1786 = vmul.f32 %v1710, %v1770
        %v1787 = vmul.f32 %v1712, %v1771
        %v1788 = vmul.f32 %v1714, %v1772
        %v1789 = vmul.f32 %v1716, %v1773
        %v1790 = vmul.f32 %v1718, %v1774
        %v1791 = vmul.f32 %v1720, %v1775
        %v1792 = vmul.f32 %v1722, %v1776
        %v1793 = vmul.f32 %v1724, %v1777
        %v1794 = vmul.f32 %v1726, %v1778
        %v1795 = vmul.f32 %v1728, %v1779
        %v1796 = vmul.f32 %v1730, %v1780
        %v1797 = vmul.f32 %v1732, %v1781
        %v1798 = vmul.f32 %v1734, %v1782
        %v1799 = vpack.c.bf16 %v1784, %v1783
        %v1800 = vpack.c.bf16 %v1786, %v1785
        %v1801 = vpack.c.bf16 %v1788, %v1787
        %v1802 = vpack.c.bf16 %v1790, %v1789
        %v1803 = vpack.c.bf16 %v1792, %v1791
        %v1804 = vpack.c.bf16 %v1794, %v1793
        %v1805 = vpack.c.bf16 %v1796, %v1795
        %v1806 = vpack.c.bf16 %v1798, %v1797
        %1807 = vrot.lane.b32.xlu0 %v1392, 96
        %v1808 = vpop.permute.xlu0 %1807
        %1809 = vrot.lane.b32.xlu0 %v1393, 96
        %v1810 = vpop.permute.xlu0 %1809
        %1811 = vrot.lane.b32.xlu0 %v1394, 96
        %v1812 = vpop.permute.xlu0 %1811
        %1813 = vrot.lane.b32.xlu0 %v1395, 96
        %v1814 = vpop.permute.xlu0 %1813
        %1815 = vrot.lane.b32.xlu0 %v1396, 96
        %v1816 = vpop.permute.xlu0 %1815
        %1817 = vrot.lane.b32.xlu0 %v1397, 96
        %v1818 = vpop.permute.xlu0 %1817
        %1819 = vrot.lane.b32.xlu0 %v1398, 96
        %v1820 = vpop.permute.xlu0 %1819
        %1821 = vrot.lane.b32.xlu0 %v1399, 96
        %v1822 = vpop.permute.xlu0 %1821
        %1831 = vmatprep.subr.bf16.mxu0 0
        %1832 = vmatpush1.bf16.msra.mxu0 %v1822
        %1833 = vmatprep.subr.bf16.mxu0 0
        %1834 = vmatpush1.bf16.msra.mxu0 %v1820
        %1835 = vmatprep.subr.bf16.mxu0 0
        %1836 = vmatpush1.bf16.msra.mxu0 %v1818
        %1837 = vmatprep.subr.bf16.mxu0 0
        %1838 = vmatpush1.bf16.msra.mxu0 %v1816
        %1839 = vmatprep.subr.bf16.mxu0 0
        %1840 = vmatpush1.bf16.msra.mxu0 %v1814
        %1841 = vmatprep.subr.bf16.mxu0 0
        %1842 = vmatpush1.bf16.msra.mxu0 %v1812
        %1843 = vmatprep.subr.bf16.mxu0 0
        %1844 = vmatpush1.bf16.msra.mxu0 %v1810
        %1845 = vmatprep.subr.bf16.mxu0 0
        %1846 = vmatpush1.bf16.msra.mxu0 %v1808
        %1847 = vmatprep.subr.bf16.mxu0 0
        %1848 = vmatpush2.bf16.msra.mxu0 0
        %1849 = vmatprep.subr.bf16.mxu0 0
        %1850 = vmatpush2.bf16.msra.mxu0 0
        %1851 = vmatprep.subr.bf16.mxu0 0
        %1852 = vmatpush2.bf16.msra.mxu0 0
        %1853 = vmatprep.subr.bf16.mxu0 0
        %1854 = vmatpush2.bf16.msra.mxu0 0
        %1855 = vmatprep.subr.bf16.mxu0 0
        %1856 = vmatpush2.bf16.msra.mxu0 0
        %1857 = vmatprep.subr.bf16.mxu0 0
        %1858 = vmatpush2.bf16.msra.mxu0 0
        %1859 = vmatprep.subr.bf16.mxu0 0
        %1860 = vmatpush2.bf16.msra.mxu0 0
        %1861 = vmatprep.subr.bf16.mxu0 0
        %1862 = vmatpush2.bf16.msra.mxu0 0
        %1863 = vmatprep.mubr.bf16.mxu0 0
        %1864 = vmatmul.mubr.bf16.gmra.mxu0 %v1799
        %v1865 = vpop.f32.mrf.mxu0
        %v1866 = vadd.f32 0.0, %v1865
        %v1867 = vpop.f32.mrf.mxu0
        %v1868 = vpop.f32.mrf.mxu0
        %v1869 = vadd.f32 0.0, %v1868
        %v1870 = vpop.f32.mrf.mxu0
        %1871 = vmatprep.mubr.bf16.mxu0 0
        %1872 = vmatmul.mubr.bf16.gmra.mxu0 %v1800
        %v1873 = vpop.f32.mrf.mxu0
        %v1874 = vadd.f32 0.0, %v1873
        %v1875 = vpop.f32.mrf.mxu0
        %v1876 = vpop.f32.mrf.mxu0
        %v1877 = vadd.f32 0.0, %v1876
        %v1878 = vpop.f32.mrf.mxu0
        %1879 = vmatprep.mubr.bf16.mxu0 0
        %1880 = vmatmul.mubr.bf16.gmra.mxu0 %v1801
        %v1881 = vpop.f32.mrf.mxu0
        %v1882 = vadd.f32 0.0, %v1881
        %v1883 = vpop.f32.mrf.mxu0
        %v1884 = vpop.f32.mrf.mxu0
        %v1885 = vadd.f32 0.0, %v1884
        %v1886 = vpop.f32.mrf.mxu0
        %1887 = vmatprep.mubr.bf16.mxu0 0
        %1888 = vmatmul.mubr.bf16.gmra.mxu0 %v1802
        %v1889 = vpop.f32.mrf.mxu0
        %v1890 = vadd.f32 0.0, %v1889
        %v1891 = vpop.f32.mrf.mxu0
        %v1892 = vpop.f32.mrf.mxu0
        %v1893 = vadd.f32 0.0, %v1892
        %v1894 = vpop.f32.mrf.mxu0
        %1895 = vmatprep.mubr.bf16.mxu0 0
        %1896 = vmatmul.mubr.bf16.gmra.mxu0 %v1803
        %v1897 = vpop.f32.mrf.mxu0
        %v1898 = vadd.f32 0.0, %v1897
        %v1899 = vpop.f32.mrf.mxu0
        %v1900 = vpop.f32.mrf.mxu0
        %v1901 = vadd.f32 0.0, %v1900
        %v1902 = vpop.f32.mrf.mxu0
        %1903 = vmatprep.mubr.bf16.mxu0 0
        %1904 = vmatmul.mubr.bf16.gmra.mxu0 %v1804
        %v1905 = vpop.f32.mrf.mxu0
        %v1906 = vadd.f32 0.0, %v1905
        %v1907 = vpop.f32.mrf.mxu0
        %v1908 = vpop.f32.mrf.mxu0
        %v1909 = vadd.f32 0.0, %v1908
        %v1910 = vpop.f32.mrf.mxu0
        %1911 = vmatprep.mubr.bf16.mxu0 0
        %1912 = vmatmul.mubr.bf16.gmra.mxu0 %v1805
        %v1913 = vpop.f32.mrf.mxu0
        %v1914 = vadd.f32 0.0, %v1913
        %v1915 = vpop.f32.mrf.mxu0
        %v1916 = vpop.f32.mrf.mxu0
        %v1917 = vadd.f32 0.0, %v1916
        %v1918 = vpop.f32.mrf.mxu0
        %1919 = vmatprep.mubr.bf16.mxu0 0
        %1920 = vmatmul.mubr.bf16.gmra.mxu0 %v1806
        %v1921 = vpop.f32.mrf.mxu0
        %v1922 = vadd.f32 0.0, %v1921
        %v1923 = vpop.f32.mrf.mxu0
        %v1924 = vpop.f32.mrf.mxu0
        %v1925 = vadd.f32 0.0, %v1924
        %v1926 = vpop.f32.mrf.mxu0
        %1927 = vdwg.mxu0
        %1944 = vrot.lane.b32.xlu0 %v1866, 32
        %v1945 = vpop.permute.xlu0 %1944
        %1946 = vrot.lane.b32.xlu0 %v1869, 32
        %v1947 = vpop.permute.xlu0 %1946
        %1948 = vrot.lane.b32.xlu0 %v1874, 32
        %v1949 = vpop.permute.xlu0 %1948
        %1950 = vrot.lane.b32.xlu0 %v1877, 32
        %v1951 = vpop.permute.xlu0 %1950
        %1952 = vrot.lane.b32.xlu0 %v1882, 32
        %v1953 = vpop.permute.xlu0 %1952
        %1954 = vrot.lane.b32.xlu0 %v1885, 32
        %v1955 = vpop.permute.xlu0 %1954
        %1956 = vrot.lane.b32.xlu0 %v1890, 32
        %v1957 = vpop.permute.xlu0 %1956
        %1958 = vrot.lane.b32.xlu0 %v1893, 32
        %v1959 = vpop.permute.xlu0 %1958
        %1960 = vrot.lane.b32.xlu0 %v1898, 32
        %v1961 = vpop.permute.xlu0 %1960
        %1962 = vrot.lane.b32.xlu0 %v1901, 32
        %v1963 = vpop.permute.xlu0 %1962
        %1964 = vrot.lane.b32.xlu0 %v1906, 32
        %v1965 = vpop.permute.xlu0 %1964
        %1966 = vrot.lane.b32.xlu0 %v1909, 32
        %v1967 = vpop.permute.xlu0 %1966
        %1968 = vrot.lane.b32.xlu0 %v1914, 32
        %v1969 = vpop.permute.xlu0 %1968
        %1970 = vrot.lane.b32.xlu0 %v1917, 32
        %v1971 = vpop.permute.xlu0 %1970
        %1972 = vrot.lane.b32.xlu0 %v1922, 32
        %v1973 = vpop.permute.xlu0 %1972
        %1974 = vrot.lane.b32.xlu0 %v1925, 32
        %v1975 = vpop.permute.xlu0 %1974
        %vm1992 = vcmask 523520
        %1993 = vst.msk [vmem:[#allocation5] sm:$0xff] %vm1992, %v1945
        %1994 = vst.msk [vmem:[#allocation5 + $0x8] sm:$0xff] %vm1992, %v1947
        %1995 = vst.msk [vmem:[#allocation5 + $0x10] sm:$0xff] %vm1992, %v1949
        %1996 = vst.msk [vmem:[#allocation5 + $0x18] sm:$0xff] %vm1992, %v1951
        %1997 = vst.msk [vmem:[#allocation5 + $0x20] sm:$0xff] %vm1992, %v1953
        %1998 = vst.msk [vmem:[#allocation5 + $0x28] sm:$0xff] %vm1992, %v1955
        %1999 = vst.msk [vmem:[#allocation5 + $0x30] sm:$0xff] %vm1992, %v1957
        %2000 = vst.msk [vmem:[#allocation5 + $0x38] sm:$0xff] %vm1992, %v1959
        %2001 = vst.msk [vmem:[#allocation5 + $0x40] sm:$0xff] %vm1992, %v1961
        %2002 = vst.msk [vmem:[#allocation5 + $0x48] sm:$0xff] %vm1992, %v1963
        %2003 = vst.msk [vmem:[#allocation5 + $0x50] sm:$0xff] %vm1992, %v1965
        %2004 = vst.msk [vmem:[#allocation5 + $0x58] sm:$0xff] %vm1992, %v1967
        %2005 = vst.msk [vmem:[#allocation5 + $0x60] sm:$0xff] %vm1992, %v1969
        %2006 = vst.msk [vmem:[#allocation5 + $0x68] sm:$0xff] %vm1992, %v1971
        %2007 = vst.msk [vmem:[#allocation5 + $0x70] sm:$0xff] %vm1992, %v1973
        %2008 = vst.msk [vmem:[#allocation5 + $0x78] sm:$0xff] %vm1992, %v1975
        %v2009 = vld [vmem:[#allocation4 + $0x2] sm:$0x1]
        %2010 = vset.pattern.permute.xlu0 2
        %2011 = vperm.xlu0 %2010, %v903
        %v2012 = vpop.permute.xlu0 %2011
        %2014 = vset.pattern.permute.xlu0 2
        %2015 = vperm.xlu0 %2014, %v904
        %v2016 = vpop.permute.xlu0 %2015
        %2018 = vset.pattern.permute.xlu0 2
        %2019 = vperm.xlu0 %2018, %v905
        %v2020 = vpop.permute.xlu0 %2019
        %2022 = vset.pattern.permute.xlu0 2
        %2023 = vperm.xlu0 %2022, %v906
        %v2024 = vpop.permute.xlu0 %2023
        %2026 = vset.pattern.permute.xlu0 2
        %2027 = vperm.xlu0 %2026, %v907
        %v2028 = vpop.permute.xlu0 %2027
        %2030 = vset.pattern.permute.xlu0 2
        %2031 = vperm.xlu0 %2030, %v908
        %v2032 = vpop.permute.xlu0 %2031
        %2034 = vset.pattern.permute.xlu0 2
        %2035 = vperm.xlu0 %2034, %v909
        %v2036 = vpop.permute.xlu0 %2035
        %2038 = vset.pattern.permute.xlu0 2
        %2039 = vperm.xlu0 %2038, %v910
        %v2040 = vpop.permute.xlu0 %2039
        %2042 = vset.pattern.permute.xlu0 2
        %2043 = vperm.xlu0 %2042, %v911
        %v2044 = vpop.permute.xlu0 %2043
        %2046 = vset.pattern.permute.xlu0 2
        %2047 = vperm.xlu0 %2046, %v912
        %v2048 = vpop.permute.xlu0 %2047
        %2050 = vset.pattern.permute.xlu0 2
        %2051 = vperm.xlu0 %2050, %v913
        %v2052 = vpop.permute.xlu0 %2051
        %2054 = vset.pattern.permute.xlu0 2
        %2055 = vperm.xlu0 %2054, %v914
        %v2056 = vpop.permute.xlu0 %2055
        %2058 = vset.pattern.permute.xlu0 2
        %2059 = vperm.xlu0 %2058, %v915
        %v2060 = vpop.permute.xlu0 %2059
        %2062 = vset.pattern.permute.xlu0 2
        %2063 = vperm.xlu0 %2062, %v916
        %v2064 = vpop.permute.xlu0 %2063
        %2066 = vset.pattern.permute.xlu0 2
        %2067 = vperm.xlu0 %2066, %v917
        %v2068 = vpop.permute.xlu0 %2067
        %2070 = vset.pattern.permute.xlu0 2
        %2071 = vperm.xlu0 %2070, %v918
        %v2072 = vpop.permute.xlu0 %2071
        %v2074 = vlaneseq
        %v2075 = vshrl.u32 %v2074, 7
        %v2076 = vsub.s32 0, %v2075
        %v2077 = vrot.slane %v2009, %v2076
        %v2078 = vadd.f32 %v2012, %v2077
        %v2079 = vadd.f32 %v2016, %v2077
        %v2080 = vadd.f32 %v2020, %v2077
        %v2081 = vadd.f32 %v2024, %v2077
        %v2082 = vadd.f32 %v2028, %v2077
        %v2083 = vadd.f32 %v2032, %v2077
        %v2084 = vadd.f32 %v2036, %v2077
        %v2085 = vadd.f32 %v2040, %v2077
        %v2086 = vadd.f32 %v2044, %v2077
        %v2087 = vadd.f32 %v2048, %v2077
        %v2088 = vadd.f32 %v2052, %v2077
        %v2089 = vadd.f32 %v2056, %v2077
        %v2090 = vadd.f32 %v2060, %v2077
        %v2091 = vadd.f32 %v2064, %v2077
        %v2092 = vadd.f32 %v2068, %v2077
        %v2093 = vadd.f32 %v2072, %v2077
        %v2094 = vmul.f32 %v2078, 0.2
        %v2095 = vmul.f32 %v2079, 0.2
        %v2096 = vmul.f32 %v2080, 0.2
        %v2097 = vmul.f32 %v2081, 0.2
        %v2098 = vmul.f32 %v2082, 0.2
        %v2099 = vmul.f32 %v2083, 0.2
        %v2100 = vmul.f32 %v2084, 0.2
        %v2101 = vmul.f32 %v2085, 0.2
        %v2102 = vmul.f32 %v2086, 0.2
        %v2103 = vmul.f32 %v2087, 0.2
        %v2104 = vmul.f32 %v2088, 0.2
        %v2105 = vmul.f32 %v2089, 0.2
        %v2106 = vmul.f32 %v2090, 0.2
        %v2107 = vmul.f32 %v2091, 0.2
        %v2108 = vmul.f32 %v2092, 0.2
        %v2109 = vmul.f32 %v2093, 0.2
        %v2110 = vmax.f32 %v2078, %v2094
        %v2111 = vmax.f32 %v2079, %v2095
        %v2112 = vmax.f32 %v2080, %v2096
        %v2113 = vmax.f32 %v2081, %v2097
        %v2114 = vmax.f32 %v2082, %v2098
        %v2115 = vmax.f32 %v2083, %v2099
        %v2116 = vmax.f32 %v2084, %v2100
        %v2117 = vmax.f32 %v2085, %v2101
        %v2118 = vmax.f32 %v2086, %v2102
        %v2119 = vmax.f32 %v2087, %v2103
        %v2120 = vmax.f32 %v2088, %v2104
        %v2121 = vmax.f32 %v2089, %v2105
        %v2122 = vmax.f32 %v2090, %v2106
        %v2123 = vmax.f32 %v2091, %v2107
        %v2124 = vmax.f32 %v2092, %v2108
        %v2125 = vmax.f32 %v2093, %v2109
        %v2126 = vsel %vm1176, %v2110, -1e+30
        %v2127 = vsel %vm1177, %v2111, -1e+30
        %v2128 = vsel %vm1178, %v2112, -1e+30
        %v2129 = vsel %vm1179, %v2113, -1e+30
        %v2130 = vsel %vm1180, %v2114, -1e+30
        %v2131 = vsel %vm1181, %v2115, -1e+30
        %v2132 = vsel %vm1182, %v2116, -1e+30
        %v2133 = vsel %vm1183, %v2117, -1e+30
        %v2134 = vsel %vm1184, %v2118, -1e+30
        %v2135 = vsel %vm1185, %v2119, -1e+30
        %v2136 = vsel %vm1186, %v2120, -1e+30
        %v2137 = vsel %vm1187, %v2121, -1e+30
        %v2138 = vsel %vm1188, %v2122, -1e+30
        %v2139 = vsel %vm1189, %v2123, -1e+30
        %v2140 = vsel %vm1190, %v2124, -1e+30
        %v2141 = vsel %vm1191, %v2125, -1e+30
        %2142 = vmax.xlane.f32.xlu0 %v2126
        %v2143 = vpop.xlane.xlu0 %2142
        %2144 = vmax.xlane.f32.xlu0 %v2127
        %v2145 = vpop.xlane.xlu0 %2144
        %2146 = vmax.xlane.f32.xlu0 %v2128
        %v2147 = vpop.xlane.xlu0 %2146
        %2148 = vmax.xlane.f32.xlu0 %v2129
        %v2149 = vpop.xlane.xlu0 %2148
        %2150 = vmax.xlane.f32.xlu0 %v2130
        %v2151 = vpop.xlane.xlu0 %2150
        %2152 = vmax.xlane.f32.xlu0 %v2131
        %v2153 = vpop.xlane.xlu0 %2152
        %2154 = vmax.xlane.f32.xlu0 %v2132
        %v2155 = vpop.xlane.xlu0 %2154
        %2156 = vmax.xlane.f32.xlu0 %v2133
        %v2157 = vpop.xlane.xlu0 %2156
        %2158 = vmax.xlane.f32.xlu0 %v2134
        %v2159 = vpop.xlane.xlu0 %2158
        %2160 = vmax.xlane.f32.xlu0 %v2135
        %v2161 = vpop.xlane.xlu0 %2160
        %2162 = vmax.xlane.f32.xlu0 %v2136
        %v2163 = vpop.xlane.xlu0 %2162
        %2164 = vmax.xlane.f32.xlu0 %v2137
        %v2165 = vpop.xlane.xlu0 %2164
        %2166 = vmax.xlane.f32.xlu0 %v2138
        %v2167 = vpop.xlane.xlu0 %2166
        %2168 = vmax.xlane.f32.xlu0 %v2139
        %v2169 = vpop.xlane.xlu0 %2168
        %2170 = vmax.xlane.f32.xlu0 %v2140
        %v2171 = vpop.xlane.xlu0 %2170
        %2172 = vmax.xlane.f32.xlu0 %v2141
        %v2173 = vpop.xlane.xlu0 %2172
        %v2174 = vsub.f32 %v2126, %v2143
        %v2175 = vsub.f32 %v2127, %v2145
        %v2176 = vsub.f32 %v2128, %v2147
        %v2177 = vsub.f32 %v2129, %v2149
        %v2178 = vsub.f32 %v2130, %v2151
        %v2179 = vsub.f32 %v2131, %v2153
        %v2180 = vsub.f32 %v2132, %v2155
        %v2181 = vsub.f32 %v2133, %v2157
        %v2182 = vsub.f32 %v2134, %v2159
        %v2183 = vsub.f32 %v2135, %v2161
        %v2184 = vsub.f32 %v2136, %v2163
        %v2185 = vsub.f32 %v2137, %v2165
        %v2186 = vsub.f32 %v2138, %v2167
        %v2187 = vsub.f32 %v2139, %v2169
        %v2188 = vsub.f32 %v2140, %v2171
        %v2189 = vsub.f32 %v2141, %v2173
        %v2190 = vmul.f32 %v2174, 1.442695
        %v2191 = vpow.pop %v2190
        %v2192 = vmul.f32 %v2175, 1.442695
        %v2193 = vpow.pop %v2192
        %v2194 = vmul.f32 %v2176, 1.442695
        %v2195 = vpow.pop %v2194
        %v2196 = vmul.f32 %v2177, 1.442695
        %v2197 = vpow.pop %v2196
        %v2198 = vmul.f32 %v2178, 1.442695
        %v2199 = vpow.pop %v2198
        %v2200 = vmul.f32 %v2179, 1.442695
        %v2201 = vpow.pop %v2200
        %v2202 = vmul.f32 %v2180, 1.442695
        %v2203 = vpow.pop %v2202
        %v2204 = vmul.f32 %v2181, 1.442695
        %v2205 = vpow.pop %v2204
        %v2206 = vmul.f32 %v2182, 1.442695
        %v2207 = vpow.pop %v2206
        %v2208 = vmul.f32 %v2183, 1.442695
        %v2209 = vpow.pop %v2208
        %v2210 = vmul.f32 %v2184, 1.442695
        %v2211 = vpow.pop %v2210
        %v2212 = vmul.f32 %v2185, 1.442695
        %v2213 = vpow.pop %v2212
        %v2214 = vmul.f32 %v2186, 1.442695
        %v2215 = vpow.pop %v2214
        %v2216 = vmul.f32 %v2187, 1.442695
        %v2217 = vpow.pop %v2216
        %v2218 = vmul.f32 %v2188, 1.442695
        %v2219 = vpow.pop %v2218
        %v2220 = vmul.f32 %v2189, 1.442695
        %v2221 = vpow.pop %v2220
        %2222 = vadd.xlane.f32.xlu0 %v2191
        %v2223 = vpop.xlane.xlu0 %2222
        %2224 = vadd.xlane.f32.xlu0 %v2193
        %v2225 = vpop.xlane.xlu0 %2224
        %2226 = vadd.xlane.f32.xlu0 %v2195
        %v2227 = vpop.xlane.xlu0 %2226
        %2228 = vadd.xlane.f32.xlu0 %v2197
        %v2229 = vpop.xlane.xlu0 %2228
        %2230 = vadd.xlane.f32.xlu0 %v2199
        %v2231 = vpop.xlane.xlu0 %2230
        %2232 = vadd.xlane.f32.xlu0 %v2201
        %v2233 = vpop.xlane.xlu0 %2232
        %2234 = vadd.xlane.f32.xlu0 %v2203
        %v2235 = vpop.xlane.xlu0 %2234
        %2236 = vadd.xlane.f32.xlu0 %v2205
        %v2237 = vpop.xlane.xlu0 %2236
        %2238 = vadd.xlane.f32.xlu0 %v2207
        %v2239 = vpop.xlane.xlu0 %2238
        %2240 = vadd.xlane.f32.xlu0 %v2209
        %v2241 = vpop.xlane.xlu0 %2240
        %2242 = vadd.xlane.f32.xlu0 %v2211
        %v2243 = vpop.xlane.xlu0 %2242
        %2244 = vadd.xlane.f32.xlu0 %v2213
        %v2245 = vpop.xlane.xlu0 %2244
        %2246 = vadd.xlane.f32.xlu0 %v2215
        %v2247 = vpop.xlane.xlu0 %2246
        %2248 = vadd.xlane.f32.xlu0 %v2217
        %v2249 = vpop.xlane.xlu0 %2248
        %2250 = vadd.xlane.f32.xlu0 %v2219
        %v2251 = vpop.xlane.xlu0 %2250
        %2252 = vadd.xlane.f32.xlu0 %v2221
        %v2253 = vpop.xlane.xlu0 %2252
        %v2254 = vrcp.pop %v2223
        %v2255 = vrcp.pop %v2225
        %v2256 = vrcp.pop %v2227
        %v2257 = vrcp.pop %v2229
        %v2258 = vrcp.pop %v2231
        %v2259 = vrcp.pop %v2233
        %v2260 = vrcp.pop %v2235
        %v2261 = vrcp.pop %v2237
        %v2262 = vrcp.pop %v2239
        %v2263 = vrcp.pop %v2241
        %v2264 = vrcp.pop %v2243
        %v2265 = vrcp.pop %v2245
        %v2266 = vrcp.pop %v2247
        %v2267 = vrcp.pop %v2249
        %v2268 = vrcp.pop %v2251
        %v2269 = vrcp.pop %v2253
        %v2270 = vmul.f32 %v2191, %v2254
        %v2271 = vmul.f32 %v2193, %v2255
        %v2272 = vmul.f32 %v2195, %v2256
        %v2273 = vmul.f32 %v2197, %v2257
        %v2274 = vmul.f32 %v2199, %v2258
        %v2275 = vmul.f32 %v2201, %v2259
        %v2276 = vmul.f32 %v2203, %v2260
        %v2277 = vmul.f32 %v2205, %v2261
        %v2278 = vmul.f32 %v2207, %v2262
        %v2279 = vmul.f32 %v2209, %v2263
        %v2280 = vmul.f32 %v2211, %v2264
        %v2281 = vmul.f32 %v2213, %v2265
        %v2282 = vmul.f32 %v2215, %v2266
        %v2283 = vmul.f32 %v2217, %v2267
        %v2284 = vmul.f32 %v2219, %v2268
        %v2285 = vmul.f32 %v2221, %v2269
        %v2286 = vpack.c.bf16 %v2271, %v2270
        %v2287 = vpack.c.bf16 %v2273, %v2272
        %v2288 = vpack.c.bf16 %v2275, %v2274
        %v2289 = vpack.c.bf16 %v2277, %v2276
        %v2290 = vpack.c.bf16 %v2279, %v2278
        %v2291 = vpack.c.bf16 %v2281, %v2280
        %v2292 = vpack.c.bf16 %v2283, %v2282
        %v2293 = vpack.c.bf16 %v2285, %v2284
        %2294 = vrot.lane.b32.xlu0 %v1392, 64
        %v2295 = vpop.permute.xlu0 %2294
        %2296 = vrot.lane.b32.xlu0 %v1393, 64
        %v2297 = vpop.permute.xlu0 %2296
        %2298 = vrot.lane.b32.xlu0 %v1394, 64
        %v2299 = vpop.permute.xlu0 %2298
        %2300 = vrot.lane.b32.xlu0 %v1395, 64
        %v2301 = vpop.permute.xlu0 %2300
        %2302 = vrot.lane.b32.xlu0 %v1396, 64
        %v2303 = vpop.permute.xlu0 %2302
        %2304 = vrot.lane.b32.xlu0 %v1397, 64
        %v2305 = vpop.permute.xlu0 %2304
        %2306 = vrot.lane.b32.xlu0 %v1398, 64
        %v2307 = vpop.permute.xlu0 %2306
        %2308 = vrot.lane.b32.xlu0 %v1399, 64
        %v2309 = vpop.permute.xlu0 %2308
        %2318 = vmatprep.subr.bf16.mxu0 0
        %2319 = vmatpush1.bf16.msra.mxu0 %v2309
        %2320 = vmatprep.subr.bf16.mxu0 0
        %2321 = vmatpush1.bf16.msra.mxu0 %v2307
        %2322 = vmatprep.subr.bf16.mxu0 0
        %2323 = vmatpush1.bf16.msra.mxu0 %v2305
        %2324 = vmatprep.subr.bf16.mxu0 0
        %2325 = vmatpush1.bf16.msra.mxu0 %v2303
        %2326 = vmatprep.subr.bf16.mxu0 0
        %2327 = vmatpush1.bf16.msra.mxu0 %v2301
        %2328 = vmatprep.subr.bf16.mxu0 0
        %2329 = vmatpush1.bf16.msra.mxu0 %v2299
        %2330 = vmatprep.subr.bf16.mxu0 0
        %2331 = vmatpush1.bf16.msra.mxu0 %v2297
        %2332 = vmatprep.subr.bf16.mxu0 0
        %2333 = vmatpush1.bf16.msra.mxu0 %v2295
        %2334 = vmatprep.subr.bf16.mxu0 0
        %2335 = vmatpush2.bf16.msra.mxu0 0
        %2336 = vmatprep.subr.bf16.mxu0 0
        %2337 = vmatpush2.bf16.msra.mxu0 0
        %2338 = vmatprep.subr.bf16.mxu0 0
        %2339 = vmatpush2.bf16.msra.mxu0 0
        %2340 = vmatprep.subr.bf16.mxu0 0
        %2341 = vmatpush2.bf16.msra.mxu0 0
        %2342 = vmatprep.subr.bf16.mxu0 0
        %2343 = vmatpush2.bf16.msra.mxu0 0
        %2344 = vmatprep.subr.bf16.mxu0 0
        %2345 = vmatpush2.bf16.msra.mxu0 0
        %2346 = vmatprep.subr.bf16.mxu0 0
        %2347 = vmatpush2.bf16.msra.mxu0 0
        %2348 = vmatprep.subr.bf16.mxu0 0
        %2349 = vmatpush2.bf16.msra.mxu0 0
        %2350 = vmatprep.mubr.bf16.mxu0 0
        %2351 = vmatmul.mubr.bf16.gmra.mxu0 %v2286
        %v2352 = vpop.f32.mrf.mxu0
        %v2353 = vadd.f32 0.0, %v2352
        %v2354 = vpop.f32.mrf.mxu0
        %v2355 = vpop.f32.mrf.mxu0
        %v2356 = vadd.f32 0.0, %v2355
        %v2357 = vpop.f32.mrf.mxu0
        %2358 = vmatprep.mubr.bf16.mxu0 0
        %2359 = vmatmul.mubr.bf16.gmra.mxu0 %v2287
        %v2360 = vpop.f32.mrf.mxu0
        %v2361 = vadd.f32 0.0, %v2360
        %v2362 = vpop.f32.mrf.mxu0
        %v2363 = vpop.f32.mrf.mxu0
        %v2364 = vadd.f32 0.0, %v2363
        %v2365 = vpop.f32.mrf.mxu0
        %2366 = vmatprep.mubr.bf16.mxu0 0
        %2367 = vmatmul.mubr.bf16.gmra.mxu0 %v2288
        %v2368 = vpop.f32.mrf.mxu0
        %v2369 = vadd.f32 0.0, %v2368
        %v2370 = vpop.f32.mrf.mxu0
        %v2371 = vpop.f32.mrf.mxu0
        %v2372 = vadd.f32 0.0, %v2371
        %v2373 = vpop.f32.mrf.mxu0
        %2374 = vmatprep.mubr.bf16.mxu0 0
        %2375 = vmatmul.mubr.bf16.gmra.mxu0 %v2289
        %v2376 = vpop.f32.mrf.mxu0
        %v2377 = vadd.f32 0.0, %v2376
        %v2378 = vpop.f32.mrf.mxu0
        %v2379 = vpop.f32.mrf.mxu0
        %v2380 = vadd.f32 0.0, %v2379
        %v2381 = vpop.f32.mrf.mxu0
        %2382 = vmatprep.mubr.bf16.mxu0 0
        %2383 = vmatmul.mubr.bf16.gmra.mxu0 %v2290
        %v2384 = vpop.f32.mrf.mxu0
        %v2385 = vadd.f32 0.0, %v2384
        %v2386 = vpop.f32.mrf.mxu0
        %v2387 = vpop.f32.mrf.mxu0
        %v2388 = vadd.f32 0.0, %v2387
        %v2389 = vpop.f32.mrf.mxu0
        %2390 = vmatprep.mubr.bf16.mxu0 0
        %2391 = vmatmul.mubr.bf16.gmra.mxu0 %v2291
        %v2392 = vpop.f32.mrf.mxu0
        %v2393 = vadd.f32 0.0, %v2392
        %v2394 = vpop.f32.mrf.mxu0
        %v2395 = vpop.f32.mrf.mxu0
        %v2396 = vadd.f32 0.0, %v2395
        %v2397 = vpop.f32.mrf.mxu0
        %2398 = vmatprep.mubr.bf16.mxu0 0
        %2399 = vmatmul.mubr.bf16.gmra.mxu0 %v2292
        %v2400 = vpop.f32.mrf.mxu0
        %v2401 = vadd.f32 0.0, %v2400
        %v2402 = vpop.f32.mrf.mxu0
        %v2403 = vpop.f32.mrf.mxu0
        %v2404 = vadd.f32 0.0, %v2403
        %v2405 = vpop.f32.mrf.mxu0
        %2406 = vmatprep.mubr.bf16.mxu0 0
        %2407 = vmatmul.mubr.bf16.gmra.mxu0 %v2293
        %v2408 = vpop.f32.mrf.mxu0
        %v2409 = vadd.f32 0.0, %v2408
        %v2410 = vpop.f32.mrf.mxu0
        %v2411 = vpop.f32.mrf.mxu0
        %v2412 = vadd.f32 0.0, %v2411
        %v2413 = vpop.f32.mrf.mxu0
        %2414 = vdwg.mxu0
        %2431 = vrot.lane.b32.xlu0 %v2353, 64
        %v2432 = vpop.permute.xlu0 %2431
        %2433 = vrot.lane.b32.xlu0 %v2356, 64
        %v2434 = vpop.permute.xlu0 %2433
        %2435 = vrot.lane.b32.xlu0 %v2361, 64
        %v2436 = vpop.permute.xlu0 %2435
        %2437 = vrot.lane.b32.xlu0 %v2364, 64
        %v2438 = vpop.permute.xlu0 %2437
        %2439 = vrot.lane.b32.xlu0 %v2369, 64
        %v2440 = vpop.permute.xlu0 %2439
        %2441 = vrot.lane.b32.xlu0 %v2372, 64
        %v2442 = vpop.permute.xlu0 %2441
        %2443 = vrot.lane.b32.xlu0 %v2377, 64
        %v2444 = vpop.permute.xlu0 %2443
        %2445 = vrot.lane.b32.xlu0 %v2380, 64
        %v2446 = vpop.permute.xlu0 %2445
        %2447 = vrot.lane.b32.xlu0 %v2385, 64
        %v2448 = vpop.permute.xlu0 %2447
        %2449 = vrot.lane.b32.xlu0 %v2388, 64
        %v2450 = vpop.permute.xlu0 %2449
        %2451 = vrot.lane.b32.xlu0 %v2393, 64
        %v2452 = vpop.permute.xlu0 %2451
        %2453 = vrot.lane.b32.xlu0 %v2396, 64
        %v2454 = vpop.permute.xlu0 %2453
        %2455 = vrot.lane.b32.xlu0 %v2401, 64
        %v2456 = vpop.permute.xlu0 %2455
        %2457 = vrot.lane.b32.xlu0 %v2404, 64
        %v2458 = vpop.permute.xlu0 %2457
        %2459 = vrot.lane.b32.xlu0 %v2409, 64
        %v2460 = vpop.permute.xlu0 %2459
        %2461 = vrot.lane.b32.xlu0 %v2412, 64
        %v2462 = vpop.permute.xlu0 %2461
        %vm2479 = vcmask 785920
        %2480 = vst.msk [vmem:[#allocation5] sm:$0xff] %vm2479, %v2432
        %2481 = vst.msk [vmem:[#allocation5 + $0x8] sm:$0xff] %vm2479, %v2434
        %2482 = vst.msk [vmem:[#allocation5 + $0x10] sm:$0xff] %vm2479, %v2436
        %2483 = vst.msk [vmem:[#allocation5 + $0x18] sm:$0xff] %vm2479, %v2438
        %2484 = vst.msk [vmem:[#allocation5 + $0x20] sm:$0xff] %vm2479, %v2440
        %2485 = vst.msk [vmem:[#allocation5 + $0x28] sm:$0xff] %vm2479, %v2442
        %2486 = vst.msk [vmem:[#allocation5 + $0x30] sm:$0xff] %vm2479, %v2444
        %2487 = vst.msk [vmem:[#allocation5 + $0x38] sm:$0xff] %vm2479, %v2446
        %2488 = vst.msk [vmem:[#allocation5 + $0x40] sm:$0xff] %vm2479, %v2448
        %2489 = vst.msk [vmem:[#allocation5 + $0x48] sm:$0xff] %vm2479, %v2450
        %2490 = vst.msk [vmem:[#allocation5 + $0x50] sm:$0xff] %vm2479, %v2452
        %2491 = vst.msk [vmem:[#allocation5 + $0x58] sm:$0xff] %vm2479, %v2454
        %2492 = vst.msk [vmem:[#allocation5 + $0x60] sm:$0xff] %vm2479, %v2456
        %2493 = vst.msk [vmem:[#allocation5 + $0x68] sm:$0xff] %vm2479, %v2458
        %2494 = vst.msk [vmem:[#allocation5 + $0x70] sm:$0xff] %vm2479, %v2460
        %2495 = vst.msk [vmem:[#allocation5 + $0x78] sm:$0xff] %vm2479, %v2462
        %v2496 = vld [vmem:[#allocation4 + $0x3] sm:$0x1]
        %2497 = vset.pattern.permute.xlu0 3
        %2498 = vperm.xlu0 %2497, %v903
        %v2499 = vpop.permute.xlu0 %2498
        %2501 = vset.pattern.permute.xlu0 3
        %2502 = vperm.xlu0 %2501, %v904
        %v2503 = vpop.permute.xlu0 %2502
        %2505 = vset.pattern.permute.xlu0 3
        %2506 = vperm.xlu0 %2505, %v905
        %v2507 = vpop.permute.xlu0 %2506
        %2509 = vset.pattern.permute.xlu0 3
        %2510 = vperm.xlu0 %2509, %v906
        %v2511 = vpop.permute.xlu0 %2510
        %2513 = vset.pattern.permute.xlu0 3
        %2514 = vperm.xlu0 %2513, %v907
        %v2515 = vpop.permute.xlu0 %2514
        %2517 = vset.pattern.permute.xlu0 3
        %2518 = vperm.xlu0 %2517, %v908
        %v2519 = vpop.permute.xlu0 %2518
        %2521 = vset.pattern.permute.xlu0 3
        %2522 = vperm.xlu0 %2521, %v909
        %v2523 = vpop.permute.xlu0 %2522
        %2525 = vset.pattern.permute.xlu0 3
        %2526 = vperm.xlu0 %2525, %v910
        %v2527 = vpop.permute.xlu0 %2526
        %2529 = vset.pattern.permute.xlu0 3
        %2530 = vperm.xlu0 %2529, %v911
        %v2531 = vpop.permute.xlu0 %2530
        %2533 = vset.pattern.permute.xlu0 3
        %2534 = vperm.xlu0 %2533, %v912
        %v2535 = vpop.permute.xlu0 %2534
        %2537 = vset.pattern.permute.xlu0 3
        %2538 = vperm.xlu0 %2537, %v913
        %v2539 = vpop.permute.xlu0 %2538
        %2541 = vset.pattern.permute.xlu0 3
        %2542 = vperm.xlu0 %2541, %v914
        %v2543 = vpop.permute.xlu0 %2542
        %2545 = vset.pattern.permute.xlu0 3
        %2546 = vperm.xlu0 %2545, %v915
        %v2547 = vpop.permute.xlu0 %2546
        %2549 = vset.pattern.permute.xlu0 3
        %2550 = vperm.xlu0 %2549, %v916
        %v2551 = vpop.permute.xlu0 %2550
        %2553 = vset.pattern.permute.xlu0 3
        %2554 = vperm.xlu0 %2553, %v917
        %v2555 = vpop.permute.xlu0 %2554
        %2557 = vset.pattern.permute.xlu0 3
        %2558 = vperm.xlu0 %2557, %v918
        %v2559 = vpop.permute.xlu0 %2558
        %v2561 = vlaneseq
        %v2562 = vshrl.u32 %v2561, 7
        %v2563 = vsub.s32 0, %v2562
        %v2564 = vrot.slane %v2496, %v2563
        %v2565 = vadd.f32 %v2499, %v2564
        %v2566 = vadd.f32 %v2503, %v2564
        %v2567 = vadd.f32 %v2507, %v2564
        %v2568 = vadd.f32 %v2511, %v2564
        %v2569 = vadd.f32 %v2515, %v2564
        %v2570 = vadd.f32 %v2519, %v2564
        %v2571 = vadd.f32 %v2523, %v2564
        %v2572 = vadd.f32 %v2527, %v2564
        %v2573 = vadd.f32 %v2531, %v2564
        %v2574 = vadd.f32 %v2535, %v2564
        %v2575 = vadd.f32 %v2539, %v2564
        %v2576 = vadd.f32 %v2543, %v2564
        %v2577 = vadd.f32 %v2547, %v2564
        %v2578 = vadd.f32 %v2551, %v2564
        %v2579 = vadd.f32 %v2555, %v2564
        %v2580 = vadd.f32 %v2559, %v2564
        %v2581 = vmul.f32 %v2565, 0.2
        %v2582 = vmul.f32 %v2566, 0.2
        %v2583 = vmul.f32 %v2567, 0.2
        %v2584 = vmul.f32 %v2568, 0.2
        %v2585 = vmul.f32 %v2569, 0.2
        %v2586 = vmul.f32 %v2570, 0.2
        %v2587 = vmul.f32 %v2571, 0.2
        %v2588 = vmul.f32 %v2572, 0.2
        %v2589 = vmul.f32 %v2573, 0.2
        %v2590 = vmul.f32 %v2574, 0.2
        %v2591 = vmul.f32 %v2575, 0.2
        %v2592 = vmul.f32 %v2576, 0.2
        %v2593 = vmul.f32 %v2577, 0.2
        %v2594 = vmul.f32 %v2578, 0.2
        %v2595 = vmul.f32 %v2579, 0.2
        %v2596 = vmul.f32 %v2580, 0.2
        %v2597 = vmax.f32 %v2565, %v2581
        %v2598 = vmax.f32 %v2566, %v2582
        %v2599 = vmax.f32 %v2567, %v2583
        %v2600 = vmax.f32 %v2568, %v2584
        %v2601 = vmax.f32 %v2569, %v2585
        %v2602 = vmax.f32 %v2570, %v2586
        %v2603 = vmax.f32 %v2571, %v2587
        %v2604 = vmax.f32 %v2572, %v2588
        %v2605 = vmax.f32 %v2573, %v2589
        %v2606 = vmax.f32 %v2574, %v2590
        %v2607 = vmax.f32 %v2575, %v2591
        %v2608 = vmax.f32 %v2576, %v2592
        %v2609 = vmax.f32 %v2577, %v2593
        %v2610 = vmax.f32 %v2578, %v2594
        %v2611 = vmax.f32 %v2579, %v2595
        %v2612 = vmax.f32 %v2580, %v2596
        %v2613 = vsel %vm1176, %v2597, -1e+30
        %v2614 = vsel %vm1177, %v2598, -1e+30
        %v2615 = vsel %vm1178, %v2599, -1e+30
        %v2616 = vsel %vm1179, %v2600, -1e+30
        %v2617 = vsel %vm1180, %v2601, -1e+30
        %v2618 = vsel %vm1181, %v2602, -1e+30
        %v2619 = vsel %vm1182, %v2603, -1e+30
        %v2620 = vsel %vm1183, %v2604, -1e+30
        %v2621 = vsel %vm1184, %v2605, -1e+30
        %v2622 = vsel %vm1185, %v2606, -1e+30
        %v2623 = vsel %vm1186, %v2607, -1e+30
        %v2624 = vsel %vm1187, %v2608, -1e+30
        %v2625 = vsel %vm1188, %v2609, -1e+30
        %v2626 = vsel %vm1189, %v2610, -1e+30
        %v2627 = vsel %vm1190, %v2611, -1e+30
        %v2628 = vsel %vm1191, %v2612, -1e+30
        %2629 = vmax.xlane.f32.xlu0 %v2613
        %v2630 = vpop.xlane.xlu0 %2629
        %2631 = vmax.xlane.f32.xlu0 %v2614
        %v2632 = vpop.xlane.xlu0 %2631
        %2633 = vmax.xlane.f32.xlu0 %v2615
        %v2634 = vpop.xlane.xlu0 %2633
        %2635 = vmax.xlane.f32.xlu0 %v2616
        %v2636 = vpop.xlane.xlu0 %2635
        %2637 = vmax.xlane.f32.xlu0 %v2617
        %v2638 = vpop.xlane.xlu0 %2637
        %2639 = vmax.xlane.f32.xlu0 %v2618
        %v2640 = vpop.xlane.xlu0 %2639
        %2641 = vmax.xlane.f32.xlu0 %v2619
        %v2642 = vpop.xlane.xlu0 %2641
        %2643 = vmax.xlane.f32.xlu0 %v2620
        %v2644 = vpop.xlane.xlu0 %2643
        %2645 = vmax.xlane.f32.xlu0 %v2621
        %v2646 = vpop.xlane.xlu0 %2645
        %2647 = vmax.xlane.f32.xlu0 %v2622
        %v2648 = vpop.xlane.xlu0 %2647
        %2649 = vmax.xlane.f32.xlu0 %v2623
        %v2650 = vpop.xlane.xlu0 %2649
        %2651 = vmax.xlane.f32.xlu0 %v2624
        %v2652 = vpop.xlane.xlu0 %2651
        %2653 = vmax.xlane.f32.xlu0 %v2625
        %v2654 = vpop.xlane.xlu0 %2653
        %2655 = vmax.xlane.f32.xlu0 %v2626
        %v2656 = vpop.xlane.xlu0 %2655
        %2657 = vmax.xlane.f32.xlu0 %v2627
        %v2658 = vpop.xlane.xlu0 %2657
        %2659 = vmax.xlane.f32.xlu0 %v2628
        %v2660 = vpop.xlane.xlu0 %2659
        %v2661 = vsub.f32 %v2613, %v2630
        %v2662 = vsub.f32 %v2614, %v2632
        %v2663 = vsub.f32 %v2615, %v2634
        %v2664 = vsub.f32 %v2616, %v2636
        %v2665 = vsub.f32 %v2617, %v2638
        %v2666 = vsub.f32 %v2618, %v2640
        %v2667 = vsub.f32 %v2619, %v2642
        %v2668 = vsub.f32 %v2620, %v2644
        %v2669 = vsub.f32 %v2621, %v2646
        %v2670 = vsub.f32 %v2622, %v2648
        %v2671 = vsub.f32 %v2623, %v2650
        %v2672 = vsub.f32 %v2624, %v2652
        %v2673 = vsub.f32 %v2625, %v2654
        %v2674 = vsub.f32 %v2626, %v2656
        %v2675 = vsub.f32 %v2627, %v2658
        %v2676 = vsub.f32 %v2628, %v2660
        %v2677 = vmul.f32 %v2661, 1.442695
        %v2678 = vpow.pop %v2677
        %v2679 = vmul.f32 %v2662, 1.442695
        %v2680 = vpow.pop %v2679
        %v2681 = vmul.f32 %v2663, 1.442695
        %v2682 = vpow.pop %v2681
        %v2683 = vmul.f32 %v2664, 1.442695
        %v2684 = vpow.pop %v2683
        %v2685 = vmul.f32 %v2665, 1.442695
        %v2686 = vpow.pop %v2685
        %v2687 = vmul.f32 %v2666, 1.442695
        %v2688 = vpow.pop %v2687
        %v2689 = vmul.f32 %v2667, 1.442695
        %v2690 = vpow.pop %v2689
        %v2691 = vmul.f32 %v2668, 1.442695
        %v2692 = vpow.pop %v2691
        %v2693 = vmul.f32 %v2669, 1.442695
        %v2694 = vpow.pop %v2693
        %v2695 = vmul.f32 %v2670, 1.442695
        %v2696 = vpow.pop %v2695
        %v2697 = vmul.f32 %v2671, 1.442695
        %v2698 = vpow.pop %v2697
        %v2699 = vmul.f32 %v2672, 1.442695
        %v2700 = vpow.pop %v2699
        %v2701 = vmul.f32 %v2673, 1.442695
        %v2702 = vpow.pop %v2701
        %v2703 = vmul.f32 %v2674, 1.442695
        %v2704 = vpow.pop %v2703
        %v2705 = vmul.f32 %v2675, 1.442695
        %v2706 = vpow.pop %v2705
        %v2707 = vmul.f32 %v2676, 1.442695
        %v2708 = vpow.pop %v2707
        %2709 = vadd.xlane.f32.xlu0 %v2678
        %v2710 = vpop.xlane.xlu0 %2709
        %2711 = vadd.xlane.f32.xlu0 %v2680
        %v2712 = vpop.xlane.xlu0 %2711
        %2713 = vadd.xlane.f32.xlu0 %v2682
        %v2714 = vpop.xlane.xlu0 %2713
        %2715 = vadd.xlane.f32.xlu0 %v2684
        %v2716 = vpop.xlane.xlu0 %2715
        %2717 = vadd.xlane.f32.xlu0 %v2686
        %v2718 = vpop.xlane.xlu0 %2717
        %2719 = vadd.xlane.f32.xlu0 %v2688
        %v2720 = vpop.xlane.xlu0 %2719
        %2721 = vadd.xlane.f32.xlu0 %v2690
        %v2722 = vpop.xlane.xlu0 %2721
        %2723 = vadd.xlane.f32.xlu0 %v2692
        %v2724 = vpop.xlane.xlu0 %2723
        %2725 = vadd.xlane.f32.xlu0 %v2694
        %v2726 = vpop.xlane.xlu0 %2725
        %2727 = vadd.xlane.f32.xlu0 %v2696
        %v2728 = vpop.xlane.xlu0 %2727
        %2729 = vadd.xlane.f32.xlu0 %v2698
        %v2730 = vpop.xlane.xlu0 %2729
        %2731 = vadd.xlane.f32.xlu0 %v2700
        %v2732 = vpop.xlane.xlu0 %2731
        %2733 = vadd.xlane.f32.xlu0 %v2702
        %v2734 = vpop.xlane.xlu0 %2733
        %2735 = vadd.xlane.f32.xlu0 %v2704
        %v2736 = vpop.xlane.xlu0 %2735
        %2737 = vadd.xlane.f32.xlu0 %v2706
        %v2738 = vpop.xlane.xlu0 %2737
        %2739 = vadd.xlane.f32.xlu0 %v2708
        %v2740 = vpop.xlane.xlu0 %2739
        %v2741 = vrcp.pop %v2710
        %v2742 = vrcp.pop %v2712
        %v2743 = vrcp.pop %v2714
        %v2744 = vrcp.pop %v2716
        %v2745 = vrcp.pop %v2718
        %v2746 = vrcp.pop %v2720
        %v2747 = vrcp.pop %v2722
        %v2748 = vrcp.pop %v2724
        %v2749 = vrcp.pop %v2726
        %v2750 = vrcp.pop %v2728
        %v2751 = vrcp.pop %v2730
        %v2752 = vrcp.pop %v2732
        %v2753 = vrcp.pop %v2734
        %v2754 = vrcp.pop %v2736
        %v2755 = vrcp.pop %v2738
        %v2756 = vrcp.pop %v2740
        %v2757 = vmul.f32 %v2678, %v2741
        %v2758 = vmul.f32 %v2680, %v2742
        %v2759 = vmul.f32 %v2682, %v2743
        %v2760 = vmul.f32 %v2684, %v2744
        %v2761 = vmul.f32 %v2686, %v2745
        %v2762 = vmul.f32 %v2688, %v2746
        %v2763 = vmul.f32 %v2690, %v2747
        %v2764 = vmul.f32 %v2692, %v2748
        %v2765 = vmul.f32 %v2694, %v2749
        %v2766 = vmul.f32 %v2696, %v2750
        %v2767 = vmul.f32 %v2698, %v2751
        %v2768 = vmul.f32 %v2700, %v2752
        %v2769 = vmul.f32 %v2702, %v2753
        %v2770 = vmul.f32 %v2704, %v2754
        %v2771 = vmul.f32 %v2706, %v2755
        %v2772 = vmul.f32 %v2708, %v2756
        %v2773 = vpack.c.bf16 %v2758, %v2757
        %v2774 = vpack.c.bf16 %v2760, %v2759
        %v2775 = vpack.c.bf16 %v2762, %v2761
        %v2776 = vpack.c.bf16 %v2764, %v2763
        %v2777 = vpack.c.bf16 %v2766, %v2765
        %v2778 = vpack.c.bf16 %v2768, %v2767
        %v2779 = vpack.c.bf16 %v2770, %v2769
        %v2780 = vpack.c.bf16 %v2772, %v2771
        %2781 = vrot.lane.b32.xlu0 %v1392, 32
        %v2782 = vpop.permute.xlu0 %2781
        %2783 = vrot.lane.b32.xlu0 %v1393, 32
        %v2784 = vpop.permute.xlu0 %2783
        %2785 = vrot.lane.b32.xlu0 %v1394, 32
        %v2786 = vpop.permute.xlu0 %2785
        %2787 = vrot.lane.b32.xlu0 %v1395, 32
        %v2788 = vpop.permute.xlu0 %2787
        %2789 = vrot.lane.b32.xlu0 %v1396, 32
        %v2790 = vpop.permute.xlu0 %2789
        %2791 = vrot.lane.b32.xlu0 %v1397, 32
        %v2792 = vpop.permute.xlu0 %2791
        %2793 = vrot.lane.b32.xlu0 %v1398, 32
        %v2794 = vpop.permute.xlu0 %2793
        %2795 = vrot.lane.b32.xlu0 %v1399, 32
        %v2796 = vpop.permute.xlu0 %2795
        %2805 = vmatprep.subr.bf16.mxu0 0
        %2806 = vmatpush1.bf16.msra.mxu0 %v2796
        %2807 = vmatprep.subr.bf16.mxu0 0
        %2808 = vmatpush1.bf16.msra.mxu0 %v2794
        %2809 = vmatprep.subr.bf16.mxu0 0
        %2810 = vmatpush1.bf16.msra.mxu0 %v2792
        %2811 = vmatprep.subr.bf16.mxu0 0
        %2812 = vmatpush1.bf16.msra.mxu0 %v2790
        %2813 = vmatprep.subr.bf16.mxu0 0
        %2814 = vmatpush1.bf16.msra.mxu0 %v2788
        %2815 = vmatprep.subr.bf16.mxu0 0
        %2816 = vmatpush1.bf16.msra.mxu0 %v2786
        %2817 = vmatprep.subr.bf16.mxu0 0
        %2818 = vmatpush1.bf16.msra.mxu0 %v2784
        %2819 = vmatprep.subr.bf16.mxu0 0
        %2820 = vmatpush1.bf16.msra.mxu0 %v2782
        %2821 = vmatprep.subr.bf16.mxu0 0
        %2822 = vmatpush2.bf16.msra.mxu0 0
        %2823 = vmatprep.subr.bf16.mxu0 0
        %2824 = vmatpush2.bf16.msra.mxu0 0
        %2825 = vmatprep.subr.bf16.mxu0 0
        %2826 = vmatpush2.bf16.msra.mxu0 0
        %2827 = vmatprep.subr.bf16.mxu0 0
        %2828 = vmatpush2.bf16.msra.mxu0 0
        %2829 = vmatprep.subr.bf16.mxu0 0
        %2830 = vmatpush2.bf16.msra.mxu0 0
        %2831 = vmatprep.subr.bf16.mxu0 0
        %2832 = vmatpush2.bf16.msra.mxu0 0
        %2833 = vmatprep.subr.bf16.mxu0 0
        %2834 = vmatpush2.bf16.msra.mxu0 0
        %2835 = vmatprep.subr.bf16.mxu0 0
        %2836 = vmatpush2.bf16.msra.mxu0 0
        %2837 = vmatprep.mubr.bf16.mxu0 0
        %2838 = vmatmul.mubr.bf16.gmra.mxu0 %v2773
        %v2839 = vpop.f32.mrf.mxu0
        %v2840 = vadd.f32 0.0, %v2839
        %v2841 = vpop.f32.mrf.mxu0
        %v2842 = vpop.f32.mrf.mxu0
        %v2843 = vadd.f32 0.0, %v2842
        %v2844 = vpop.f32.mrf.mxu0
        %2845 = vmatprep.mubr.bf16.mxu0 0
        %2846 = vmatmul.mubr.bf16.gmra.mxu0 %v2774
        %v2847 = vpop.f32.mrf.mxu0
        %v2848 = vadd.f32 0.0, %v2847
        %v2849 = vpop.f32.mrf.mxu0
        %v2850 = vpop.f32.mrf.mxu0
        %v2851 = vadd.f32 0.0, %v2850
        %v2852 = vpop.f32.mrf.mxu0
        %2853 = vmatprep.mubr.bf16.mxu0 0
        %2854 = vmatmul.mubr.bf16.gmra.mxu0 %v2775
        %v2855 = vpop.f32.mrf.mxu0
        %v2856 = vadd.f32 0.0, %v2855
        %v2857 = vpop.f32.mrf.mxu0
        %v2858 = vpop.f32.mrf.mxu0
        %v2859 = vadd.f32 0.0, %v2858
        %v2860 = vpop.f32.mrf.mxu0
        %2861 = vmatprep.mubr.bf16.mxu0 0
        %2862 = vmatmul.mubr.bf16.gmra.mxu0 %v2776
        %v2863 = vpop.f32.mrf.mxu0
        %v2864 = vadd.f32 0.0, %v2863
        %v2865 = vpop.f32.mrf.mxu0
        %v2866 = vpop.f32.mrf.mxu0
        %v2867 = vadd.f32 0.0, %v2866
        %v2868 = vpop.f32.mrf.mxu0
        %2869 = vmatprep.mubr.bf16.mxu0 0
        %2870 = vmatmul.mubr.bf16.gmra.mxu0 %v2777
        %v2871 = vpop.f32.mrf.mxu0
        %v2872 = vadd.f32 0.0, %v2871
        %v2873 = vpop.f32.mrf.mxu0
        %v2874 = vpop.f32.mrf.mxu0
        %v2875 = vadd.f32 0.0, %v2874
        %v2876 = vpop.f32.mrf.mxu0
        %2877 = vmatprep.mubr.bf16.mxu0 0
        %2878 = vmatmul.mubr.bf16.gmra.mxu0 %v2778
        %v2879 = vpop.f32.mrf.mxu0
        %v2880 = vadd.f32 0.0, %v2879
        %v2881 = vpop.f32.mrf.mxu0
        %v2882 = vpop.f32.mrf.mxu0
        %v2883 = vadd.f32 0.0, %v2882
        %v2884 = vpop.f32.mrf.mxu0
        %2885 = vmatprep.mubr.bf16.mxu0 0
        %2886 = vmatmul.mubr.bf16.gmra.mxu0 %v2779
        %v2887 = vpop.f32.mrf.mxu0
        %v2888 = vadd.f32 0.0, %v2887
        %v2889 = vpop.f32.mrf.mxu0
        %v2890 = vpop.f32.mrf.mxu0
        %v2891 = vadd.f32 0.0, %v2890
        %v2892 = vpop.f32.mrf.mxu0
        %2893 = vmatprep.mubr.bf16.mxu0 0
        %2894 = vmatmul.mubr.bf16.gmra.mxu0 %v2780
        %v2895 = vpop.f32.mrf.mxu0
        %v2896 = vadd.f32 0.0, %v2895
        %v2897 = vpop.f32.mrf.mxu0
        %v2898 = vpop.f32.mrf.mxu0
        %v2899 = vadd.f32 0.0, %v2898
        %v2900 = vpop.f32.mrf.mxu0
        %2901 = vdwg.mxu0
        %2918 = vrot.lane.b32.xlu0 %v2840, 96
        %v2919 = vpop.permute.xlu0 %2918
        %2920 = vrot.lane.b32.xlu0 %v2843, 96
        %v2921 = vpop.permute.xlu0 %2920
        %2922 = vrot.lane.b32.xlu0 %v2848, 96
        %v2923 = vpop.permute.xlu0 %2922
        %2924 = vrot.lane.b32.xlu0 %v2851, 96
        %v2925 = vpop.permute.xlu0 %2924
        %2926 = vrot.lane.b32.xlu0 %v2856, 96
        %v2927 = vpop.permute.xlu0 %2926
        %2928 = vrot.lane.b32.xlu0 %v2859, 96
        %v2929 = vpop.permute.xlu0 %2928
        %2930 = vrot.lane.b32.xlu0 %v2864, 96
        %v2931 = vpop.permute.xlu0 %2930
        %2932 = vrot.lane.b32.xlu0 %v2867, 96
        %v2933 = vpop.permute.xlu0 %2932
        %2934 = vrot.lane.b32.xlu0 %v2872, 96
        %v2935 = vpop.permute.xlu0 %2934
        %2936 = vrot.lane.b32.xlu0 %v2875, 96
        %v2937 = vpop.permute.xlu0 %2936
        %2938 = vrot.lane.b32.xlu0 %v2880, 96
        %v2939 = vpop.permute.xlu0 %2938
        %2940 = vrot.lane.b32.xlu0 %v2883, 96
        %v2941 = vpop.permute.xlu0 %2940
        %2942 = vrot.lane.b32.xlu0 %v2888, 96
        %v2943 = vpop.permute.xlu0 %2942
        %2944 = vrot.lane.b32.xlu0 %v2891, 96
        %v2945 = vpop.permute.xlu0 %2944
        %2946 = vrot.lane.b32.xlu0 %v2896, 96
        %v2947 = vpop.permute.xlu0 %2946
        %2948 = vrot.lane.b32.xlu0 %v2899, 96
        %v2949 = vpop.permute.xlu0 %2948
        %vm2966 = vcmask 1048320
        %2967 = vst.msk [vmem:[#allocation5] sm:$0xff] %vm2966, %v2919
        %2968 = vst.msk [vmem:[#allocation5 + $0x8] sm:$0xff] %vm2966, %v2921
        %2969 = vst.msk [vmem:[#allocation5 + $0x10] sm:$0xff] %vm2966, %v2923
        %2970 = vst.msk [vmem:[#allocation5 + $0x18] sm:$0xff] %vm2966, %v2925
        %2971 = vst.msk [vmem:[#allocation5 + $0x20] sm:$0xff] %vm2966, %v2927
        %2972 = vst.msk [vmem:[#allocation5 + $0x28] sm:$0xff] %vm2966, %v2929
        %2973 = vst.msk [vmem:[#allocation5 + $0x30] sm:$0xff] %vm2966, %v2931
        %2974 = vst.msk [vmem:[#allocation5 + $0x38] sm:$0xff] %vm2966, %v2933
        %2975 = vst.msk [vmem:[#allocation5 + $0x40] sm:$0xff] %vm2966, %v2935
        %2976 = vst.msk [vmem:[#allocation5 + $0x48] sm:$0xff] %vm2966, %v2937
        %2977 = vst.msk [vmem:[#allocation5 + $0x50] sm:$0xff] %vm2966, %v2939
        %2978 = vst.msk [vmem:[#allocation5 + $0x58] sm:$0xff] %vm2966, %v2941
        %2979 = vst.msk [vmem:[#allocation5 + $0x60] sm:$0xff] %vm2966, %v2943
        %2980 = vst.msk [vmem:[#allocation5 + $0x68] sm:$0xff] %vm2966, %v2945
        %2981 = vst.msk [vmem:[#allocation5 + $0x70] sm:$0xff] %vm2966, %v2947
        %2982 = vst.msk [vmem:[#allocation5 + $0x78] sm:$0xff] %vm2966, %v2949
        %v2983 = vld [vmem:[#allocation5] sm:$0xff]
        %v2984 = vld [vmem:[#allocation5 + $0x8] sm:$0xff]
        %v2985 = vld [vmem:[#allocation5 + $0x10] sm:$0xff]
        %v2986 = vld [vmem:[#allocation5 + $0x18] sm:$0xff]
        %v2987 = vld [vmem:[#allocation5 + $0x20] sm:$0xff]
        %v2988 = vld [vmem:[#allocation5 + $0x28] sm:$0xff]
        %v2989 = vld [vmem:[#allocation5 + $0x30] sm:$0xff]
        %v2990 = vld [vmem:[#allocation5 + $0x38] sm:$0xff]
        %v2991 = vld [vmem:[#allocation5 + $0x40] sm:$0xff]
        %v2992 = vld [vmem:[#allocation5 + $0x48] sm:$0xff]
        %v2993 = vld [vmem:[#allocation5 + $0x50] sm:$0xff]
        %v2994 = vld [vmem:[#allocation5 + $0x58] sm:$0xff]
        %v2995 = vld [vmem:[#allocation5 + $0x60] sm:$0xff]
        %v2996 = vld [vmem:[#allocation5 + $0x68] sm:$0xff]
        %v2997 = vld [vmem:[#allocation5 + $0x70] sm:$0xff]
        %v2998 = vld [vmem:[#allocation5 + $0x78] sm:$0xff]
        %v2999 = vld [vmem:[%s4] sm:$0x1]
        %v3001 = vlaneseq
        %v3002 = vshrl.u32 %v3001, 7
        %v3003 = vsub.s32 0, %v3002
        %v3004 = vrot.slane %v2999, %v3003
        %v3006 = vadd.f32 %v2983, %v3004
        %v3007 = vadd.f32 %v2984, %v3004
        %v3008 = vadd.f32 %v2985, %v3004
        %v3009 = vadd.f32 %v2986, %v3004
        %v3010 = vadd.f32 %v2987, %v3004
        %v3011 = vadd.f32 %v2988, %v3004
        %v3012 = vadd.f32 %v2989, %v3004
        %v3013 = vadd.f32 %v2990, %v3004
        %v3014 = vadd.f32 %v2991, %v3004
        %v3015 = vadd.f32 %v2992, %v3004
        %v3016 = vadd.f32 %v2993, %v3004
        %v3017 = vadd.f32 %v2994, %v3004
        %v3018 = vadd.f32 %v2995, %v3004
        %v3019 = vadd.f32 %v2996, %v3004
        %v3020 = vadd.f32 %v2997, %v3004
        %v3021 = vadd.f32 %v2998, %v3004
        %3022 = vst [vmem:[%s290] sm:$0xff] %v3006
        %3023 = vst [vmem:[%s290 + $0x8] sm:$0xff] %v3007
        %3024 = vst [vmem:[%s290 + $0x10] sm:$0xff] %v3008
        %3025 = vst [vmem:[%s290 + $0x18] sm:$0xff] %v3009
        %3026 = vst [vmem:[%s290 + $0x20] sm:$0xff] %v3010
        %3027 = vst [vmem:[%s290 + $0x28] sm:$0xff] %v3011
        %3028 = vst [vmem:[%s290 + $0x30] sm:$0xff] %v3012
        %3029 = vst [vmem:[%s290 + $0x38] sm:$0xff] %v3013
        %3030 = vst [vmem:[%s290 + $0x40] sm:$0xff] %v3014
        %3031 = vst [vmem:[%s290 + $0x48] sm:$0xff] %v3015
        %3032 = vst [vmem:[%s290 + $0x50] sm:$0xff] %v3016
        %3033 = vst [vmem:[%s290 + $0x58] sm:$0xff] %v3017
        %3034 = vst [vmem:[%s290 + $0x60] sm:$0xff] %v3018
        %3035 = vst [vmem:[%s290 + $0x68] sm:$0xff] %v3019
        %3036 = vst [vmem:[%s290 + $0x70] sm:$0xff] %v3020
        %3037 = vst [vmem:[%s290 + $0x78] sm:$0xff] %v3021
        %s3038 = sand.u32 %s162, 1
        %s3039 = scalar_lea.sflag [#allocation8], %s3038
        %s3040 = sand.u32 %s162, 1
        %s3041 = smul.addr %s3040, 128
        %s3042 = scalar_lea.vmem [#allocation11], %s3041
        // Predicated region
        $region53: #{tpu_custom_call.1} parent=39 // pred_check
          %p3043 = pneg %p172
        $region54: #{tpu_custom_call.1} parent=39 // pred_check_branch
          %3045 = sbr.rel (%p3043) target = $region56
        $region55: #{tpu_custom_call.1} parent=39 // pred_region
          %s3046 = smul.u32 16, %s28
          %s3048 = ssub.s32 2048, 2048
          %3049 = vsyncadd %s3039, %s3048
          %s3050 = smul.addr %s27, 16
          %s3051 = sadd.s32 %s3046, %s3050
          %s3052 = smul.addr %s3051, 128
          %s3053 = scalar_lea.hbm %s5, %s3052
          %s3054 = sshll.u32 %s3042, 4
          %s3055 = int_to_ptr.vmem [resolvable:$true] %s3054
          %3060 = dma.vmem_to_hbm [thread:$0]  %s3055, 2048, %s3053, %s3039, 128, 128, 8
        $region56: #{tpu_custom_call.1} parent=39 // pred_fallthru
          _
      $region40: #{tpu_custom_call.1} parent=5 // pred_fallthru
        _
      %p3061 = scmp.le.s32.totalorder 2, %s18
      // Predicated region
      $region57: #{tpu_custom_call.1} parent=5 // pred_check
        %p3062 = pneg %p3061
      $region58: #{tpu_custom_call.1} parent=5 // pred_check_branch
        %3064 = sbr.rel (%p3062) target = $region60
      $region59: #{tpu_custom_call.1} parent=5 // pred_region
        %s3065 = ssub.s32 %s18, 2
        // Predicated region
        $region61: #{tpu_custom_call.1} parent=59 // pred_check
          %p3066 = pneg %p178
        $region62: #{tpu_custom_call.1} parent=59 // pred_check_branch
          %3068 = sbr.rel (%p3066) target = $region64
        $region63: #{tpu_custom_call.1} parent=59 // pred_region
          %s3069 = sand.u32 %s163, 1
          %s3070 = scalar_lea.sflag [#allocation8], %s3069
          %s3071 = sand.u32 %s163, 1
          %s3072 = smul.addr %s3071, 128
          %s3073 = scalar_lea.vmem [#allocation11], %s3072
          %3074 = dma.done %s3070, 2048
        $region64: #{tpu_custom_call.1} parent=59 // pred_fallthru
          _
      $region60: #{tpu_custom_call.1} parent=5 // pred_fallthru
        _
    $region6: #{tpu_custom_call.1} parent=1 // loop_footer
      %s22 = sadd.s32 1, %s18
    $region7: #{tpu_custom_call.1} parent=1 // loop_footer_branch
      %17 = sbr.rel target = $region3
    $region8: #{tpu_custom_call.1} parent=1 // loop_exit
      _
    %3075 = vsyncpa [#allocation7], 1
    %s3076 = scalar_lea.sflag [#allocation7], 1
    %3077 = vsyncpa %s3076, 1
    %3078 = vsyncpa [#allocation10], 1
    %s3079 = scalar_lea.sflag [#allocation10], 1
    %3080 = vsyncpa %s3079, 1
    %3081 = vsyncpa [#allocation8], 1
    %s3082 = scalar_lea.sflag [#allocation8], 1
    %3083 = vsyncpa %s3082, 1

</llo_original>
